<compile_context>
chip_gen: v5e
topology: v5e:2x2
jax: 0.10.0
libtpu: 0.0.40
codegen_flags: <defaults>
</compile_context>

<pallas_src>
import functools

import jax
import jax.numpy as jnp
import numpy as np
from jax import lax
from jax.experimental import pallas as pl
from jax.experimental.pallas import tpu as pltpu


def _bottleneck_kernel(x_ref, w1_ref, b1_ref, w2_ref, b2_ref, w3_ref, b3_ref,
                       o_ref, acc_ref, *, NB, H, W, Cin, Wp, Cout):
    """Fused bottleneck for NB images per grid step (NHWC, inference BN folded)."""
    f32, bf16 = jnp.float32, jnp.bfloat16
    M = NB * H * W

    # ---- stage 1: 1x1 conv (BN folded into weights) -> bias -> ReLU ----------
    x_bf = x_ref[...].reshape(M, Cin).astype(bf16)
    h1 = jnp.dot(x_bf, w1_ref[...], preferred_element_type=f32)
    h1 = jnp.maximum(h1 + b1_ref[...], 0.0)                      # (M, Wp) f32

    # ---- stage 2: 3x3 conv (pad=1, stride=1) -> bias -> ReLU -----------------
    # Column variants (dx = -1, 0, +1) built ONCE in bf16 and packed along the
    # contraction axis: operand (M, 3*Wp) vs. per-ky weight (3*Wp, Wp).
    h1b = h1.astype(bf16).reshape(NB * H, W, Wp)
    zcol = jnp.zeros((NB * H, 1, Wp), bf16)
    col_l = jnp.concatenate([zcol, h1b[:, :W - 1, :]], axis=1)   # tap[:, x] = h1[:, x-1]
    col_r = jnp.concatenate([h1b[:, 1:, :], zcol], axis=1)       # tap[:, x] = h1[:, x+1]
    colpk = jnp.concatenate([col_l, h1b, col_r], axis=2).reshape(M, 3 * Wp)

    # Row taps: accumulate row-shifted windows into the VMEM scratch accumulator.
    # ky = 1 (dy = 0) initializes the accumulator (full extent, no zero fill).
    acc_ref[...] = jnp.dot(colpk, w2_ref[1], preferred_element_type=f32)
    if H > 1:
        rows = (H - 1) * W
        for img in range(NB):            # row shifts must not leak across images
            base = img * H * W
            # ky = 0 (dy = -1): out rows [1, H) read h1 rows [0, H-1)
            acc_ref[pl.ds(base + W, rows), :] += jnp.dot(
                colpk[base:base + rows, :], w2_ref[0],
                preferred_element_type=f32)
            # ky = 2 (dy = +1): out rows [0, H-1) read h1 rows [1, H)
            acc_ref[pl.ds(base, rows), :] += jnp.dot(
                colpk[base + W:base + H * W, :], w2_ref[2],
                preferred_element_type=f32)
    h2 = jnp.maximum(acc_ref[...] + b2_ref[...], 0.0)            # (M, Wp) f32

    # ---- stage 3: 1x1 conv (BN folded) -> bias --------------------------------
    h3 = jnp.dot(h2.astype(bf16), w3_ref[...], preferred_element_type=f32)
    h3 = h3 + b3_ref[...]                                        # (M, Cout) f32

    # ---- residual add + ReLU (re-read x from the resident VMEM block) --------
    xres = x_ref[...].reshape(M, Cin).astype(f32)
    out = jnp.maximum(h3 + xres, 0.0)
    o_ref[...] = out.reshape(NB, H, W, Cout).astype(o_ref.dtype)


def _vmem_limit_bytes():
    """Generation-aware VMEM budget with a safe fallback."""
    cap = 0
    try:
        cap = int(pltpu.get_tpu_info().vmem_capacity_bytes)
    except Exception:
        cap = 0
    if cap <= 0:
        cap = 128 * 1024 * 1024
    # ~96 MiB on 128 MiB parts (v5e/v6e); ~48 MiB on v7x (64 MiB per TC).
    return min(cap * 3 // 4, 96 * 1024 * 1024)


def bottleneck_forward(x_nhwc, params, *, images_per_step=None):
    """x_nhwc: (N, H, W, Cin).  Returns (N, H, W, Cout) in NHWC, same dtype as x."""
    N, H, W, Cin = x_nhwc.shape
    w1, s1, b1, w2, s2, b2, w3, s3, b3 = params
    width = w1.shape[1]
    Cout = w3.shape[1]
    assert Cout == Cin, "residual add requires inplanes == planes * expansion (stride=1, no downsample)"

    # Lane-dense intermediate width (multiple of 128); padded channels are zero
    # everywhere so semantics are unchanged.
    Wp = max(128, ((width + 127) // 128) * 128)
    f32, bf16 = jnp.float32, jnp.bfloat16

    # Fold BN scales into the conv weights (output-channel scaling), pad to Wp,
    # cast MXU operands to bf16 once at trace time.
    w1f = jnp.zeros((Cin, Wp), f32).at[:, :width].set(w1 * s1).astype(bf16)      # (Cin, Wp)
    w2f = jnp.zeros((3, 3, Wp, Wp), f32).at[:, :, :width, :width].set(
        w2 * s2.reshape(1, 1, 1, width))                                          # HWIO padded
    # Pack kx along the contraction axis: per ky, rows are [kx=0 ; kx=1 ; kx=2],
    # matching the kernel's [col_left | col_center | col_right] operand packing.
    w2f = w2f.reshape(3, 3 * Wp, Wp).astype(bf16)                                  # (3, 3*Wp, Wp)
    w3f = jnp.zeros((Wp, Cout), f32).at[:width, :].set(w3 * s3).astype(bf16)      # (Wp, Cout)
    b1p = jnp.zeros((1, Wp), f32).at[:, :width].set(b1)
    b2p = jnp.zeros((1, Wp), f32).at[:, :width].set(b2)
    b3p = b3.reshape(1, Cout).astype(f32)

    # Fold several small images into one grid step so the MXU sees a large M and
    # the per-step overhead is amortized (toy shapes); one image/step otherwise.
    if images_per_step is None:
        images_per_step = max(1, min(N, 1024 // max(1, H * W)))
    images_per_step = max(1, min(N, images_per_step))
    while N % images_per_step != 0:
        images_per_step -= 1
    NB = images_per_step

    kernel = functools.partial(_bottleneck_kernel,
                               NB=NB, H=H, W=W, Cin=Cin, Wp=Wp, Cout=Cout)

    return pl.pallas_call(
        kernel,
        out_shape=jax.ShapeDtypeStruct((N, H, W, Cout), x_nhwc.dtype),
        grid=(N // NB,),
        in_specs=[
            pl.BlockSpec((NB, H, W, Cin), lambda n: (n, 0, 0, 0)),     # x (NB images)
            pl.BlockSpec((Cin, Wp), lambda n: (0, 0)),                 # w1 (folded, bf16)
            pl.BlockSpec((1, Wp), lambda n: (0, 0)),                   # b1
            pl.BlockSpec((3, 3 * Wp, Wp), lambda n: (0, 0, 0)),        # w2 (K-packed, bf16)
            pl.BlockSpec((1, Wp), lambda n: (0, 0)),                   # b2
            pl.BlockSpec((Wp, Cout), lambda n: (0, 0)),                # w3 (folded, bf16)
            pl.BlockSpec((1, Cout), lambda n: (0, 0)),                 # b3
        ],
        out_specs=pl.BlockSpec((NB, H, W, Cout), lambda n: (n, 0, 0, 0)),
        scratch_shapes=[pltpu.VMEM((NB * H * W, Wp), jnp.float32)],    # stage-2 accumulator
        compiler_params=pltpu.CompilerParams(
            dimension_semantics=("parallel",),
            vmem_limit_bytes=_vmem_limit_bytes(),
        ),
    )(x_nhwc, w1f, b1p, w2f, b2p, w3f, b3p)


def make_params(key, inplanes, planes, base_width=64, groups=1, expansion=4):
    """Deterministic synthetic params. Returns folded-BN (scale, bias) per stage."""
    width = int(planes * (base_width / 64.0)) * groups
    cout = planes * expansion
    ks = jax.random.split(key, 4)
    eps = 1e-5

    def bn_fold(kg, kb, km, kv, c):
        gamma = 1.0 + 0.05 * jax.random.normal(kg, (c,), jnp.float32)
        beta = 0.05 * jax.random.normal(kb, (c,), jnp.float32)
        mean = 0.05 * jax.random.normal(km, (c,), jnp.float32)
        var = jnp.abs(1.0 + 0.05 * jax.random.normal(kv, (c,), jnp.float32))
        scale = gamma / jnp.sqrt(var + eps)
        bias = beta - mean * scale
        return scale.reshape(1, c), bias.reshape(1, c)

    # conv weights stored already transposed for channel-last matmuls
    w1 = 0.1 * jax.random.normal(ks[0], (inplanes, width), jnp.float32)        # (Cin, width)
    w2 = 0.1 * jax.random.normal(ks[1], (3, 3, width, width), jnp.float32)     # HWIO
    w3 = 0.1 * jax.random.normal(ks[2], (width, cout), jnp.float32)            # (width, Cout)

    kbn = jax.random.split(ks[3], 12)
    s1, b1 = bn_fold(kbn[0], kbn[1], kbn[2], kbn[3], width)
    s2, b2 = bn_fold(kbn[4], kbn[5], kbn[6], kbn[7], width)
    s3, b3 = bn_fold(kbn[8], kbn[9], kbn[10], kbn[11], cout)

    return (w1, s1, b1, w2, s2, b2, w3, s3, b3)


def bottleneck_reference(x_nhwc, params):
    """Pure-JAX NHWC reference for validation."""
    w1, s1, b1, w2, s2, b2, w3, s3, b3 = params
    relu = lambda t: jnp.maximum(t, 0.0)
    dn = ("NHWC", "HWIO", "NHWC")

    def conv1x1(x, w):  # w: (Cin, Cout)
        return lax.conv_general_dilated(x, w[None, None], (1, 1), "VALID",
                                        dimension_numbers=dn)

    def conv3x3(x, w):  # w: (3,3,Cin,Cout) HWIO
        return lax.conv_general_dilated(x, w, (1, 1), ((1, 1), (1, 1)),
                                        dimension_numbers=dn)

    def bn(x, s, b):
        return x * s.reshape(1, 1, 1, -1) + b.reshape(1, 1, 1, -1)

    out = relu(bn(conv1x1(x_nhwc, w1), s1, b1))
    out = relu(bn(conv3x3(out, w2), s2, b2))
    out = bn(conv1x1(out, w3), s3, b3)
    return relu(out + x_nhwc)


if __name__ == "__main__":
    key = jax.random.PRNGKey(0)
    k_x, k_p = jax.random.split(key)

    # Small Bottleneck: inplanes = planes * expansion = 16, spatial 16x16, batch 2.
    N, inplanes, planes, H, W = 2, 16, 4, 16, 16
    x_nchw = jax.random.normal(k_x, (N, inplanes, H, W), jnp.float32)   # PyTorch layout
    x_nhwc = jnp.transpose(x_nchw, (0, 2, 3, 1))                        # one-time layout prep
    params = make_params(k_p, inplanes, planes)

    fwd = jax.jit(bottleneck_forward)
    out = jax.block_until_ready(fwd(x_nhwc, params))

    ref = bottleneck_reference(x_nhwc, params)
    assert out.shape == ref.shape == (N, H, W, planes * 4)
    assert np.allclose(np.asarray(out), np.asarray(ref), rtol=2e-2, atol=2e-2)

    print("KERNEL_OK")
</pallas_src>

<mosaic_0001>
module attributes {stable_mosaic.version = 11 : i64} {
  func.func @_bottleneck_kernel(%arg0: i32, %arg1: memref<2x16x16x16xf32, #tpu.memory_space<vmem>>, %arg2: memref<16x128xbf16, #tpu.memory_space<vmem>>, %arg3: memref<1x128xf32, #tpu.memory_space<vmem>>, %arg4: memref<3x384x128xbf16, #tpu.memory_space<vmem>>, %arg5: memref<1x128xf32, #tpu.memory_space<vmem>>, %arg6: memref<128x16xbf16, #tpu.memory_space<vmem>>, %arg7: memref<1x16xf32, #tpu.memory_space<vmem>>, %arg8: memref<2x16x16x16xf32, #tpu.memory_space<vmem>>, %arg9: memref<512x128xf32, #tpu.memory_space<vmem>>) attributes {dimension_semantics = [#tpu.dimension_semantics<parallel>], iteration_bounds = array<i64: 1>, scalar_prefetch = 0 : i64, scratch_operands = 1 : i64, tpu.core_type = #tpu.core_type<tc>, window_params = [{transform_indices = @transform_0, window_bounds = array<i64: 2, 16, 16, 16>}, {pipeline_mode = #tpu.pipeline_mode<synchronous>, transform_indices = @transform_1, window_bounds = array<i64: 16, 128>}, {pipeline_mode = #tpu.pipeline_mode<synchronous>, transform_indices = @transform_2, window_bounds = array<i64: 1, 128>}, {pipeline_mode = #tpu.pipeline_mode<synchronous>, transform_indices = @transform_3, window_bounds = array<i64: 3, 384, 128>}, {pipeline_mode = #tpu.pipeline_mode<synchronous>, transform_indices = @transform_4, window_bounds = array<i64: 1, 128>}, {pipeline_mode = #tpu.pipeline_mode<synchronous>, transform_indices = @transform_5, window_bounds = array<i64: 128, 16>}, {pipeline_mode = #tpu.pipeline_mode<synchronous>, transform_indices = @transform_6, window_bounds = array<i64: 1, 16>}, {transform_indices = @transform_7, window_bounds = array<i64: 2, 16, 16, 16>}]} {
    %c0 = arith.constant 0 : index
    %c0_0 = arith.constant 0 : index
    %c0_1 = arith.constant 0 : index
    %c0_2 = arith.constant 0 : index
    %0 = vector.load %arg1[%c0, %c0_0, %c0_1, %c0_2] : memref<2x16x16x16xf32, #tpu.memory_space<vmem>>, vector<2x16x16x16xf32>
    %1 = vector.shape_cast %0 : vector<2x16x16x16xf32> to vector<512x16xf32>
    %2 = arith.truncf %1 : vector<512x16xf32> to vector<512x16xbf16>
    %c0_3 = arith.constant 0 : index
    %c0_4 = arith.constant 0 : index
    %3 = vector.load %arg2[%c0_3, %c0_4] : memref<16x128xbf16, #tpu.memory_space<vmem>>, vector<16x128xbf16>
    %cst = arith.constant dense<0.000000e+00> : vector<512x128xf32>
    %4 = tpu.matmul %2, %3, %cst {dimension_numbers = #tpu.dot_dimension_numbers<[1], [0], [0], [1], [0, 0, 1, 1], [], []>} : vector<512x16xbf16>, vector<16x128xbf16>, vector<512x128xf32> -> vector<512x128xf32>
    %c0_5 = arith.constant 0 : index
    %c0_6 = arith.constant 0 : index
    %5 = vector.load %arg3[%c0_5, %c0_6] : memref<1x128xf32, #tpu.memory_space<vmem>>, vector<1x128xf32>
    %6 = vector.broadcast %5 : vector<1x128xf32> to vector<512x128xf32>
    %7 = arith.addf %4, %6 : vector<512x128xf32>
    %cst_7 = arith.constant 0.000000e+00 : f32
    %8 = vector.broadcast %cst_7 : f32 to vector<512x128xf32>
    %9 = arith.maximumf %7, %8 : vector<512x128xf32>
    %10 = arith.truncf %9 : vector<512x128xf32> to vector<512x128xbf16>
    %11 = vector.shape_cast %10 : vector<512x128xbf16> to vector<32x16x128xbf16>
    %cst_8 = arith.constant 0.000000e+00 : bf16
    %12 = vector.broadcast %cst_8 : bf16 to vector<32x1x128xbf16>
    %13 = vector.extract_strided_slice %11 {offsets = [0, 0, 0], sizes = [32, 15, 128], strides = [1, 1, 1]} : vector<32x16x128xbf16> to vector<32x15x128xbf16>
    %14 = tpu.concatenate %12, %13 in 1 : vector<32x1x128xbf16>, vector<32x15x128xbf16> -> vector<32x16x128xbf16>
    %15 = vector.extract_strided_slice %11 {offsets = [0, 1, 0], sizes = [32, 15, 128], strides = [1, 1, 1]} : vector<32x16x128xbf16> to vector<32x15x128xbf16>
    %16 = tpu.concatenate %15, %12 in 1 : vector<32x15x128xbf16>, vector<32x1x128xbf16> -> vector<32x16x128xbf16>
    %17 = tpu.concatenate %14, %11, %16 in 2 : vector<32x16x128xbf16>, vector<32x16x128xbf16>, vector<32x16x128xbf16> -> vector<32x16x384xbf16>
    %18 = vector.shape_cast %17 : vector<32x16x384xbf16> to vector<512x384xbf16>
    %c1 = arith.constant 1 : index
    %c0_9 = arith.constant 0 : index
    %c0_10 = arith.constant 0 : index
    %19 = vector.load %arg4[%c1, %c0_9, %c0_10] : memref<3x384x128xbf16, #tpu.memory_space<vmem>>, vector<1x384x128xbf16>
    %20 = vector.shape_cast %19 : vector<1x384x128xbf16> to vector<384x128xbf16>
    %cst_11 = arith.constant dense<0.000000e+00> : vector<512x128xf32>
    %21 = tpu.matmul %18, %20, %cst_11 {dimension_numbers = #tpu.dot_dimension_numbers<[1], [0], [0], [1], [0, 0, 1, 1], [], []>} : vector<512x384xbf16>, vector<384x128xbf16>, vector<512x128xf32> -> vector<512x128xf32>
    %c0_12 = arith.constant 0 : index
    %c0_13 = arith.constant 0 : index
    %22 = vector.load %arg9[%c0_12, %c0_13] : memref<512x128xf32, #tpu.memory_space<vmem>>, vector<512x128xf32>
    tpu.vector_store %arg9[%c0_12, %c0_13], %21 {strides = array<i32>} : memref<512x128xf32, #tpu.memory_space<vmem>>, vector<512x128xf32>,
    %c16 = arith.constant 16 : index
    %c0_14 = arith.constant 0 : index
    %23 = vector.load %arg9[%c16, %c0_14] : memref<512x128xf32, #tpu.memory_space<vmem>>, vector<240x128xf32>
    %24 = vector.extract_strided_slice %18 {offsets = [0, 0], sizes = [240, 384], strides = [1, 1]} : vector<512x384xbf16> to vector<240x384xbf16>
    %c0_15 = arith.constant 0 : index
    %c0_16 = arith.constant 0 : index
    %c0_17 = arith.constant 0 : index
    %25 = vector.load %arg4[%c0_15, %c0_16, %c0_17] : memref<3x384x128xbf16, #tpu.memory_space<vmem>>, vector<1x384x128xbf16>
    %26 = vector.shape_cast %25 : vector<1x384x128xbf16> to vector<384x128xbf16>
    %cst_18 = arith.constant dense<0.000000e+00> : vector<240x128xf32>
    %27 = tpu.matmul %24, %26, %cst_18 {dimension_numbers = #tpu.dot_dimension_numbers<[1], [0], [0], [1], [0, 0, 1, 1], [], []>} : vector<240x384xbf16>, vector<384x128xbf16>, vector<240x128xf32> -> vector<240x128xf32>
    %28 = arith.addf %23, %27 : vector<240x128xf32>
    %c16_19 = arith.constant 16 : index
    %c0_20 = arith.constant 0 : index
    %29 = vector.load %arg9[%c16_19, %c0_20] : memref<512x128xf32, #tpu.memory_space<vmem>>, vector<240x128xf32>
    tpu.vector_store %arg9[%c16_19, %c0_20], %28 {strides = array<i32>} : memref<512x128xf32, #tpu.memory_space<vmem>>, vector<240x128xf32>,
    %c0_21 = arith.constant 0 : index
    %c0_22 = arith.constant 0 : index
    %30 = vector.load %arg9[%c0_21, %c0_22] : memref<512x128xf32, #tpu.memory_space<vmem>>, vector<240x128xf32>
    %31 = vector.extract_strided_slice %18 {offsets = [16, 0], sizes = [240, 384], strides = [1, 1]} : vector<512x384xbf16> to vector<240x384xbf16>
    %c2 = arith.constant 2 : index
    %c0_23 = arith.constant 0 : index
    %c0_24 = arith.constant 0 : index
    %32 = vector.load %arg4[%c2, %c0_23, %c0_24] : memref<3x384x128xbf16, #tpu.memory_space<vmem>>, vector<1x384x128xbf16>
    %33 = vector.shape_cast %32 : vector<1x384x128xbf16> to vector<384x128xbf16>
    %cst_25 = arith.constant dense<0.000000e+00> : vector<240x128xf32>
    %34 = tpu.matmul %31, %33, %cst_25 {dimension_numbers = #tpu.dot_dimension_numbers<[1], [0], [0], [1], [0, 0, 1, 1], [], []>} : vector<240x384xbf16>, vector<384x128xbf16>, vector<240x128xf32> -> vector<240x128xf32>
    %35 = arith.addf %30, %34 : vector<240x128xf32>
    %c0_26 = arith.constant 0 : index
    %c0_27 = arith.constant 0 : index
    %36 = vector.load %arg9[%c0_26, %c0_27] : memref<512x128xf32, #tpu.memory_space<vmem>>, vector<240x128xf32>
    tpu.vector_store %arg9[%c0_26, %c0_27], %35 {strides = array<i32>} : memref<512x128xf32, #tpu.memory_space<vmem>>, vector<240x128xf32>,
    %c272 = arith.constant 272 : index
    %c0_28 = arith.constant 0 : index
    %37 = vector.load %arg9[%c272, %c0_28] : memref<512x128xf32, #tpu.memory_space<vmem>>, vector<240x128xf32>
    %38 = vector.extract_strided_slice %18 {offsets = [256, 0], sizes = [240, 384], strides = [1, 1]} : vector<512x384xbf16> to vector<240x384xbf16>
    %c0_29 = arith.constant 0 : index
    %c0_30 = arith.constant 0 : index
    %c0_31 = arith.constant 0 : index
    %39 = vector.load %arg4[%c0_29, %c0_30, %c0_31] : memref<3x384x128xbf16, #tpu.memory_space<vmem>>, vector<1x384x128xbf16>
    %40 = vector.shape_cast %39 : vector<1x384x128xbf16> to vector<384x128xbf16>
    %cst_32 = arith.constant dense<0.000000e+00> : vector<240x128xf32>
    %41 = tpu.matmul %38, %40, %cst_32 {dimension_numbers = #tpu.dot_dimension_numbers<[1], [0], [0], [1], [0, 0, 1, 1], [], []>} : vector<240x384xbf16>, vector<384x128xbf16>, vector<240x128xf32> -> vector<240x128xf32>
    %42 = arith.addf %37, %41 : vector<240x128xf32>
    %c272_33 = arith.constant 272 : index
    %c0_34 = arith.constant 0 : index
    %43 = vector.load %arg9[%c272_33, %c0_34] : memref<512x128xf32, #tpu.memory_space<vmem>>, vector<240x128xf32>
    tpu.vector_store %arg9[%c272_33, %c0_34], %42 {strides = array<i32>} : memref<512x128xf32, #tpu.memory_space<vmem>>, vector<240x128xf32>,
    %c256 = arith.constant 256 : index
    %c0_35 = arith.constant 0 : index
    %44 = vector.load %arg9[%c256, %c0_35] : memref<512x128xf32, #tpu.memory_space<vmem>>, vector<240x128xf32>
    %45 = vector.extract_strided_slice %18 {offsets = [272, 0], sizes = [240, 384], strides = [1, 1]} : vector<512x384xbf16> to vector<240x384xbf16>
    %c2_36 = arith.constant 2 : index
    %c0_37 = arith.constant 0 : index
    %c0_38 = arith.constant 0 : index
    %46 = vector.load %arg4[%c2_36, %c0_37, %c0_38] : memref<3x384x128xbf16, #tpu.memory_space<vmem>>, vector<1x384x128xbf16>
    %47 = vector.shape_cast %46 : vector<1x384x128xbf16> to vector<384x128xbf16>
    %cst_39 = arith.constant dense<0.000000e+00> : vector<240x128xf32>
    %48 = tpu.matmul %45, %47, %cst_39 {dimension_numbers = #tpu.dot_dimension_numbers<[1], [0], [0], [1], [0, 0, 1, 1], [], []>} : vector<240x384xbf16>, vector<384x128xbf16>, vector<240x128xf32> -> vector<240x128xf32>
    %49 = arith.addf %44, %48 : vector<240x128xf32>
    %c256_40 = arith.constant 256 : index
    %c0_41 = arith.constant 0 : index
    %50 = vector.load %arg9[%c256_40, %c0_41] : memref<512x128xf32, #tpu.memory_space<vmem>>, vector<240x128xf32>
    tpu.vector_store %arg9[%c256_40, %c0_41], %49 {strides = array<i32>} : memref<512x128xf32, #tpu.memory_space<vmem>>, vector<240x128xf32>,
    %c0_42 = arith.constant 0 : index
    %c0_43 = arith.constant 0 : index
    %51 = vector.load %arg9[%c0_42, %c0_43] : memref<512x128xf32, #tpu.memory_space<vmem>>, vector<512x128xf32>
    %c0_44 = arith.constant 0 : index
    %c0_45 = arith.constant 0 : index
    %52 = vector.load %arg5[%c0_44, %c0_45] : memref<1x128xf32, #tpu.memory_space<vmem>>, vector<1x128xf32>
    %53 = vector.broadcast %52 : vector<1x128xf32> to vector<512x128xf32>
    %54 = arith.addf %51, %53 : vector<512x128xf32>
    %cst_46 = arith.constant 0.000000e+00 : f32
    %55 = vector.broadcast %cst_46 : f32 to vector<512x128xf32>
    %56 = arith.maximumf %54, %55 : vector<512x128xf32>
    %57 = arith.truncf %56 : vector<512x128xf32> to vector<512x128xbf16>
    %c0_47 = arith.constant 0 : index
    %c0_48 = arith.constant 0 : index
    %58 = vector.load %arg6[%c0_47, %c0_48] : memref<128x16xbf16, #tpu.memory_space<vmem>>, vector<128x16xbf16>
    %cst_49 = arith.constant dense<0.000000e+00> : vector<512x16xf32>
    %59 = tpu.matmul %57, %58, %cst_49 {dimension_numbers = #tpu.dot_dimension_numbers<[1], [0], [0], [1], [0, 0, 1, 1], [], []>} : vector<512x128xbf16>, vector<128x16xbf16>, vector<512x16xf32> -> vector<512x16xf32>
    %c0_50 = arith.constant 0 : index
    %c0_51 = arith.constant 0 : index
    %60 = vector.load %arg7[%c0_50, %c0_51] : memref<1x16xf32, #tpu.memory_space<vmem>>, vector<1x16xf32>
    %61 = vector.broadcast %60 : vector<1x16xf32> to vector<512x16xf32>
    %62 = arith.addf %59, %61 : vector<512x16xf32>
    %c0_52 = arith.constant 0 : index
    %c0_53 = arith.constant 0 : index
    %c0_54 = arith.constant 0 : index
    %c0_55 = arith.constant 0 : index
    %63 = vector.load %arg1[%c0_52, %c0_53, %c0_54, %c0_55] : memref<2x16x16x16xf32, #tpu.memory_space<vmem>>, vector<2x16x16x16xf32>
    %64 = vector.shape_cast %63 : vector<2x16x16x16xf32> to vector<512x16xf32>
    %65 = arith.addf %62, %64 : vector<512x16xf32>
    %cst_56 = arith.constant 0.000000e+00 : f32
    %66 = vector.broadcast %cst_56 : f32 to vector<512x16xf32>
    %67 = arith.maximumf %65, %66 : vector<512x16xf32>
    %68 = vector.shape_cast %67 : vector<512x16xf32> to vector<2x16x16x16xf32>
    %c0_57 = arith.constant 0 : index
    %c0_58 = arith.constant 0 : index
    %c0_59 = arith.constant 0 : index
    %c0_60 = arith.constant 0 : index
    %69 = vector.load %arg8[%c0_57, %c0_58, %c0_59, %c0_60] : memref<2x16x16x16xf32, #tpu.memory_space<vmem>>, vector<2x16x16x16xf32>
    tpu.vector_store %arg8[%c0_57, %c0_58, %c0_59, %c0_60], %68 {strides = array<i32>} : memref<2x16x16x16xf32, #tpu.memory_space<vmem>>, vector<2x16x16x16xf32>,
    return
  }
  func.func @transform_0(%arg0: i32) -> (i32, i32, i32, i32) {
    %c0_i32 = arith.constant 0 : i32
    %c0_i32_0 = arith.constant 0 : i32
    %c0_i32_1 = arith.constant 0 : i32
    %c0_i32_2 = arith.constant 0 : i32
    return %arg0, %c0_i32, %c0_i32_0, %c0_i32_1 : i32, i32, i32, i32
  }
  func.func @transform_1(%arg0: i32) -> (i32, i32) {
    %c0_i32 = arith.constant 0 : i32
    %c0_i32_0 = arith.constant 0 : i32
    %c0_i32_1 = arith.constant 0 : i32
    return %c0_i32, %c0_i32_0 : i32, i32
  }
  func.func @transform_2(%arg0: i32) -> (i32, i32) {
    %c0_i32 = arith.constant 0 : i32
    %c0_i32_0 = arith.constant 0 : i32
    %c0_i32_1 = arith.constant 0 : i32
    return %c0_i32, %c0_i32_0 : i32, i32
  }
  func.func @transform_3(%arg0: i32) -> (i32, i32, i32) {
    %c0_i32 = arith.constant 0 : i32
    %c0_i32_0 = arith.constant 0 : i32
    %c0_i32_1 = arith.constant 0 : i32
    %c0_i32_2 = arith.constant 0 : i32
    return %c0_i32, %c0_i32_0, %c0_i32_1 : i32, i32, i32
  }
  func.func @transform_4(%arg0: i32) -> (i32, i32) {
    %c0_i32 = arith.constant 0 : i32
    %c0_i32_0 = arith.constant 0 : i32
    %c0_i32_1 = arith.constant 0 : i32
    return %c0_i32, %c0_i32_0 : i32, i32
  }
  func.func @transform_5(%arg0: i32) -> (i32, i32) {
    %c0_i32 = arith.constant 0 : i32
    %c0_i32_0 = arith.constant 0 : i32
    %c0_i32_1 = arith.constant 0 : i32
    return %c0_i32, %c0_i32_0 : i32, i32
  }
  func.func @transform_6(%arg0: i32) -> (i32, i32) {
    %c0_i32 = arith.constant 0 : i32
    %c0_i32_0 = arith.constant 0 : i32
    %c0_i32_1 = arith.constant 0 : i32
    return %c0_i32, %c0_i32_0 : i32, i32
  }
  func.func @transform_7(%arg0: i32) -> (i32, i32, i32, i32) {
    %c0_i32 = arith.constant 0 : i32
    %c0_i32_0 = arith.constant 0 : i32
    %c0_i32_1 = arith.constant 0 : i32
    %c0_i32_2 = arith.constant 0 : i32
    return %arg0, %c0_i32, %c0_i32_0, %c0_i32_1 : i32, i32, i32, i32
  }
}

</mosaic_0001>

<llo_original>
// kernel: bottleneck_forward.1
$region0: #{bottleneck_forward.1}
  #allocation0 [shape = 'u32[]', space=smem, size = 0x4, offset = 0x4, fixed_abs, tag = 'smem constant byte address 0x4 - core index']
  #allocation1 [shape = 'u32[72,128]{1,0:T(1,128)}', space=vmem, size = 0x9000, scoped, tag = 'internal scratch']
  #allocation2 [shape = 'f32[512,128]{1,0:T(8,128)}', space=vmem, size = 0x40000, scoped, tag = 'scratch operand']
  %s0 = inlined_call_operand.vmem [shape: f32[2,16,16,16], index: 0, kind: input, shape index: {}]
  %s1 = inlined_call_operand.vmem [shape: bf16[16,128], index: 1, kind: input, shape index: {}]
  %s2 = inlined_call_operand.vmem [shape: f32[1,128], index: 2, kind: input, shape index: {}]
  %s3 = inlined_call_operand.vmem [shape: bf16[3,384,128], index: 3, kind: input, shape index: {}]
  %s4 = inlined_call_operand.vmem [shape: f32[1,128], index: 4, kind: input, shape index: {}]
  %s5 = inlined_call_operand.vmem [shape: bf16[128,16], index: 5, kind: input, shape index: {}]
  %s6 = inlined_call_operand.vmem [shape: f32[1,16], index: 6, kind: input, shape index: {}]
  %s7 = inlined_call_operand.hbm [shape: f32[2,16,16,16], index: 7, kind: output, shape index: {}]
  %s8 = sld [smem:[#allocation0]]
  $region38: #{bottleneck_forward.1} parent=0
    _
  %s10 = ssub.s32 1, %s8
  %s11 = scalar_select 0, %s10, %s8
  $region1: #{bottleneck_forward.1} parent=0
    #allocation3 [shape = 'u8[262144]{0}', space=vmem, size = 0x40000, scoped, tag = 'output window, operand 0, single buffered']
    #allocation4 [shape = 's32[1]{0}', space=sflag, size = 0x4, scoped, tag = 'scoped memory for bottleneck_forward.1']
    %12 = vsyncpa [#allocation4], 0
    // Predicated region
    $region2: #{bottleneck_forward.1} parent=1 // pred_check
      _
    $region3: #{bottleneck_forward.1} parent=1 // pred_check_branch
      %14 = sbr.rel (0) target = $region5
    $region4: #{bottleneck_forward.1} parent=1 // pred_region
      _
    $region5: #{bottleneck_forward.1} parent=1 // pred_fallthru
      _
    // Predicated region
    $region6: #{bottleneck_forward.1} parent=1 // pred_check
      _
    $region7: #{bottleneck_forward.1} parent=1 // pred_check_branch
      %16 = sbr.rel (0) target = $region9
    $region8: #{bottleneck_forward.1} parent=1 // pred_region
      _
    $region9: #{bottleneck_forward.1} parent=1 // pred_fallthru
      _
    // Predicated region
    $region10: #{bottleneck_forward.1} parent=1 // pred_check
      _
    $region11: #{bottleneck_forward.1} parent=1 // pred_check_branch
      %18 = sbr.rel (0) target = $region13
    $region12: #{bottleneck_forward.1} parent=1 // pred_region
      _
    $region13: #{bottleneck_forward.1} parent=1 // pred_fallthru
      _
    // Predicated region
    $region14: #{bottleneck_forward.1} parent=1 // pred_check
      _
    $region15: #{bottleneck_forward.1} parent=1 // pred_check_branch
      %20 = sbr.rel (0) target = $region17
    $region16: #{bottleneck_forward.1} parent=1 // pred_region
      _
    $region17: #{bottleneck_forward.1} parent=1 // pred_fallthru
      _
    // Predicated region
    $region18: #{bottleneck_forward.1} parent=1 // pred_check
      _
    $region19: #{bottleneck_forward.1} parent=1 // pred_check_branch
      %22 = sbr.rel (0) target = $region21
    $region20: #{bottleneck_forward.1} parent=1 // pred_region
      _
    $region21: #{bottleneck_forward.1} parent=1 // pred_fallthru
      _
    // Predicated region
    $region22: #{bottleneck_forward.1} parent=1 // pred_check
      _
    $region23: #{bottleneck_forward.1} parent=1 // pred_check_branch
      %24 = sbr.rel (0) target = $region25
    $region24: #{bottleneck_forward.1} parent=1 // pred_region
      _
    $region25: #{bottleneck_forward.1} parent=1 // pred_fallthru
      _
    // Predicated region
    $region26: #{bottleneck_forward.1} parent=1 // pred_check
      _
    $region27: #{bottleneck_forward.1} parent=1 // pred_check_branch
      %26 = sbr.rel (0) target = $region29
    $region28: #{bottleneck_forward.1} parent=1 // pred_region
      _
    $region29: #{bottleneck_forward.1} parent=1 // pred_fallthru
      _
    %v28 = vld [vmem:[%s0] sm:$0xff]
    %v29 = vld [vmem:[%s0 + $0x8] sm:$0xff]
    %v30 = vld [vmem:[%s0 + $0x10] sm:$0xff]
    %v31 = vld [vmem:[%s0 + $0x18] sm:$0xff]
    %v32 = vld [vmem:[%s0 + $0x20] sm:$0xff]
    %v33 = vld [vmem:[%s0 + $0x28] sm:$0xff]
    %v34 = vld [vmem:[%s0 + $0x30] sm:$0xff]
    %v35 = vld [vmem:[%s0 + $0x38] sm:$0xff]
    %v36 = vld [vmem:[%s0 + $0x40] sm:$0xff]
    %v37 = vld [vmem:[%s0 + $0x48] sm:$0xff]
    %v38 = vld [vmem:[%s0 + $0x50] sm:$0xff]
    %v39 = vld [vmem:[%s0 + $0x58] sm:$0xff]
    %v40 = vld [vmem:[%s0 + $0x60] sm:$0xff]
    %v41 = vld [vmem:[%s0 + $0x68] sm:$0xff]
    %v42 = vld [vmem:[%s0 + $0x70] sm:$0xff]
    %v43 = vld [vmem:[%s0 + $0x78] sm:$0xff]
    %v44 = vld [vmem:[%s0 + $0x80] sm:$0xff]
    %v45 = vld [vmem:[%s0 + $0x88] sm:$0xff]
    %v46 = vld [vmem:[%s0 + $0x90] sm:$0xff]
    %v47 = vld [vmem:[%s0 + $0x98] sm:$0xff]
    %v48 = vld [vmem:[%s0 + $0xa0] sm:$0xff]
    %v49 = vld [vmem:[%s0 + $0xa8] sm:$0xff]
    %v50 = vld [vmem:[%s0 + $0xb0] sm:$0xff]
    %v51 = vld [vmem:[%s0 + $0xb8] sm:$0xff]
    %v52 = vld [vmem:[%s0 + $0xc0] sm:$0xff]
    %v53 = vld [vmem:[%s0 + $0xc8] sm:$0xff]
    %v54 = vld [vmem:[%s0 + $0xd0] sm:$0xff]
    %v55 = vld [vmem:[%s0 + $0xd8] sm:$0xff]
    %v56 = vld [vmem:[%s0 + $0xe0] sm:$0xff]
    %v57 = vld [vmem:[%s0 + $0xe8] sm:$0xff]
    %v58 = vld [vmem:[%s0 + $0xf0] sm:$0xff]
    %v59 = vld [vmem:[%s0 + $0xf8] sm:$0xff]
    %v60 = vld [vmem:[%s0 + $0x100] sm:$0xff]
    %v61 = vld [vmem:[%s0 + $0x108] sm:$0xff]
    %v62 = vld [vmem:[%s0 + $0x110] sm:$0xff]
    %v63 = vld [vmem:[%s0 + $0x118] sm:$0xff]
    %v64 = vld [vmem:[%s0 + $0x120] sm:$0xff]
    %v65 = vld [vmem:[%s0 + $0x128] sm:$0xff]
    %v66 = vld [vmem:[%s0 + $0x130] sm:$0xff]
    %v67 = vld [vmem:[%s0 + $0x138] sm:$0xff]
    %v68 = vld [vmem:[%s0 + $0x140] sm:$0xff]
    %v69 = vld [vmem:[%s0 + $0x148] sm:$0xff]
    %v70 = vld [vmem:[%s0 + $0x150] sm:$0xff]
    %v71 = vld [vmem:[%s0 + $0x158] sm:$0xff]
    %v72 = vld [vmem:[%s0 + $0x160] sm:$0xff]
    %v73 = vld [vmem:[%s0 + $0x168] sm:$0xff]
    %v74 = vld [vmem:[%s0 + $0x170] sm:$0xff]
    %v75 = vld [vmem:[%s0 + $0x178] sm:$0xff]
    %v76 = vld [vmem:[%s0 + $0x180] sm:$0xff]
    %v77 = vld [vmem:[%s0 + $0x188] sm:$0xff]
    %v78 = vld [vmem:[%s0 + $0x190] sm:$0xff]
    %v79 = vld [vmem:[%s0 + $0x198] sm:$0xff]
    %v80 = vld [vmem:[%s0 + $0x1a0] sm:$0xff]
    %v81 = vld [vmem:[%s0 + $0x1a8] sm:$0xff]
    %v82 = vld [vmem:[%s0 + $0x1b0] sm:$0xff]
    %v83 = vld [vmem:[%s0 + $0x1b8] sm:$0xff]
    %v84 = vld [vmem:[%s0 + $0x1c0] sm:$0xff]
    %v85 = vld [vmem:[%s0 + $0x1c8] sm:$0xff]
    %v86 = vld [vmem:[%s0 + $0x1d0] sm:$0xff]
    %v87 = vld [vmem:[%s0 + $0x1d8] sm:$0xff]
    %v88 = vld [vmem:[%s0 + $0x1e0] sm:$0xff]
    %v89 = vld [vmem:[%s0 + $0x1e8] sm:$0xff]
    %v90 = vld [vmem:[%s0 + $0x1f0] sm:$0xff]
    %v91 = vld [vmem:[%s0 + $0x1f8] sm:$0xff]
    %v92 = vpack.c.bf16 %v29, %v28
    %v93 = vpack.c.bf16 %v31, %v30
    %v94 = vpack.c.bf16 %v33, %v32
    %v95 = vpack.c.bf16 %v35, %v34
    %v96 = vpack.c.bf16 %v37, %v36
    %v97 = vpack.c.bf16 %v39, %v38
    %v98 = vpack.c.bf16 %v41, %v40
    %v99 = vpack.c.bf16 %v43, %v42
    %v100 = vpack.c.bf16 %v45, %v44
    %v101 = vpack.c.bf16 %v47, %v46
    %v102 = vpack.c.bf16 %v49, %v48
    %v103 = vpack.c.bf16 %v51, %v50
    %v104 = vpack.c.bf16 %v53, %v52
    %v105 = vpack.c.bf16 %v55, %v54
    %v106 = vpack.c.bf16 %v57, %v56
    %v107 = vpack.c.bf16 %v59, %v58
    %v108 = vpack.c.bf16 %v61, %v60
    %v109 = vpack.c.bf16 %v63, %v62
    %v110 = vpack.c.bf16 %v65, %v64
    %v111 = vpack.c.bf16 %v67, %v66
    %v112 = vpack.c.bf16 %v69, %v68
    %v113 = vpack.c.bf16 %v71, %v70
    %v114 = vpack.c.bf16 %v73, %v72
    %v115 = vpack.c.bf16 %v75, %v74
    %v116 = vpack.c.bf16 %v77, %v76
    %v117 = vpack.c.bf16 %v79, %v78
    %v118 = vpack.c.bf16 %v81, %v80
    %v119 = vpack.c.bf16 %v83, %v82
    %v120 = vpack.c.bf16 %v85, %v84
    %v121 = vpack.c.bf16 %v87, %v86
    %v122 = vpack.c.bf16 %v89, %v88
    %v123 = vpack.c.bf16 %v91, %v90
    %v124 = vld [vmem:[%s1] sm:$0xf]
    %v125 = vld [vmem:[%s1 + $0x4] sm:$0xf]
    %v126 = vld [vmem:[%s2] sm:$0x1]
    %v128 = vperm.slane %v126, 0
    %v132 = vunpack.c.l.b16 %v124
    %v133 = vunpack.c.l.b16 %v125
    %v134 = vpack.c.b16 %v133, %v132
    %vm136 = vcmask 130048
    %v138 = vsel %vm136, %v92, 0
    %v141 = vsel %vm136, %v93, 0
    %v144 = vsel %vm136, %v94, 0
    %v147 = vsel %vm136, %v95, 0
    %v150 = vsel %vm136, %v96, 0
    %v153 = vsel %vm136, %v97, 0
    %v156 = vsel %vm136, %v98, 0
    %v159 = vsel %vm136, %v99, 0
    %v162 = vsel %vm136, %v100, 0
    %v165 = vsel %vm136, %v101, 0
    %v168 = vsel %vm136, %v102, 0
    %v171 = vsel %vm136, %v103, 0
    %v174 = vsel %vm136, %v104, 0
    %v177 = vsel %vm136, %v105, 0
    %v180 = vsel %vm136, %v106, 0
    %v183 = vsel %vm136, %v107, 0
    %v186 = vsel %vm136, %v108, 0
    %v189 = vsel %vm136, %v109, 0
    %v192 = vsel %vm136, %v110, 0
    %v195 = vsel %vm136, %v111, 0
    %v198 = vsel %vm136, %v112, 0
    %v201 = vsel %vm136, %v113, 0
    %v204 = vsel %vm136, %v114, 0
    %v207 = vsel %vm136, %v115, 0
    %v210 = vsel %vm136, %v116, 0
    %v213 = vsel %vm136, %v117, 0
    %v216 = vsel %vm136, %v118, 0
    %v219 = vsel %vm136, %v119, 0
    %v222 = vsel %vm136, %v120, 0
    %v225 = vsel %vm136, %v121, 0
    %v228 = vsel %vm136, %v122, 0
    %v231 = vsel %vm136, %v123, 0
    %233 = vmatpush.bf16.msra.mxu0 0
    %234 = vmatpush.bf16.msra.mxu0 0
    %235 = vmatpush.bf16.msra.mxu0 0
    %236 = vmatpush.bf16.msra.mxu0 0
    %237 = vmatpush.bf16.msra.mxu0 0
    %238 = vmatpush.bf16.msra.mxu0 0
    %239 = vmatpush.bf16.msra.mxu0 0
    %240 = vmatpush.bf16.msra.mxu0 %v134
    %241 = vmatmul.bf16.gmra.mxu0 %v138
    %v242 = vpop.f32.mrf.mxu0
    %v243 = vadd.f32 %v128, %v242
    %v244 = vpop.f32.mrf.mxu0
    %v245 = vadd.f32 %v128, %v244
    %246 = vmatmul.bf16.gmra.mxu0 %v141
    %v247 = vpop.f32.mrf.mxu0
    %v248 = vadd.f32 %v128, %v247
    %v249 = vpop.f32.mrf.mxu0
    %v250 = vadd.f32 %v128, %v249
    %251 = vmatmul.bf16.gmra.mxu0 %v144
    %v252 = vpop.f32.mrf.mxu0
    %v253 = vadd.f32 %v128, %v252
    %v254 = vpop.f32.mrf.mxu0
    %v255 = vadd.f32 %v128, %v254
    %256 = vmatmul.bf16.gmra.mxu0 %v147
    %v257 = vpop.f32.mrf.mxu0
    %v258 = vadd.f32 %v128, %v257
    %v259 = vpop.f32.mrf.mxu0
    %v260 = vadd.f32 %v128, %v259
    %261 = vmatmul.bf16.gmra.mxu0 %v150
    %v262 = vpop.f32.mrf.mxu0
    %v263 = vadd.f32 %v128, %v262
    %v264 = vpop.f32.mrf.mxu0
    %v265 = vadd.f32 %v128, %v264
    %266 = vmatmul.bf16.gmra.mxu0 %v153
    %v267 = vpop.f32.mrf.mxu0
    %v268 = vadd.f32 %v128, %v267
    %v269 = vpop.f32.mrf.mxu0
    %v270 = vadd.f32 %v128, %v269
    %271 = vmatmul.bf16.gmra.mxu0 %v156
    %v272 = vpop.f32.mrf.mxu0
    %v273 = vadd.f32 %v128, %v272
    %v274 = vpop.f32.mrf.mxu0
    %v275 = vadd.f32 %v128, %v274
    %276 = vmatmul.bf16.gmra.mxu0 %v159
    %v277 = vpop.f32.mrf.mxu0
    %v278 = vadd.f32 %v128, %v277
    %v279 = vpop.f32.mrf.mxu0
    %v280 = vadd.f32 %v128, %v279
    %281 = vmatmul.bf16.gmra.mxu0 %v162
    %v282 = vpop.f32.mrf.mxu0
    %v283 = vadd.f32 %v128, %v282
    %v284 = vpop.f32.mrf.mxu0
    %v285 = vadd.f32 %v128, %v284
    %286 = vmatmul.bf16.gmra.mxu0 %v165
    %v287 = vpop.f32.mrf.mxu0
    %v288 = vadd.f32 %v128, %v287
    %v289 = vpop.f32.mrf.mxu0
    %v290 = vadd.f32 %v128, %v289
    %291 = vmatmul.bf16.gmra.mxu0 %v168
    %v292 = vpop.f32.mrf.mxu0
    %v293 = vadd.f32 %v128, %v292
    %v294 = vpop.f32.mrf.mxu0
    %v295 = vadd.f32 %v128, %v294
    %296 = vmatmul.bf16.gmra.mxu0 %v171
    %v297 = vpop.f32.mrf.mxu0
    %v298 = vadd.f32 %v128, %v297
    %v299 = vpop.f32.mrf.mxu0
    %v300 = vadd.f32 %v128, %v299
    %301 = vmatmul.bf16.gmra.mxu0 %v174
    %v302 = vpop.f32.mrf.mxu0
    %v303 = vadd.f32 %v128, %v302
    %v304 = vpop.f32.mrf.mxu0
    %v305 = vadd.f32 %v128, %v304
    %306 = vmatmul.bf16.gmra.mxu0 %v177
    %v307 = vpop.f32.mrf.mxu0
    %v308 = vadd.f32 %v128, %v307
    %v309 = vpop.f32.mrf.mxu0
    %v310 = vadd.f32 %v128, %v309
    %311 = vmatmul.bf16.gmra.mxu0 %v180
    %v312 = vpop.f32.mrf.mxu0
    %v313 = vadd.f32 %v128, %v312
    %v314 = vpop.f32.mrf.mxu0
    %v315 = vadd.f32 %v128, %v314
    %316 = vmatmul.bf16.gmra.mxu0 %v183
    %v317 = vpop.f32.mrf.mxu0
    %v318 = vadd.f32 %v128, %v317
    %v319 = vpop.f32.mrf.mxu0
    %v320 = vadd.f32 %v128, %v319
    %321 = vmatmul.bf16.gmra.mxu0 %v186
    %v322 = vpop.f32.mrf.mxu0
    %v323 = vadd.f32 %v128, %v322
    %v324 = vpop.f32.mrf.mxu0
    %v325 = vadd.f32 %v128, %v324
    %326 = vmatmul.bf16.gmra.mxu0 %v189
    %v327 = vpop.f32.mrf.mxu0
    %v328 = vadd.f32 %v128, %v327
    %v329 = vpop.f32.mrf.mxu0
    %v330 = vadd.f32 %v128, %v329
    %331 = vmatmul.bf16.gmra.mxu0 %v192
    %v332 = vpop.f32.mrf.mxu0
    %v333 = vadd.f32 %v128, %v332
    %v334 = vpop.f32.mrf.mxu0
    %v335 = vadd.f32 %v128, %v334
    %336 = vmatmul.bf16.gmra.mxu0 %v195
    %v337 = vpop.f32.mrf.mxu0
    %v338 = vadd.f32 %v128, %v337
    %v339 = vpop.f32.mrf.mxu0
    %v340 = vadd.f32 %v128, %v339
    %341 = vmatmul.bf16.gmra.mxu0 %v198
    %v342 = vpop.f32.mrf.mxu0
    %v343 = vadd.f32 %v128, %v342
    %v344 = vpop.f32.mrf.mxu0
    %v345 = vadd.f32 %v128, %v344
    %346 = vmatmul.bf16.gmra.mxu0 %v201
    %v347 = vpop.f32.mrf.mxu0
    %v348 = vadd.f32 %v128, %v347
    %v349 = vpop.f32.mrf.mxu0
    %v350 = vadd.f32 %v128, %v349
    %351 = vmatmul.bf16.gmra.mxu0 %v204
    %v352 = vpop.f32.mrf.mxu0
    %v353 = vadd.f32 %v128, %v352
    %v354 = vpop.f32.mrf.mxu0
    %v355 = vadd.f32 %v128, %v354
    %356 = vmatmul.bf16.gmra.mxu0 %v207
    %v357 = vpop.f32.mrf.mxu0
    %v358 = vadd.f32 %v128, %v357
    %v359 = vpop.f32.mrf.mxu0
    %v360 = vadd.f32 %v128, %v359
    %361 = vmatmul.bf16.gmra.mxu0 %v210
    %v362 = vpop.f32.mrf.mxu0
    %v363 = vadd.f32 %v128, %v362
    %v364 = vpop.f32.mrf.mxu0
    %v365 = vadd.f32 %v128, %v364
    %366 = vmatmul.bf16.gmra.mxu0 %v213
    %v367 = vpop.f32.mrf.mxu0
    %v368 = vadd.f32 %v128, %v367
    %v369 = vpop.f32.mrf.mxu0
    %v370 = vadd.f32 %v128, %v369
    %371 = vmatmul.bf16.gmra.mxu0 %v216
    %v372 = vpop.f32.mrf.mxu0
    %v373 = vadd.f32 %v128, %v372
    %v374 = vpop.f32.mrf.mxu0
    %v375 = vadd.f32 %v128, %v374
    %376 = vmatmul.bf16.gmra.mxu0 %v219
    %v377 = vpop.f32.mrf.mxu0
    %v378 = vadd.f32 %v128, %v377
    %v379 = vpop.f32.mrf.mxu0
    %v380 = vadd.f32 %v128, %v379
    %381 = vmatmul.bf16.gmra.mxu0 %v222
    %v382 = vpop.f32.mrf.mxu0
    %v383 = vadd.f32 %v128, %v382
    %v384 = vpop.f32.mrf.mxu0
    %v385 = vadd.f32 %v128, %v384
    %386 = vmatmul.bf16.gmra.mxu0 %v225
    %v387 = vpop.f32.mrf.mxu0
    %v388 = vadd.f32 %v128, %v387
    %v389 = vpop.f32.mrf.mxu0
    %v390 = vadd.f32 %v128, %v389
    %391 = vmatmul.bf16.gmra.mxu0 %v228
    %v392 = vpop.f32.mrf.mxu0
    %v393 = vadd.f32 %v128, %v392
    %v394 = vpop.f32.mrf.mxu0
    %v395 = vadd.f32 %v128, %v394
    %396 = vmatmul.bf16.gmra.mxu0 %v231
    %v397 = vpop.f32.mrf.mxu0
    %v398 = vadd.f32 %v128, %v397
    %v399 = vpop.f32.mrf.mxu0
    %v400 = vadd.f32 %v128, %v399
    %401 = vdwg.mxu0
    %v402 = vmax.f32 %v243, 0.0
    %v403 = vmax.f32 %v245, 0.0
    %v404 = vmax.f32 %v248, 0.0
    %v405 = vmax.f32 %v250, 0.0
    %v406 = vmax.f32 %v253, 0.0
    %v407 = vmax.f32 %v255, 0.0
    %v408 = vmax.f32 %v258, 0.0
    %v409 = vmax.f32 %v260, 0.0
    %v410 = vmax.f32 %v263, 0.0
    %v411 = vmax.f32 %v265, 0.0
    %v412 = vmax.f32 %v268, 0.0
    %v413 = vmax.f32 %v270, 0.0
    %v414 = vmax.f32 %v273, 0.0
    %v415 = vmax.f32 %v275, 0.0
    %v416 = vmax.f32 %v278, 0.0
    %v417 = vmax.f32 %v280, 0.0
    %v418 = vmax.f32 %v283, 0.0
    %v419 = vmax.f32 %v285, 0.0
    %v420 = vmax.f32 %v288, 0.0
    %v421 = vmax.f32 %v290, 0.0
    %v422 = vmax.f32 %v293, 0.0
    %v423 = vmax.f32 %v295, 0.0
    %v424 = vmax.f32 %v298, 0.0
    %v425 = vmax.f32 %v300, 0.0
    %v426 = vmax.f32 %v303, 0.0
    %v427 = vmax.f32 %v305, 0.0
    %v428 = vmax.f32 %v308, 0.0
    %v429 = vmax.f32 %v310, 0.0
    %v430 = vmax.f32 %v313, 0.0
    %v431 = vmax.f32 %v315, 0.0
    %v432 = vmax.f32 %v318, 0.0
    %v433 = vmax.f32 %v320, 0.0
    %v434 = vmax.f32 %v323, 0.0
    %v435 = vmax.f32 %v325, 0.0
    %v436 = vmax.f32 %v328, 0.0
    %v437 = vmax.f32 %v330, 0.0
    %v438 = vmax.f32 %v333, 0.0
    %v439 = vmax.f32 %v335, 0.0
    %v440 = vmax.f32 %v338, 0.0
    %v441 = vmax.f32 %v340, 0.0
    %v442 = vmax.f32 %v343, 0.0
    %v443 = vmax.f32 %v345, 0.0
    %v444 = vmax.f32 %v348, 0.0
    %v445 = vmax.f32 %v350, 0.0
    %v446 = vmax.f32 %v353, 0.0
    %v447 = vmax.f32 %v355, 0.0
    %v448 = vmax.f32 %v358, 0.0
    %v449 = vmax.f32 %v360, 0.0
    %v450 = vmax.f32 %v363, 0.0
    %v451 = vmax.f32 %v365, 0.0
    %v452 = vmax.f32 %v368, 0.0
    %v453 = vmax.f32 %v370, 0.0
    %v454 = vmax.f32 %v373, 0.0
    %v455 = vmax.f32 %v375, 0.0
    %v456 = vmax.f32 %v378, 0.0
    %v457 = vmax.f32 %v380, 0.0
    %v458 = vmax.f32 %v383, 0.0
    %v459 = vmax.f32 %v385, 0.0
    %v460 = vmax.f32 %v388, 0.0
    %v461 = vmax.f32 %v390, 0.0
    %v462 = vmax.f32 %v393, 0.0
    %v463 = vmax.f32 %v395, 0.0
    %v464 = vmax.f32 %v398, 0.0
    %v465 = vmax.f32 %v400, 0.0
    %v466 = vpack.c.bf16 %v402, %v402
    %v467 = vpack.c.bf16 %v403, %v403
    %v468 = vpack.c.bf16 %v404, %v404
    %v469 = vpack.c.bf16 %v405, %v405
    %v470 = vpack.c.bf16 %v406, %v406
    %v471 = vpack.c.bf16 %v407, %v407
    %v472 = vpack.c.bf16 %v408, %v408
    %v473 = vpack.c.bf16 %v409, %v409
    %v474 = vpack.c.bf16 %v410, %v410
    %v475 = vpack.c.bf16 %v411, %v411
    %v476 = vpack.c.bf16 %v412, %v412
    %v477 = vpack.c.bf16 %v413, %v413
    %v478 = vpack.c.bf16 %v414, %v414
    %v479 = vpack.c.bf16 %v415, %v415
    %v480 = vpack.c.bf16 %v416, %v416
    %v481 = vpack.c.bf16 %v417, %v417
    %v482 = vpack.c.bf16 %v418, %v418
    %v483 = vpack.c.bf16 %v419, %v419
    %v484 = vpack.c.bf16 %v420, %v420
    %v485 = vpack.c.bf16 %v421, %v421
    %v486 = vpack.c.bf16 %v422, %v422
    %v487 = vpack.c.bf16 %v423, %v423
    %v488 = vpack.c.bf16 %v424, %v424
    %v489 = vpack.c.bf16 %v425, %v425
    %v490 = vpack.c.bf16 %v426, %v426
    %v491 = vpack.c.bf16 %v427, %v427
    %v492 = vpack.c.bf16 %v428, %v428
    %v493 = vpack.c.bf16 %v429, %v429
    %v494 = vpack.c.bf16 %v430, %v430
    %v495 = vpack.c.bf16 %v431, %v431
    %v496 = vpack.c.bf16 %v432, %v432
    %v497 = vpack.c.bf16 %v433, %v433
    %v498 = vpack.c.bf16 %v434, %v434
    %v499 = vpack.c.bf16 %v435, %v435
    %v500 = vpack.c.bf16 %v436, %v436
    %v501 = vpack.c.bf16 %v437, %v437
    %v502 = vpack.c.bf16 %v438, %v438
    %v503 = vpack.c.bf16 %v439, %v439
    %v504 = vpack.c.bf16 %v440, %v440
    %v505 = vpack.c.bf16 %v441, %v441
    %v506 = vpack.c.bf16 %v442, %v442
    %v507 = vpack.c.bf16 %v443, %v443
    %v508 = vpack.c.bf16 %v444, %v444
    %v509 = vpack.c.bf16 %v445, %v445
    %v510 = vpack.c.bf16 %v446, %v446
    %v511 = vpack.c.bf16 %v447, %v447
    %v512 = vpack.c.bf16 %v448, %v448
    %v513 = vpack.c.bf16 %v449, %v449
    %v514 = vpack.c.bf16 %v450, %v450
    %v515 = vpack.c.bf16 %v451, %v451
    %v516 = vpack.c.bf16 %v452, %v452
    %v517 = vpack.c.bf16 %v453, %v453
    %v518 = vpack.c.bf16 %v454, %v454
    %v519 = vpack.c.bf16 %v455, %v455
    %v520 = vpack.c.bf16 %v456, %v456
    %v521 = vpack.c.bf16 %v457, %v457
    %v522 = vpack.c.bf16 %v458, %v458
    %v523 = vpack.c.bf16 %v459, %v459
    %v524 = vpack.c.bf16 %v460, %v460
    %v525 = vpack.c.bf16 %v461, %v461
    %v526 = vpack.c.bf16 %v462, %v462
    %v527 = vpack.c.bf16 %v463, %v463
    %v528 = vpack.c.bf16 %v464, %v464
    %v529 = vpack.c.bf16 %v465, %v465
    %v594 = vunpack.c.l.b16 %v466
    %v595 = vunpack.c.l.b16 %v467
    %v596 = vunpack.c.l.b16 %v468
    %v597 = vunpack.c.l.b16 %v469
    %v598 = vunpack.c.l.b16 %v470
    %v599 = vunpack.c.l.b16 %v471
    %v600 = vunpack.c.l.b16 %v472
    %v601 = vunpack.c.l.b16 %v473
    %v602 = vunpack.c.l.b16 %v474
    %v603 = vunpack.c.l.b16 %v475
    %v604 = vunpack.c.l.b16 %v476
    %v605 = vunpack.c.l.b16 %v477
    %v606 = vunpack.c.l.b16 %v478
    %v607 = vunpack.c.l.b16 %v479
    %v608 = vunpack.c.l.b16 %v480
    %v609 = vunpack.c.l.b16 %v481
    %v610 = vunpack.c.l.b16 %v482
    %v611 = vunpack.c.l.b16 %v483
    %v612 = vunpack.c.l.b16 %v484
    %v613 = vunpack.c.l.b16 %v485
    %v614 = vunpack.c.l.b16 %v486
    %v615 = vunpack.c.l.b16 %v487
    %v616 = vunpack.c.l.b16 %v488
    %v617 = vunpack.c.l.b16 %v489
    %v618 = vunpack.c.l.b16 %v490
    %v619 = vunpack.c.l.b16 %v491
    %v620 = vunpack.c.l.b16 %v492
    %v621 = vunpack.c.l.b16 %v493
    %v622 = vunpack.c.l.b16 %v494
    %v623 = vunpack.c.l.b16 %v495
    %v624 = vunpack.c.l.b16 %v496
    %v625 = vunpack.c.l.b16 %v497
    %v626 = vunpack.c.l.b16 %v498
    %v627 = vunpack.c.l.b16 %v499
    %v628 = vunpack.c.l.b16 %v500
    %v629 = vunpack.c.l.b16 %v501
    %v630 = vunpack.c.l.b16 %v502
    %v631 = vunpack.c.l.b16 %v503
    %v632 = vunpack.c.l.b16 %v504
    %v633 = vunpack.c.l.b16 %v505
    %v634 = vunpack.c.l.b16 %v506
    %v635 = vunpack.c.l.b16 %v507
    %v636 = vunpack.c.l.b16 %v508
    %v637 = vunpack.c.l.b16 %v509
    %v638 = vunpack.c.l.b16 %v510
    %v639 = vunpack.c.l.b16 %v511
    %v640 = vunpack.c.l.b16 %v512
    %v641 = vunpack.c.l.b16 %v513
    %v642 = vunpack.c.l.b16 %v514
    %v643 = vunpack.c.l.b16 %v515
    %v644 = vunpack.c.l.b16 %v516
    %v645 = vunpack.c.l.b16 %v517
    %v646 = vunpack.c.l.b16 %v518
    %v647 = vunpack.c.l.b16 %v519
    %v648 = vunpack.c.l.b16 %v520
    %v649 = vunpack.c.l.b16 %v521
    %v650 = vunpack.c.l.b16 %v522
    %v651 = vunpack.c.l.b16 %v523
    %v652 = vunpack.c.l.b16 %v524
    %v653 = vunpack.c.l.b16 %v525
    %v654 = vunpack.c.l.b16 %v526
    %v655 = vunpack.c.l.b16 %v527
    %v656 = vunpack.c.l.b16 %v528
    %v657 = vunpack.c.l.b16 %v529
    %v658 = vpack.c.b16 %v595, %v594
    %v659 = vpack.c.b16 %v597, %v596
    %v660 = vpack.c.b16 %v599, %v598
    %v661 = vpack.c.b16 %v601, %v600
    %v662 = vpack.c.b16 %v603, %v602
    %v663 = vpack.c.b16 %v605, %v604
    %v664 = vpack.c.b16 %v607, %v606
    %v665 = vpack.c.b16 %v609, %v608
    %v666 = vpack.c.b16 %v611, %v610
    %v667 = vpack.c.b16 %v613, %v612
    %v668 = vpack.c.b16 %v615, %v614
    %v669 = vpack.c.b16 %v617, %v616
    %v670 = vpack.c.b16 %v619, %v618
    %v671 = vpack.c.b16 %v621, %v620
    %v672 = vpack.c.b16 %v623, %v622
    %v673 = vpack.c.b16 %v625, %v624
    %v674 = vpack.c.b16 %v627, %v626
    %v675 = vpack.c.b16 %v629, %v628
    %v676 = vpack.c.b16 %v631, %v630
    %v677 = vpack.c.b16 %v633, %v632
    %v678 = vpack.c.b16 %v635, %v634
    %v679 = vpack.c.b16 %v637, %v636
    %v680 = vpack.c.b16 %v639, %v638
    %v681 = vpack.c.b16 %v641, %v640
    %v682 = vpack.c.b16 %v643, %v642
    %v683 = vpack.c.b16 %v645, %v644
    %v684 = vpack.c.b16 %v647, %v646
    %v685 = vpack.c.b16 %v649, %v648
    %v686 = vpack.c.b16 %v651, %v650
    %v687 = vpack.c.b16 %v653, %v652
    %v688 = vpack.c.b16 %v655, %v654
    %v689 = vpack.c.b16 %v657, %v656
    %v691 = vshrl.u32 %v658, 16
    %v693 = vrot.slane %v691, 7
    %v694 = vshll.u32 %v658, 16
    %v696 = vor.u32 %v693, %v694
    %v698 = vshrl.u32 %v659, 16
    %v700 = vrot.slane %v698, 7
    %v701 = vshll.u32 %v659, 16
    %v703 = vor.u32 %v700, %v701
    %v705 = vshrl.u32 %v660, 16
    %v707 = vrot.slane %v705, 7
    %v708 = vshll.u32 %v660, 16
    %v710 = vor.u32 %v707, %v708
    %v712 = vshrl.u32 %v661, 16
    %v714 = vrot.slane %v712, 7
    %v715 = vshll.u32 %v661, 16
    %v717 = vor.u32 %v714, %v715
    %v719 = vshrl.u32 %v662, 16
    %v721 = vrot.slane %v719, 7
    %v722 = vshll.u32 %v662, 16
    %v724 = vor.u32 %v721, %v722
    %v726 = vshrl.u32 %v663, 16
    %v728 = vrot.slane %v726, 7
    %v729 = vshll.u32 %v663, 16
    %v731 = vor.u32 %v728, %v729
    %v733 = vshrl.u32 %v664, 16
    %v735 = vrot.slane %v733, 7
    %v736 = vshll.u32 %v664, 16
    %v738 = vor.u32 %v735, %v736
    %v740 = vshrl.u32 %v665, 16
    %v742 = vrot.slane %v740, 7
    %v743 = vshll.u32 %v665, 16
    %v745 = vor.u32 %v742, %v743
    %v747 = vshrl.u32 %v666, 16
    %v749 = vrot.slane %v747, 7
    %v750 = vshll.u32 %v666, 16
    %v752 = vor.u32 %v749, %v750
    %v754 = vshrl.u32 %v667, 16
    %v756 = vrot.slane %v754, 7
    %v757 = vshll.u32 %v667, 16
    %v759 = vor.u32 %v756, %v757
    %v761 = vshrl.u32 %v668, 16
    %v763 = vrot.slane %v761, 7
    %v764 = vshll.u32 %v668, 16
    %v766 = vor.u32 %v763, %v764
    %v768 = vshrl.u32 %v669, 16
    %v770 = vrot.slane %v768, 7
    %v771 = vshll.u32 %v669, 16
    %v773 = vor.u32 %v770, %v771
    %v775 = vshrl.u32 %v670, 16
    %v777 = vrot.slane %v775, 7
    %v778 = vshll.u32 %v670, 16
    %v780 = vor.u32 %v777, %v778
    %v782 = vshrl.u32 %v671, 16
    %v784 = vrot.slane %v782, 7
    %v785 = vshll.u32 %v671, 16
    %v787 = vor.u32 %v784, %v785
    %v789 = vshrl.u32 %v672, 16
    %v791 = vrot.slane %v789, 7
    %v792 = vshll.u32 %v672, 16
    %v794 = vor.u32 %v791, %v792
    %v796 = vshrl.u32 %v673, 16
    %v798 = vrot.slane %v796, 7
    %v799 = vshll.u32 %v673, 16
    %v801 = vor.u32 %v798, %v799
    %v803 = vshrl.u32 %v674, 16
    %v805 = vrot.slane %v803, 7
    %v806 = vshll.u32 %v674, 16
    %v808 = vor.u32 %v805, %v806
    %v810 = vshrl.u32 %v675, 16
    %v812 = vrot.slane %v810, 7
    %v813 = vshll.u32 %v675, 16
    %v815 = vor.u32 %v812, %v813
    %v817 = vshrl.u32 %v676, 16
    %v819 = vrot.slane %v817, 7
    %v820 = vshll.u32 %v676, 16
    %v822 = vor.u32 %v819, %v820
    %v824 = vshrl.u32 %v677, 16
    %v826 = vrot.slane %v824, 7
    %v827 = vshll.u32 %v677, 16
    %v829 = vor.u32 %v826, %v827
    %v831 = vshrl.u32 %v678, 16
    %v833 = vrot.slane %v831, 7
    %v834 = vshll.u32 %v678, 16
    %v836 = vor.u32 %v833, %v834
    %v838 = vshrl.u32 %v679, 16
    %v840 = vrot.slane %v838, 7
    %v841 = vshll.u32 %v679, 16
    %v843 = vor.u32 %v840, %v841
    %v845 = vshrl.u32 %v680, 16
    %v847 = vrot.slane %v845, 7
    %v848 = vshll.u32 %v680, 16
    %v850 = vor.u32 %v847, %v848
    %v852 = vshrl.u32 %v681, 16
    %v854 = vrot.slane %v852, 7
    %v855 = vshll.u32 %v681, 16
    %v857 = vor.u32 %v854, %v855
    %v859 = vshrl.u32 %v682, 16
    %v861 = vrot.slane %v859, 7
    %v862 = vshll.u32 %v682, 16
    %v864 = vor.u32 %v861, %v862
    %v866 = vshrl.u32 %v683, 16
    %v868 = vrot.slane %v866, 7
    %v869 = vshll.u32 %v683, 16
    %v871 = vor.u32 %v868, %v869
    %v873 = vshrl.u32 %v684, 16
    %v875 = vrot.slane %v873, 7
    %v876 = vshll.u32 %v684, 16
    %v878 = vor.u32 %v875, %v876
    %v880 = vshrl.u32 %v685, 16
    %v882 = vrot.slane %v880, 7
    %v883 = vshll.u32 %v685, 16
    %v885 = vor.u32 %v882, %v883
    %v887 = vshrl.u32 %v686, 16
    %v889 = vrot.slane %v887, 7
    %v890 = vshll.u32 %v686, 16
    %v892 = vor.u32 %v889, %v890
    %v894 = vshrl.u32 %v687, 16
    %v896 = vrot.slane %v894, 7
    %v897 = vshll.u32 %v687, 16
    %v899 = vor.u32 %v896, %v897
    %v901 = vshrl.u32 %v688, 16
    %v903 = vrot.slane %v901, 7
    %v904 = vshll.u32 %v688, 16
    %v906 = vor.u32 %v903, %v904
    %v908 = vshrl.u32 %v689, 16
    %v910 = vrot.slane %v908, 7
    %v911 = vshll.u32 %v689, 16
    %v913 = vor.u32 %v910, %v911
    %vm946 = vcmask 1040384
    %vm947 = vsmask.f32 256
    %vm948 = vmand %vm946, %vm947
    %v949 = vsel %vm948, 0, %v696
    %v950 = vsel %vm948, 0, %v703
    %v951 = vsel %vm948, 0, %v710
    %v952 = vsel %vm948, 0, %v717
    %v953 = vsel %vm948, 0, %v724
    %v954 = vsel %vm948, 0, %v731
    %v955 = vsel %vm948, 0, %v738
    %v956 = vsel %vm948, 0, %v745
    %v957 = vsel %vm948, 0, %v752
    %v958 = vsel %vm948, 0, %v759
    %v959 = vsel %vm948, 0, %v766
    %v960 = vsel %vm948, 0, %v773
    %v961 = vsel %vm948, 0, %v780
    %v962 = vsel %vm948, 0, %v787
    %v963 = vsel %vm948, 0, %v794
    %v964 = vsel %vm948, 0, %v801
    %v965 = vsel %vm948, 0, %v808
    %v966 = vsel %vm948, 0, %v815
    %v967 = vsel %vm948, 0, %v822
    %v968 = vsel %vm948, 0, %v829
    %v969 = vsel %vm948, 0, %v836
    %v970 = vsel %vm948, 0, %v843
    %v971 = vsel %vm948, 0, %v850
    %v972 = vsel %vm948, 0, %v857
    %v973 = vsel %vm948, 0, %v864
    %v974 = vsel %vm948, 0, %v871
    %v975 = vsel %vm948, 0, %v878
    %v976 = vsel %vm948, 0, %v885
    %v977 = vsel %vm948, 0, %v892
    %v978 = vsel %vm948, 0, %v899
    %v979 = vsel %vm948, 0, %v906
    %v980 = vsel %vm948, 0, %v913
    %v981 = vrot.slane %v694, 1
    %v982 = vor.u32 %v691, %v981
    %v983 = vrot.slane %v701, 1
    %v984 = vor.u32 %v698, %v983
    %v985 = vrot.slane %v708, 1
    %v986 = vor.u32 %v705, %v985
    %v987 = vrot.slane %v715, 1
    %v988 = vor.u32 %v712, %v987
    %v989 = vrot.slane %v722, 1
    %v990 = vor.u32 %v719, %v989
    %v991 = vrot.slane %v729, 1
    %v992 = vor.u32 %v726, %v991
    %v993 = vrot.slane %v736, 1
    %v994 = vor.u32 %v733, %v993
    %v995 = vrot.slane %v743, 1
    %v996 = vor.u32 %v740, %v995
    %v997 = vrot.slane %v750, 1
    %v998 = vor.u32 %v747, %v997
    %v999 = vrot.slane %v757, 1
    %v1000 = vor.u32 %v754, %v999
    %v1001 = vrot.slane %v764, 1
    %v1002 = vor.u32 %v761, %v1001
    %v1003 = vrot.slane %v771, 1
    %v1004 = vor.u32 %v768, %v1003
    %v1005 = vrot.slane %v778, 1
    %v1006 = vor.u32 %v775, %v1005
    %v1007 = vrot.slane %v785, 1
    %v1008 = vor.u32 %v782, %v1007
    %v1009 = vrot.slane %v792, 1
    %v1010 = vor.u32 %v789, %v1009
    %v1011 = vrot.slane %v799, 1
    %v1012 = vor.u32 %v796, %v1011
    %v1013 = vrot.slane %v806, 1
    %v1014 = vor.u32 %v803, %v1013
    %v1015 = vrot.slane %v813, 1
    %v1016 = vor.u32 %v810, %v1015
    %v1017 = vrot.slane %v820, 1
    %v1018 = vor.u32 %v817, %v1017
    %v1019 = vrot.slane %v827, 1
    %v1020 = vor.u32 %v824, %v1019
    %v1021 = vrot.slane %v834, 1
    %v1022 = vor.u32 %v831, %v1021
    %v1023 = vrot.slane %v841, 1
    %v1024 = vor.u32 %v838, %v1023
    %v1025 = vrot.slane %v848, 1
    %v1026 = vor.u32 %v845, %v1025
    %v1027 = vrot.slane %v855, 1
    %v1028 = vor.u32 %v852, %v1027
    %v1029 = vrot.slane %v862, 1
    %v1030 = vor.u32 %v859, %v1029
    %v1031 = vrot.slane %v869, 1
    %v1032 = vor.u32 %v866, %v1031
    %v1033 = vrot.slane %v876, 1
    %v1034 = vor.u32 %v873, %v1033
    %v1035 = vrot.slane %v883, 1
    %v1036 = vor.u32 %v880, %v1035
    %v1037 = vrot.slane %v890, 1
    %v1038 = vor.u32 %v887, %v1037
    %v1039 = vrot.slane %v897, 1
    %v1040 = vor.u32 %v894, %v1039
    %v1041 = vrot.slane %v904, 1
    %v1042 = vor.u32 %v901, %v1041
    %v1043 = vrot.slane %v911, 1
    %v1044 = vor.u32 %v908, %v1043
    %vm1077 = vcmask 1047552
    %vm1078 = vsmask.f32 7424
    %vm1079 = vmand %vm1077, %vm1078
    %v1080 = vsel %vm1079, %v982, 0
    %v1081 = vsel %vm1079, %v984, 0
    %v1082 = vsel %vm1079, %v986, 0
    %v1083 = vsel %vm1079, %v988, 0
    %v1084 = vsel %vm1079, %v990, 0
    %v1085 = vsel %vm1079, %v992, 0
    %v1086 = vsel %vm1079, %v994, 0
    %v1087 = vsel %vm1079, %v996, 0
    %v1088 = vsel %vm1079, %v998, 0
    %v1089 = vsel %vm1079, %v1000, 0
    %v1090 = vsel %vm1079, %v1002, 0
    %v1091 = vsel %vm1079, %v1004, 0
    %v1092 = vsel %vm1079, %v1006, 0
    %v1093 = vsel %vm1079, %v1008, 0
    %v1094 = vsel %vm1079, %v1010, 0
    %v1095 = vsel %vm1079, %v1012, 0
    %v1096 = vsel %vm1079, %v1014, 0
    %v1097 = vsel %vm1079, %v1016, 0
    %v1098 = vsel %vm1079, %v1018, 0
    %v1099 = vsel %vm1079, %v1020, 0
    %v1100 = vsel %vm1079, %v1022, 0
    %v1101 = vsel %vm1079, %v1024, 0
    %v1102 = vsel %vm1079, %v1026, 0
    %v1103 = vsel %vm1079, %v1028, 0
    %v1104 = vsel %vm1079, %v1030, 0
    %v1105 = vsel %vm1079, %v1032, 0
    %v1106 = vsel %vm1079, %v1034, 0
    %v1107 = vsel %vm1079, %v1036, 0
    %v1108 = vsel %vm1079, %v1038, 0
    %v1109 = vsel %vm1079, %v1040, 0
    %v1110 = vsel %vm1079, %v1042, 0
    %v1111 = vsel %vm1079, %v1044, 0
    %s1144 = scalar_lea.vmem %s3, 192
    %v1145 = vld [vmem:[%s1144] sm:$0xf]
    %v1146 = vld [vmem:[%s1144 + $0x4] sm:$0xf]
    %v1147 = vld [vmem:[%s1144 + $0x8] sm:$0xf]
    %v1148 = vld [vmem:[%s1144 + $0xc] sm:$0xf]
    %v1149 = vld [vmem:[%s1144 + $0x10] sm:$0xf]
    %v1150 = vld [vmem:[%s1144 + $0x14] sm:$0xf]
    %v1151 = vld [vmem:[%s1144 + $0x18] sm:$0xf]
    %v1152 = vld [vmem:[%s1144 + $0x1c] sm:$0xf]
    %v1153 = vld [vmem:[%s1144 + $0x20] sm:$0xf]
    %v1154 = vld [vmem:[%s1144 + $0x24] sm:$0xf]
    %v1155 = vld [vmem:[%s1144 + $0x28] sm:$0xf]
    %v1156 = vld [vmem:[%s1144 + $0x2c] sm:$0xf]
    %v1157 = vld [vmem:[%s1144 + $0x30] sm:$0xf]
    %v1158 = vld [vmem:[%s1144 + $0x34] sm:$0xf]
    %v1159 = vld [vmem:[%s1144 + $0x38] sm:$0xf]
    %v1160 = vld [vmem:[%s1144 + $0x3c] sm:$0xf]
    %v1161 = vld [vmem:[%s1144 + $0x40] sm:$0xf]
    %v1162 = vld [vmem:[%s1144 + $0x44] sm:$0xf]
    %v1163 = vld [vmem:[%s1144 + $0x48] sm:$0xf]
    %v1164 = vld [vmem:[%s1144 + $0x4c] sm:$0xf]
    %v1165 = vld [vmem:[%s1144 + $0x50] sm:$0xf]
    %v1166 = vld [vmem:[%s1144 + $0x54] sm:$0xf]
    %v1167 = vld [vmem:[%s1144 + $0x58] sm:$0xf]
    %v1168 = vld [vmem:[%s1144 + $0x5c] sm:$0xf]
    %v1169 = vld [vmem:[%s1144 + $0x60] sm:$0xf]
    %v1170 = vld [vmem:[%s1144 + $0x64] sm:$0xf]
    %v1171 = vld [vmem:[%s1144 + $0x68] sm:$0xf]
    %v1172 = vld [vmem:[%s1144 + $0x6c] sm:$0xf]
    %v1173 = vld [vmem:[%s1144 + $0x70] sm:$0xf]
    %v1174 = vld [vmem:[%s1144 + $0x74] sm:$0xf]
    %v1175 = vld [vmem:[%s1144 + $0x78] sm:$0xf]
    %v1176 = vld [vmem:[%s1144 + $0x7c] sm:$0xf]
    %v1177 = vld [vmem:[%s1144 + $0x80] sm:$0xf]
    %v1178 = vld [vmem:[%s1144 + $0x84] sm:$0xf]
    %v1179 = vld [vmem:[%s1144 + $0x88] sm:$0xf]
    %v1180 = vld [vmem:[%s1144 + $0x8c] sm:$0xf]
    %v1181 = vld [vmem:[%s1144 + $0x90] sm:$0xf]
    %v1182 = vld [vmem:[%s1144 + $0x94] sm:$0xf]
    %v1183 = vld [vmem:[%s1144 + $0x98] sm:$0xf]
    %v1184 = vld [vmem:[%s1144 + $0x9c] sm:$0xf]
    %v1185 = vld [vmem:[%s1144 + $0xa0] sm:$0xf]
    %v1186 = vld [vmem:[%s1144 + $0xa4] sm:$0xf]
    %v1187 = vld [vmem:[%s1144 + $0xa8] sm:$0xf]
    %v1188 = vld [vmem:[%s1144 + $0xac] sm:$0xf]
    %v1189 = vld [vmem:[%s1144 + $0xb0] sm:$0xf]
    %v1190 = vld [vmem:[%s1144 + $0xb4] sm:$0xf]
    %v1191 = vld [vmem:[%s1144 + $0xb8] sm:$0xf]
    %v1192 = vld [vmem:[%s1144 + $0xbc] sm:$0xf]
    %v1241 = vunpack.c.l.b16 %v1145
    %v1242 = vunpack.c.l.b16 %v1146
    %v1243 = vunpack.c.l.b16 %v1147
    %v1244 = vunpack.c.l.b16 %v1148
    %v1245 = vunpack.c.l.b16 %v1149
    %v1246 = vunpack.c.l.b16 %v1150
    %v1247 = vunpack.c.l.b16 %v1151
    %v1248 = vunpack.c.l.b16 %v1152
    %v1249 = vunpack.c.l.b16 %v1153
    %v1250 = vunpack.c.l.b16 %v1154
    %v1251 = vunpack.c.l.b16 %v1155
    %v1252 = vunpack.c.l.b16 %v1156
    %v1253 = vunpack.c.l.b16 %v1157
    %v1254 = vunpack.c.l.b16 %v1158
    %v1255 = vunpack.c.l.b16 %v1159
    %v1256 = vunpack.c.l.b16 %v1160
    %v1257 = vunpack.c.l.b16 %v1161
    %v1258 = vunpack.c.l.b16 %v1162
    %v1259 = vunpack.c.l.b16 %v1163
    %v1260 = vunpack.c.l.b16 %v1164
    %v1261 = vunpack.c.l.b16 %v1165
    %v1262 = vunpack.c.l.b16 %v1166
    %v1263 = vunpack.c.l.b16 %v1167
    %v1264 = vunpack.c.l.b16 %v1168
    %v1265 = vunpack.c.l.b16 %v1169
    %v1266 = vunpack.c.l.b16 %v1170
    %v1267 = vunpack.c.l.b16 %v1171
    %v1268 = vunpack.c.l.b16 %v1172
    %v1269 = vunpack.c.l.b16 %v1173
    %v1270 = vunpack.c.l.b16 %v1174
    %v1271 = vunpack.c.l.b16 %v1175
    %v1272 = vunpack.c.l.b16 %v1176
    %v1273 = vunpack.c.l.b16 %v1177
    %v1274 = vunpack.c.l.b16 %v1178
    %v1275 = vunpack.c.l.b16 %v1179
    %v1276 = vunpack.c.l.b16 %v1180
    %v1277 = vunpack.c.l.b16 %v1181
    %v1278 = vunpack.c.l.b16 %v1182
    %v1279 = vunpack.c.l.b16 %v1183
    %v1280 = vunpack.c.l.b16 %v1184
    %v1281 = vunpack.c.l.b16 %v1185
    %v1282 = vunpack.c.l.b16 %v1186
    %v1283 = vunpack.c.l.b16 %v1187
    %v1284 = vunpack.c.l.b16 %v1188
    %v1285 = vunpack.c.l.b16 %v1189
    %v1286 = vunpack.c.l.b16 %v1190
    %v1287 = vunpack.c.l.b16 %v1191
    %v1288 = vunpack.c.l.b16 %v1192
    %v1289 = vpack.c.b16 %v1242, %v1241
    %v1290 = vpack.c.b16 %v1244, %v1243
    %v1291 = vpack.c.b16 %v1246, %v1245
    %v1292 = vpack.c.b16 %v1248, %v1247
    %v1293 = vpack.c.b16 %v1250, %v1249
    %v1294 = vpack.c.b16 %v1252, %v1251
    %v1295 = vpack.c.b16 %v1254, %v1253
    %v1296 = vpack.c.b16 %v1256, %v1255
    %v1297 = vpack.c.b16 %v1258, %v1257
    %v1298 = vpack.c.b16 %v1260, %v1259
    %v1299 = vpack.c.b16 %v1262, %v1261
    %v1300 = vpack.c.b16 %v1264, %v1263
    %v1301 = vpack.c.b16 %v1266, %v1265
    %v1302 = vpack.c.b16 %v1268, %v1267
    %v1303 = vpack.c.b16 %v1270, %v1269
    %v1304 = vpack.c.b16 %v1272, %v1271
    %v1305 = vpack.c.b16 %v1274, %v1273
    %v1306 = vpack.c.b16 %v1276, %v1275
    %v1307 = vpack.c.b16 %v1278, %v1277
    %v1308 = vpack.c.b16 %v1280, %v1279
    %v1309 = vpack.c.b16 %v1282, %v1281
    %v1310 = vpack.c.b16 %v1284, %v1283
    %v1311 = vpack.c.b16 %v1286, %v1285
    %v1312 = vpack.c.b16 %v1288, %v1287
    %1337 = vmatpush.bf16.msra.mxu0 %v1296
    %1338 = vmatpush.bf16.msra.mxu0 %v1295
    %1339 = vmatpush.bf16.msra.mxu0 %v1294
    %1340 = vmatpush.bf16.msra.mxu0 %v1293
    %1341 = vmatpush.bf16.msra.mxu0 %v1292
    %1342 = vmatpush.bf16.msra.mxu0 %v1291
    %1343 = vmatpush.bf16.msra.mxu0 %v1290
    %1344 = vmatpush.bf16.msra.mxu0 %v1289
    %1345 = vmatmul.bf16.gmra.mxu0 %v949
    %v1346 = vpop.f32.mrf.mxu0
    %v1347 = vadd.f32 0.0, %v1346
    %v1348 = vpop.f32.mrf.mxu0
    %v1349 = vadd.f32 0.0, %v1348
    %1350 = vmatmul.bf16.gmra.mxu0 %v950
    %v1351 = vpop.f32.mrf.mxu0
    %v1352 = vadd.f32 0.0, %v1351
    %v1353 = vpop.f32.mrf.mxu0
    %v1354 = vadd.f32 0.0, %v1353
    %1355 = vmatmul.bf16.gmra.mxu0 %v951
    %v1356 = vpop.f32.mrf.mxu0
    %v1357 = vadd.f32 0.0, %v1356
    %v1358 = vpop.f32.mrf.mxu0
    %v1359 = vadd.f32 0.0, %v1358
    %1360 = vmatmul.bf16.gmra.mxu0 %v952
    %v1361 = vpop.f32.mrf.mxu0
    %v1362 = vadd.f32 0.0, %v1361
    %v1363 = vpop.f32.mrf.mxu0
    %v1364 = vadd.f32 0.0, %v1363
    %1365 = vmatmul.bf16.gmra.mxu0 %v953
    %v1366 = vpop.f32.mrf.mxu0
    %v1367 = vadd.f32 0.0, %v1366
    %v1368 = vpop.f32.mrf.mxu0
    %v1369 = vadd.f32 0.0, %v1368
    %1370 = vmatmul.bf16.gmra.mxu0 %v954
    %v1371 = vpop.f32.mrf.mxu0
    %v1372 = vadd.f32 0.0, %v1371
    %v1373 = vpop.f32.mrf.mxu0
    %v1374 = vadd.f32 0.0, %v1373
    %1375 = vmatmul.bf16.gmra.mxu0 %v955
    %v1376 = vpop.f32.mrf.mxu0
    %v1377 = vadd.f32 0.0, %v1376
    %v1378 = vpop.f32.mrf.mxu0
    %v1379 = vadd.f32 0.0, %v1378
    %1380 = vmatmul.bf16.gmra.mxu0 %v956
    %v1381 = vpop.f32.mrf.mxu0
    %v1382 = vadd.f32 0.0, %v1381
    %v1383 = vpop.f32.mrf.mxu0
    %v1384 = vadd.f32 0.0, %v1383
    %1385 = vmatmul.bf16.gmra.mxu0 %v957
    %v1386 = vpop.f32.mrf.mxu0
    %v1387 = vadd.f32 0.0, %v1386
    %v1388 = vpop.f32.mrf.mxu0
    %v1389 = vadd.f32 0.0, %v1388
    %1390 = vmatmul.bf16.gmra.mxu0 %v958
    %v1391 = vpop.f32.mrf.mxu0
    %v1392 = vadd.f32 0.0, %v1391
    %v1393 = vpop.f32.mrf.mxu0
    %v1394 = vadd.f32 0.0, %v1393
    %1395 = vmatmul.bf16.gmra.mxu0 %v959
    %v1396 = vpop.f32.mrf.mxu0
    %v1397 = vadd.f32 0.0, %v1396
    %v1398 = vpop.f32.mrf.mxu0
    %v1399 = vadd.f32 0.0, %v1398
    %1400 = vmatmul.bf16.gmra.mxu0 %v960
    %v1401 = vpop.f32.mrf.mxu0
    %v1402 = vadd.f32 0.0, %v1401
    %v1403 = vpop.f32.mrf.mxu0
    %v1404 = vadd.f32 0.0, %v1403
    %1405 = vmatmul.bf16.gmra.mxu0 %v961
    %v1406 = vpop.f32.mrf.mxu0
    %v1407 = vadd.f32 0.0, %v1406
    %v1408 = vpop.f32.mrf.mxu0
    %v1409 = vadd.f32 0.0, %v1408
    %1410 = vmatmul.bf16.gmra.mxu0 %v962
    %v1411 = vpop.f32.mrf.mxu0
    %v1412 = vadd.f32 0.0, %v1411
    %v1413 = vpop.f32.mrf.mxu0
    %v1414 = vadd.f32 0.0, %v1413
    %1415 = vmatmul.bf16.gmra.mxu0 %v963
    %v1416 = vpop.f32.mrf.mxu0
    %v1417 = vadd.f32 0.0, %v1416
    %v1418 = vpop.f32.mrf.mxu0
    %v1419 = vadd.f32 0.0, %v1418
    %1420 = vmatmul.bf16.gmra.mxu0 %v964
    %v1421 = vpop.f32.mrf.mxu0
    %v1422 = vadd.f32 0.0, %v1421
    %v1423 = vpop.f32.mrf.mxu0
    %v1424 = vadd.f32 0.0, %v1423
    %1425 = vmatmul.bf16.gmra.mxu0 %v965
    %v1426 = vpop.f32.mrf.mxu0
    %v1427 = vadd.f32 0.0, %v1426
    %v1428 = vpop.f32.mrf.mxu0
    %v1429 = vadd.f32 0.0, %v1428
    %1430 = vmatmul.bf16.gmra.mxu0 %v966
    %v1431 = vpop.f32.mrf.mxu0
    %v1432 = vadd.f32 0.0, %v1431
    %v1433 = vpop.f32.mrf.mxu0
    %v1434 = vadd.f32 0.0, %v1433
    %1435 = vmatmul.bf16.gmra.mxu0 %v967
    %v1436 = vpop.f32.mrf.mxu0
    %v1437 = vadd.f32 0.0, %v1436
    %v1438 = vpop.f32.mrf.mxu0
    %v1439 = vadd.f32 0.0, %v1438
    %1440 = vmatmul.bf16.gmra.mxu0 %v968
    %v1441 = vpop.f32.mrf.mxu0
    %v1442 = vadd.f32 0.0, %v1441
    %v1443 = vpop.f32.mrf.mxu0
    %v1444 = vadd.f32 0.0, %v1443
    %1445 = vmatmul.bf16.gmra.mxu0 %v969
    %v1446 = vpop.f32.mrf.mxu0
    %v1447 = vadd.f32 0.0, %v1446
    %v1448 = vpop.f32.mrf.mxu0
    %v1449 = vadd.f32 0.0, %v1448
    %1450 = vmatmul.bf16.gmra.mxu0 %v970
    %v1451 = vpop.f32.mrf.mxu0
    %v1452 = vadd.f32 0.0, %v1451
    %v1453 = vpop.f32.mrf.mxu0
    %v1454 = vadd.f32 0.0, %v1453
    %1455 = vmatmul.bf16.gmra.mxu0 %v971
    %v1456 = vpop.f32.mrf.mxu0
    %v1457 = vadd.f32 0.0, %v1456
    %v1458 = vpop.f32.mrf.mxu0
    %v1459 = vadd.f32 0.0, %v1458
    %1460 = vmatmul.bf16.gmra.mxu0 %v972
    %v1461 = vpop.f32.mrf.mxu0
    %v1462 = vadd.f32 0.0, %v1461
    %v1463 = vpop.f32.mrf.mxu0
    %v1464 = vadd.f32 0.0, %v1463
    %1465 = vmatmul.bf16.gmra.mxu0 %v973
    %v1466 = vpop.f32.mrf.mxu0
    %v1467 = vadd.f32 0.0, %v1466
    %v1468 = vpop.f32.mrf.mxu0
    %v1469 = vadd.f32 0.0, %v1468
    %1470 = vmatmul.bf16.gmra.mxu0 %v974
    %v1471 = vpop.f32.mrf.mxu0
    %v1472 = vadd.f32 0.0, %v1471
    %v1473 = vpop.f32.mrf.mxu0
    %v1474 = vadd.f32 0.0, %v1473
    %1475 = vmatmul.bf16.gmra.mxu0 %v975
    %v1476 = vpop.f32.mrf.mxu0
    %v1477 = vadd.f32 0.0, %v1476
    %v1478 = vpop.f32.mrf.mxu0
    %v1479 = vadd.f32 0.0, %v1478
    %1480 = vmatmul.bf16.gmra.mxu0 %v976
    %v1481 = vpop.f32.mrf.mxu0
    %v1482 = vadd.f32 0.0, %v1481
    %v1483 = vpop.f32.mrf.mxu0
    %v1484 = vadd.f32 0.0, %v1483
    %1485 = vmatmul.bf16.gmra.mxu0 %v977
    %v1486 = vpop.f32.mrf.mxu0
    %v1487 = vadd.f32 0.0, %v1486
    %v1488 = vpop.f32.mrf.mxu0
    %v1489 = vadd.f32 0.0, %v1488
    %1490 = vmatmul.bf16.gmra.mxu0 %v978
    %v1491 = vpop.f32.mrf.mxu0
    %v1492 = vadd.f32 0.0, %v1491
    %v1493 = vpop.f32.mrf.mxu0
    %v1494 = vadd.f32 0.0, %v1493
    %1495 = vmatmul.bf16.gmra.mxu0 %v979
    %v1496 = vpop.f32.mrf.mxu0
    %v1497 = vadd.f32 0.0, %v1496
    %v1498 = vpop.f32.mrf.mxu0
    %v1499 = vadd.f32 0.0, %v1498
    %1500 = vmatmul.bf16.gmra.mxu0 %v980
    %v1501 = vpop.f32.mrf.mxu0
    %v1502 = vadd.f32 0.0, %v1501
    %v1503 = vpop.f32.mrf.mxu0
    %v1504 = vadd.f32 0.0, %v1503
    %1505 = vdwg.mxu0
    %1506 = vmatpush.bf16.msra.mxu0 %v1304
    %1507 = vmatpush.bf16.msra.mxu0 %v1303
    %1508 = vmatpush.bf16.msra.mxu0 %v1302
    %1509 = vmatpush.bf16.msra.mxu0 %v1301
    %1510 = vmatpush.bf16.msra.mxu0 %v1300
    %1511 = vmatpush.bf16.msra.mxu0 %v1299
    %1512 = vmatpush.bf16.msra.mxu0 %v1298
    %1513 = vmatpush.bf16.msra.mxu0 %v1297
    %1514 = vmatmul.bf16.gmra.mxu0 %v658
    %v1515 = vpop.f32.mrf.mxu0
    %v1516 = vadd.f32 %v1347, %v1515
    %v1517 = vpop.f32.mrf.mxu0
    %v1518 = vadd.f32 %v1349, %v1517
    %1519 = vmatmul.bf16.gmra.mxu0 %v659
    %v1520 = vpop.f32.mrf.mxu0
    %v1521 = vadd.f32 %v1352, %v1520
    %v1522 = vpop.f32.mrf.mxu0
    %v1523 = vadd.f32 %v1354, %v1522
    %1524 = vmatmul.bf16.gmra.mxu0 %v660
    %v1525 = vpop.f32.mrf.mxu0
    %v1526 = vadd.f32 %v1357, %v1525
    %v1527 = vpop.f32.mrf.mxu0
    %v1528 = vadd.f32 %v1359, %v1527
    %1529 = vmatmul.bf16.gmra.mxu0 %v661
    %v1530 = vpop.f32.mrf.mxu0
    %v1531 = vadd.f32 %v1362, %v1530
    %v1532 = vpop.f32.mrf.mxu0
    %v1533 = vadd.f32 %v1364, %v1532
    %1534 = vmatmul.bf16.gmra.mxu0 %v662
    %v1535 = vpop.f32.mrf.mxu0
    %v1536 = vadd.f32 %v1367, %v1535
    %v1537 = vpop.f32.mrf.mxu0
    %v1538 = vadd.f32 %v1369, %v1537
    %1539 = vmatmul.bf16.gmra.mxu0 %v663
    %v1540 = vpop.f32.mrf.mxu0
    %v1541 = vadd.f32 %v1372, %v1540
    %v1542 = vpop.f32.mrf.mxu0
    %v1543 = vadd.f32 %v1374, %v1542
    %1544 = vmatmul.bf16.gmra.mxu0 %v664
    %v1545 = vpop.f32.mrf.mxu0
    %v1546 = vadd.f32 %v1377, %v1545
    %v1547 = vpop.f32.mrf.mxu0
    %v1548 = vadd.f32 %v1379, %v1547
    %1549 = vmatmul.bf16.gmra.mxu0 %v665
    %v1550 = vpop.f32.mrf.mxu0
    %v1551 = vadd.f32 %v1382, %v1550
    %v1552 = vpop.f32.mrf.mxu0
    %v1553 = vadd.f32 %v1384, %v1552
    %1554 = vmatmul.bf16.gmra.mxu0 %v666
    %v1555 = vpop.f32.mrf.mxu0
    %v1556 = vadd.f32 %v1387, %v1555
    %v1557 = vpop.f32.mrf.mxu0
    %v1558 = vadd.f32 %v1389, %v1557
    %1559 = vmatmul.bf16.gmra.mxu0 %v667
    %v1560 = vpop.f32.mrf.mxu0
    %v1561 = vadd.f32 %v1392, %v1560
    %v1562 = vpop.f32.mrf.mxu0
    %v1563 = vadd.f32 %v1394, %v1562
    %1564 = vmatmul.bf16.gmra.mxu0 %v668
    %v1565 = vpop.f32.mrf.mxu0
    %v1566 = vadd.f32 %v1397, %v1565
    %v1567 = vpop.f32.mrf.mxu0
    %v1568 = vadd.f32 %v1399, %v1567
    %1569 = vmatmul.bf16.gmra.mxu0 %v669
    %v1570 = vpop.f32.mrf.mxu0
    %v1571 = vadd.f32 %v1402, %v1570
    %v1572 = vpop.f32.mrf.mxu0
    %v1573 = vadd.f32 %v1404, %v1572
    %1574 = vmatmul.bf16.gmra.mxu0 %v670
    %v1575 = vpop.f32.mrf.mxu0
    %v1576 = vadd.f32 %v1407, %v1575
    %v1577 = vpop.f32.mrf.mxu0
    %v1578 = vadd.f32 %v1409, %v1577
    %1579 = vmatmul.bf16.gmra.mxu0 %v671
    %v1580 = vpop.f32.mrf.mxu0
    %v1581 = vadd.f32 %v1412, %v1580
    %v1582 = vpop.f32.mrf.mxu0
    %v1583 = vadd.f32 %v1414, %v1582
    %1584 = vmatmul.bf16.gmra.mxu0 %v672
    %v1585 = vpop.f32.mrf.mxu0
    %v1586 = vadd.f32 %v1417, %v1585
    %v1587 = vpop.f32.mrf.mxu0
    %v1588 = vadd.f32 %v1419, %v1587
    %1589 = vmatmul.bf16.gmra.mxu0 %v673
    %v1590 = vpop.f32.mrf.mxu0
    %v1591 = vadd.f32 %v1422, %v1590
    %v1592 = vpop.f32.mrf.mxu0
    %v1593 = vadd.f32 %v1424, %v1592
    %1594 = vmatmul.bf16.gmra.mxu0 %v674
    %v1595 = vpop.f32.mrf.mxu0
    %v1596 = vadd.f32 %v1427, %v1595
    %v1597 = vpop.f32.mrf.mxu0
    %v1598 = vadd.f32 %v1429, %v1597
    %1599 = vmatmul.bf16.gmra.mxu0 %v675
    %v1600 = vpop.f32.mrf.mxu0
    %v1601 = vadd.f32 %v1432, %v1600
    %v1602 = vpop.f32.mrf.mxu0
    %v1603 = vadd.f32 %v1434, %v1602
    %1604 = vmatmul.bf16.gmra.mxu0 %v676
    %v1605 = vpop.f32.mrf.mxu0
    %v1606 = vadd.f32 %v1437, %v1605
    %v1607 = vpop.f32.mrf.mxu0
    %v1608 = vadd.f32 %v1439, %v1607
    %1609 = vmatmul.bf16.gmra.mxu0 %v677
    %v1610 = vpop.f32.mrf.mxu0
    %v1611 = vadd.f32 %v1442, %v1610
    %v1612 = vpop.f32.mrf.mxu0
    %v1613 = vadd.f32 %v1444, %v1612
    %1614 = vmatmul.bf16.gmra.mxu0 %v678
    %v1615 = vpop.f32.mrf.mxu0
    %v1616 = vadd.f32 %v1447, %v1615
    %v1617 = vpop.f32.mrf.mxu0
    %v1618 = vadd.f32 %v1449, %v1617
    %1619 = vmatmul.bf16.gmra.mxu0 %v679
    %v1620 = vpop.f32.mrf.mxu0
    %v1621 = vadd.f32 %v1452, %v1620
    %v1622 = vpop.f32.mrf.mxu0
    %v1623 = vadd.f32 %v1454, %v1622
    %1624 = vmatmul.bf16.gmra.mxu0 %v680
    %v1625 = vpop.f32.mrf.mxu0
    %v1626 = vadd.f32 %v1457, %v1625
    %v1627 = vpop.f32.mrf.mxu0
    %v1628 = vadd.f32 %v1459, %v1627
    %1629 = vmatmul.bf16.gmra.mxu0 %v681
    %v1630 = vpop.f32.mrf.mxu0
    %v1631 = vadd.f32 %v1462, %v1630
    %v1632 = vpop.f32.mrf.mxu0
    %v1633 = vadd.f32 %v1464, %v1632
    %1634 = vmatmul.bf16.gmra.mxu0 %v682
    %v1635 = vpop.f32.mrf.mxu0
    %v1636 = vadd.f32 %v1467, %v1635
    %v1637 = vpop.f32.mrf.mxu0
    %v1638 = vadd.f32 %v1469, %v1637
    %1639 = vmatmul.bf16.gmra.mxu0 %v683
    %v1640 = vpop.f32.mrf.mxu0
    %v1641 = vadd.f32 %v1472, %v1640
    %v1642 = vpop.f32.mrf.mxu0
    %v1643 = vadd.f32 %v1474, %v1642
    %1644 = vmatmul.bf16.gmra.mxu0 %v684
    %v1645 = vpop.f32.mrf.mxu0
    %v1646 = vadd.f32 %v1477, %v1645
    %v1647 = vpop.f32.mrf.mxu0
    %v1648 = vadd.f32 %v1479, %v1647
    %1649 = vmatmul.bf16.gmra.mxu0 %v685
    %v1650 = vpop.f32.mrf.mxu0
    %v1651 = vadd.f32 %v1482, %v1650
    %v1652 = vpop.f32.mrf.mxu0
    %v1653 = vadd.f32 %v1484, %v1652
    %1654 = vmatmul.bf16.gmra.mxu0 %v686
    %v1655 = vpop.f32.mrf.mxu0
    %v1656 = vadd.f32 %v1487, %v1655
    %v1657 = vpop.f32.mrf.mxu0
    %v1658 = vadd.f32 %v1489, %v1657
    %1659 = vmatmul.bf16.gmra.mxu0 %v687
    %v1660 = vpop.f32.mrf.mxu0
    %v1661 = vadd.f32 %v1492, %v1660
    %v1662 = vpop.f32.mrf.mxu0
    %v1663 = vadd.f32 %v1494, %v1662
    %1664 = vmatmul.bf16.gmra.mxu0 %v688
    %v1665 = vpop.f32.mrf.mxu0
    %v1666 = vadd.f32 %v1497, %v1665
    %v1667 = vpop.f32.mrf.mxu0
    %v1668 = vadd.f32 %v1499, %v1667
    %1669 = vmatmul.bf16.gmra.mxu0 %v689
    %v1670 = vpop.f32.mrf.mxu0
    %v1671 = vadd.f32 %v1502, %v1670
    %v1672 = vpop.f32.mrf.mxu0
    %v1673 = vadd.f32 %v1504, %v1672
    %1674 = vdwg.mxu0
    %1675 = vmatpush.bf16.msra.mxu0 %v1312
    %1676 = vmatpush.bf16.msra.mxu0 %v1311
    %1677 = vmatpush.bf16.msra.mxu0 %v1310
    %1678 = vmatpush.bf16.msra.mxu0 %v1309
    %1679 = vmatpush.bf16.msra.mxu0 %v1308
    %1680 = vmatpush.bf16.msra.mxu0 %v1307
    %1681 = vmatpush.bf16.msra.mxu0 %v1306
    %1682 = vmatpush.bf16.msra.mxu0 %v1305
    %1683 = vmatmul.bf16.gmra.mxu0 %v1080
    %v1684 = vpop.f32.mrf.mxu0
    %v1685 = vadd.f32 %v1516, %v1684
    %v1686 = vpop.f32.mrf.mxu0
    %v1687 = vadd.f32 %v1518, %v1686
    %1688 = vmatmul.bf16.gmra.mxu0 %v1081
    %v1689 = vpop.f32.mrf.mxu0
    %v1690 = vadd.f32 %v1521, %v1689
    %v1691 = vpop.f32.mrf.mxu0
    %v1692 = vadd.f32 %v1523, %v1691
    %1693 = vmatmul.bf16.gmra.mxu0 %v1082
    %v1694 = vpop.f32.mrf.mxu0
    %v1695 = vadd.f32 %v1526, %v1694
    %v1696 = vpop.f32.mrf.mxu0
    %v1697 = vadd.f32 %v1528, %v1696
    %1698 = vmatmul.bf16.gmra.mxu0 %v1083
    %v1699 = vpop.f32.mrf.mxu0
    %v1700 = vadd.f32 %v1531, %v1699
    %v1701 = vpop.f32.mrf.mxu0
    %v1702 = vadd.f32 %v1533, %v1701
    %1703 = vmatmul.bf16.gmra.mxu0 %v1084
    %v1704 = vpop.f32.mrf.mxu0
    %v1705 = vadd.f32 %v1536, %v1704
    %v1706 = vpop.f32.mrf.mxu0
    %v1707 = vadd.f32 %v1538, %v1706
    %1708 = vmatmul.bf16.gmra.mxu0 %v1085
    %v1709 = vpop.f32.mrf.mxu0
    %v1710 = vadd.f32 %v1541, %v1709
    %v1711 = vpop.f32.mrf.mxu0
    %v1712 = vadd.f32 %v1543, %v1711
    %1713 = vmatmul.bf16.gmra.mxu0 %v1086
    %v1714 = vpop.f32.mrf.mxu0
    %v1715 = vadd.f32 %v1546, %v1714
    %v1716 = vpop.f32.mrf.mxu0
    %v1717 = vadd.f32 %v1548, %v1716
    %1718 = vmatmul.bf16.gmra.mxu0 %v1087
    %v1719 = vpop.f32.mrf.mxu0
    %v1720 = vadd.f32 %v1551, %v1719
    %v1721 = vpop.f32.mrf.mxu0
    %v1722 = vadd.f32 %v1553, %v1721
    %1723 = vmatmul.bf16.gmra.mxu0 %v1088
    %v1724 = vpop.f32.mrf.mxu0
    %v1725 = vadd.f32 %v1556, %v1724
    %v1726 = vpop.f32.mrf.mxu0
    %v1727 = vadd.f32 %v1558, %v1726
    %1728 = vmatmul.bf16.gmra.mxu0 %v1089
    %v1729 = vpop.f32.mrf.mxu0
    %v1730 = vadd.f32 %v1561, %v1729
    %v1731 = vpop.f32.mrf.mxu0
    %v1732 = vadd.f32 %v1563, %v1731
    %1733 = vmatmul.bf16.gmra.mxu0 %v1090
    %v1734 = vpop.f32.mrf.mxu0
    %v1735 = vadd.f32 %v1566, %v1734
    %v1736 = vpop.f32.mrf.mxu0
    %v1737 = vadd.f32 %v1568, %v1736
    %1738 = vmatmul.bf16.gmra.mxu0 %v1091
    %v1739 = vpop.f32.mrf.mxu0
    %v1740 = vadd.f32 %v1571, %v1739
    %v1741 = vpop.f32.mrf.mxu0
    %v1742 = vadd.f32 %v1573, %v1741
    %1743 = vmatmul.bf16.gmra.mxu0 %v1092
    %v1744 = vpop.f32.mrf.mxu0
    %v1745 = vadd.f32 %v1576, %v1744
    %v1746 = vpop.f32.mrf.mxu0
    %v1747 = vadd.f32 %v1578, %v1746
    %1748 = vmatmul.bf16.gmra.mxu0 %v1093
    %v1749 = vpop.f32.mrf.mxu0
    %v1750 = vadd.f32 %v1581, %v1749
    %v1751 = vpop.f32.mrf.mxu0
    %v1752 = vadd.f32 %v1583, %v1751
    %1753 = vmatmul.bf16.gmra.mxu0 %v1094
    %v1754 = vpop.f32.mrf.mxu0
    %v1755 = vadd.f32 %v1586, %v1754
    %v1756 = vpop.f32.mrf.mxu0
    %v1757 = vadd.f32 %v1588, %v1756
    %1758 = vmatmul.bf16.gmra.mxu0 %v1095
    %v1759 = vpop.f32.mrf.mxu0
    %v1760 = vadd.f32 %v1591, %v1759
    %v1761 = vpop.f32.mrf.mxu0
    %v1762 = vadd.f32 %v1593, %v1761
    %1763 = vmatmul.bf16.gmra.mxu0 %v1096
    %v1764 = vpop.f32.mrf.mxu0
    %v1765 = vadd.f32 %v1596, %v1764
    %v1766 = vpop.f32.mrf.mxu0
    %v1767 = vadd.f32 %v1598, %v1766
    %1768 = vmatmul.bf16.gmra.mxu0 %v1097
    %v1769 = vpop.f32.mrf.mxu0
    %v1770 = vadd.f32 %v1601, %v1769
    %v1771 = vpop.f32.mrf.mxu0
    %v1772 = vadd.f32 %v1603, %v1771
    %1773 = vmatmul.bf16.gmra.mxu0 %v1098
    %v1774 = vpop.f32.mrf.mxu0
    %v1775 = vadd.f32 %v1606, %v1774
    %v1776 = vpop.f32.mrf.mxu0
    %v1777 = vadd.f32 %v1608, %v1776
    %1778 = vmatmul.bf16.gmra.mxu0 %v1099
    %v1779 = vpop.f32.mrf.mxu0
    %v1780 = vadd.f32 %v1611, %v1779
    %v1781 = vpop.f32.mrf.mxu0
    %v1782 = vadd.f32 %v1613, %v1781
    %1783 = vmatmul.bf16.gmra.mxu0 %v1100
    %v1784 = vpop.f32.mrf.mxu0
    %v1785 = vadd.f32 %v1616, %v1784
    %v1786 = vpop.f32.mrf.mxu0
    %v1787 = vadd.f32 %v1618, %v1786
    %1788 = vmatmul.bf16.gmra.mxu0 %v1101
    %v1789 = vpop.f32.mrf.mxu0
    %v1790 = vadd.f32 %v1621, %v1789
    %v1791 = vpop.f32.mrf.mxu0
    %v1792 = vadd.f32 %v1623, %v1791
    %1793 = vmatmul.bf16.gmra.mxu0 %v1102
    %v1794 = vpop.f32.mrf.mxu0
    %v1795 = vadd.f32 %v1626, %v1794
    %v1796 = vpop.f32.mrf.mxu0
    %v1797 = vadd.f32 %v1628, %v1796
    %1798 = vmatmul.bf16.gmra.mxu0 %v1103
    %v1799 = vpop.f32.mrf.mxu0
    %v1800 = vadd.f32 %v1631, %v1799
    %v1801 = vpop.f32.mrf.mxu0
    %v1802 = vadd.f32 %v1633, %v1801
    %1803 = vmatmul.bf16.gmra.mxu0 %v1104
    %v1804 = vpop.f32.mrf.mxu0
    %v1805 = vadd.f32 %v1636, %v1804
    %v1806 = vpop.f32.mrf.mxu0
    %v1807 = vadd.f32 %v1638, %v1806
    %1808 = vmatmul.bf16.gmra.mxu0 %v1105
    %v1809 = vpop.f32.mrf.mxu0
    %v1810 = vadd.f32 %v1641, %v1809
    %v1811 = vpop.f32.mrf.mxu0
    %v1812 = vadd.f32 %v1643, %v1811
    %1813 = vmatmul.bf16.gmra.mxu0 %v1106
    %v1814 = vpop.f32.mrf.mxu0
    %v1815 = vadd.f32 %v1646, %v1814
    %v1816 = vpop.f32.mrf.mxu0
    %v1817 = vadd.f32 %v1648, %v1816
    %1818 = vmatmul.bf16.gmra.mxu0 %v1107
    %v1819 = vpop.f32.mrf.mxu0
    %v1820 = vadd.f32 %v1651, %v1819
    %v1821 = vpop.f32.mrf.mxu0
    %v1822 = vadd.f32 %v1653, %v1821
    %1823 = vmatmul.bf16.gmra.mxu0 %v1108
    %v1824 = vpop.f32.mrf.mxu0
    %v1825 = vadd.f32 %v1656, %v1824
    %v1826 = vpop.f32.mrf.mxu0
    %v1827 = vadd.f32 %v1658, %v1826
    %1828 = vmatmul.bf16.gmra.mxu0 %v1109
    %v1829 = vpop.f32.mrf.mxu0
    %v1830 = vadd.f32 %v1661, %v1829
    %v1831 = vpop.f32.mrf.mxu0
    %v1832 = vadd.f32 %v1663, %v1831
    %1833 = vmatmul.bf16.gmra.mxu0 %v1110
    %v1834 = vpop.f32.mrf.mxu0
    %v1835 = vadd.f32 %v1666, %v1834
    %v1836 = vpop.f32.mrf.mxu0
    %v1837 = vadd.f32 %v1668, %v1836
    %1838 = vmatmul.bf16.gmra.mxu0 %v1111
    %v1839 = vpop.f32.mrf.mxu0
    %v1840 = vadd.f32 %v1671, %v1839
    %v1841 = vpop.f32.mrf.mxu0
    %v1842 = vadd.f32 %v1673, %v1841
    %1843 = vdwg.mxu0
    %1844 = vst [vmem:[#allocation2] sm:$0xff] %v1685
    %1845 = vst [vmem:[#allocation2 + $0x8] sm:$0xff] %v1687
    %1846 = vst [vmem:[#allocation2 + $0x10] sm:$0xff] %v1690
    %1847 = vst [vmem:[#allocation2 + $0x18] sm:$0xff] %v1692
    %1848 = vst [vmem:[#allocation2 + $0x20] sm:$0xff] %v1695
    %1849 = vst [vmem:[#allocation2 + $0x28] sm:$0xff] %v1697
    %1850 = vst [vmem:[#allocation2 + $0x30] sm:$0xff] %v1700
    %1851 = vst [vmem:[#allocation2 + $0x38] sm:$0xff] %v1702
    %1852 = vst [vmem:[#allocation2 + $0x40] sm:$0xff] %v1705
    %1853 = vst [vmem:[#allocation2 + $0x48] sm:$0xff] %v1707
    %1854 = vst [vmem:[#allocation2 + $0x50] sm:$0xff] %v1710
    %1855 = vst [vmem:[#allocation2 + $0x58] sm:$0xff] %v1712
    %1856 = vst [vmem:[#allocation2 + $0x60] sm:$0xff] %v1715
    %1857 = vst [vmem:[#allocation2 + $0x68] sm:$0xff] %v1717
    %1858 = vst [vmem:[#allocation2 + $0x70] sm:$0xff] %v1720
    %1859 = vst [vmem:[#allocation2 + $0x78] sm:$0xff] %v1722
    %1860 = vst [vmem:[#allocation2 + $0x80] sm:$0xff] %v1725
    %1861 = vst [vmem:[#allocation2 + $0x88] sm:$0xff] %v1727
    %1862 = vst [vmem:[#allocation2 + $0x90] sm:$0xff] %v1730
    %1863 = vst [vmem:[#allocation2 + $0x98] sm:$0xff] %v1732
    %1864 = vst [vmem:[#allocation2 + $0xa0] sm:$0xff] %v1735
    %1865 = vst [vmem:[#allocation2 + $0xa8] sm:$0xff] %v1737
    %1866 = vst [vmem:[#allocation2 + $0xb0] sm:$0xff] %v1740
    %1867 = vst [vmem:[#allocation2 + $0xb8] sm:$0xff] %v1742
    %1868 = vst [vmem:[#allocation2 + $0xc0] sm:$0xff] %v1745
    %1869 = vst [vmem:[#allocation2 + $0xc8] sm:$0xff] %v1747
    %1870 = vst [vmem:[#allocation2 + $0xd0] sm:$0xff] %v1750
    %1871 = vst [vmem:[#allocation2 + $0xd8] sm:$0xff] %v1752
    %1872 = vst [vmem:[#allocation2 + $0xe0] sm:$0xff] %v1755
    %1873 = vst [vmem:[#allocation2 + $0xe8] sm:$0xff] %v1757
    %1874 = vst [vmem:[#allocation2 + $0xf0] sm:$0xff] %v1760
    %1875 = vst [vmem:[#allocation2 + $0xf8] sm:$0xff] %v1762
    %1876 = vst [vmem:[#allocation2 + $0x100] sm:$0xff] %v1765
    %1877 = vst [vmem:[#allocation2 + $0x108] sm:$0xff] %v1767
    %1878 = vst [vmem:[#allocation2 + $0x110] sm:$0xff] %v1770
    %1879 = vst [vmem:[#allocation2 + $0x118] sm:$0xff] %v1772
    %1880 = vst [vmem:[#allocation2 + $0x120] sm:$0xff] %v1775
    %1881 = vst [vmem:[#allocation2 + $0x128] sm:$0xff] %v1777
    %1882 = vst [vmem:[#allocation2 + $0x130] sm:$0xff] %v1780
    %1883 = vst [vmem:[#allocation2 + $0x138] sm:$0xff] %v1782
    %1884 = vst [vmem:[#allocation2 + $0x140] sm:$0xff] %v1785
    %1885 = vst [vmem:[#allocation2 + $0x148] sm:$0xff] %v1787
    %1886 = vst [vmem:[#allocation2 + $0x150] sm:$0xff] %v1790
    %1887 = vst [vmem:[#allocation2 + $0x158] sm:$0xff] %v1792
    %1888 = vst [vmem:[#allocation2 + $0x160] sm:$0xff] %v1795
    %1889 = vst [vmem:[#allocation2 + $0x168] sm:$0xff] %v1797
    %1890 = vst [vmem:[#allocation2 + $0x170] sm:$0xff] %v1800
    %1891 = vst [vmem:[#allocation2 + $0x178] sm:$0xff] %v1802
    %1892 = vst [vmem:[#allocation2 + $0x180] sm:$0xff] %v1805
    %1893 = vst [vmem:[#allocation2 + $0x188] sm:$0xff] %v1807
    %1894 = vst [vmem:[#allocation2 + $0x190] sm:$0xff] %v1810
    %1895 = vst [vmem:[#allocation2 + $0x198] sm:$0xff] %v1812
    %1896 = vst [vmem:[#allocation2 + $0x1a0] sm:$0xff] %v1815
    %1897 = vst [vmem:[#allocation2 + $0x1a8] sm:$0xff] %v1817
    %1898 = vst [vmem:[#allocation2 + $0x1b0] sm:$0xff] %v1820
    %1899 = vst [vmem:[#allocation2 + $0x1b8] sm:$0xff] %v1822
    %1900 = vst [vmem:[#allocation2 + $0x1c0] sm:$0xff] %v1825
    %1901 = vst [vmem:[#allocation2 + $0x1c8] sm:$0xff] %v1827
    %1902 = vst [vmem:[#allocation2 + $0x1d0] sm:$0xff] %v1830
    %1903 = vst [vmem:[#allocation2 + $0x1d8] sm:$0xff] %v1832
    %1904 = vst [vmem:[#allocation2 + $0x1e0] sm:$0xff] %v1835
    %1905 = vst [vmem:[#allocation2 + $0x1e8] sm:$0xff] %v1837
    %1906 = vst [vmem:[#allocation2 + $0x1f0] sm:$0xff] %v1840
    %1907 = vst [vmem:[#allocation2 + $0x1f8] sm:$0xff] %v1842
    %v1908 = vld [vmem:[#allocation2 + $0x10] sm:$0xff]
    %v1909 = vld [vmem:[#allocation2 + $0x18] sm:$0xff]
    %v1910 = vld [vmem:[#allocation2 + $0x20] sm:$0xff]
    %v1911 = vld [vmem:[#allocation2 + $0x28] sm:$0xff]
    %v1912 = vld [vmem:[#allocation2 + $0x30] sm:$0xff]
    %v1913 = vld [vmem:[#allocation2 + $0x38] sm:$0xff]
    %v1914 = vld [vmem:[#allocation2 + $0x40] sm:$0xff]
    %v1915 = vld [vmem:[#allocation2 + $0x48] sm:$0xff]
    %v1916 = vld [vmem:[#allocation2 + $0x50] sm:$0xff]
    %v1917 = vld [vmem:[#allocation2 + $0x58] sm:$0xff]
    %v1918 = vld [vmem:[#allocation2 + $0x60] sm:$0xff]
    %v1919 = vld [vmem:[#allocation2 + $0x68] sm:$0xff]
    %v1920 = vld [vmem:[#allocation2 + $0x70] sm:$0xff]
    %v1921 = vld [vmem:[#allocation2 + $0x78] sm:$0xff]
    %v1922 = vld [vmem:[#allocation2 + $0x80] sm:$0xff]
    %v1923 = vld [vmem:[#allocation2 + $0x88] sm:$0xff]
    %v1924 = vld [vmem:[#allocation2 + $0x90] sm:$0xff]
    %v1925 = vld [vmem:[#allocation2 + $0x98] sm:$0xff]
    %v1926 = vld [vmem:[#allocation2 + $0xa0] sm:$0xff]
    %v1927 = vld [vmem:[#allocation2 + $0xa8] sm:$0xff]
    %v1928 = vld [vmem:[#allocation2 + $0xb0] sm:$0xff]
    %v1929 = vld [vmem:[#allocation2 + $0xb8] sm:$0xff]
    %v1930 = vld [vmem:[#allocation2 + $0xc0] sm:$0xff]
    %v1931 = vld [vmem:[#allocation2 + $0xc8] sm:$0xff]
    %v1932 = vld [vmem:[#allocation2 + $0xd0] sm:$0xff]
    %v1933 = vld [vmem:[#allocation2 + $0xd8] sm:$0xff]
    %v1934 = vld [vmem:[#allocation2 + $0xe0] sm:$0xff]
    %v1935 = vld [vmem:[#allocation2 + $0xe8] sm:$0xff]
    %v1936 = vld [vmem:[#allocation2 + $0xf0] sm:$0xff]
    %v1937 = vld [vmem:[#allocation2 + $0xf8] sm:$0xff]
    %v1938 = vld [vmem:[%s3] sm:$0xf]
    %v1939 = vld [vmem:[%s3 + $0x4] sm:$0xf]
    %v1940 = vld [vmem:[%s3 + $0x8] sm:$0xf]
    %v1941 = vld [vmem:[%s3 + $0xc] sm:$0xf]
    %v1942 = vld [vmem:[%s3 + $0x10] sm:$0xf]
    %v1943 = vld [vmem:[%s3 + $0x14] sm:$0xf]
    %v1944 = vld [vmem:[%s3 + $0x18] sm:$0xf]
    %v1945 = vld [vmem:[%s3 + $0x1c] sm:$0xf]
    %v1946 = vld [vmem:[%s3 + $0x20] sm:$0xf]
    %v1947 = vld [vmem:[%s3 + $0x24] sm:$0xf]
    %v1948 = vld [vmem:[%s3 + $0x28] sm:$0xf]
    %v1949 = vld [vmem:[%s3 + $0x2c] sm:$0xf]
    %v1950 = vld [vmem:[%s3 + $0x30] sm:$0xf]
    %v1951 = vld [vmem:[%s3 + $0x34] sm:$0xf]
    %v1952 = vld [vmem:[%s3 + $0x38] sm:$0xf]
    %v1953 = vld [vmem:[%s3 + $0x3c] sm:$0xf]
    %v1954 = vld [vmem:[%s3 + $0x40] sm:$0xf]
    %v1955 = vld [vmem:[%s3 + $0x44] sm:$0xf]
    %v1956 = vld [vmem:[%s3 + $0x48] sm:$0xf]
    %v1957 = vld [vmem:[%s3 + $0x4c] sm:$0xf]
    %v1958 = vld [vmem:[%s3 + $0x50] sm:$0xf]
    %v1959 = vld [vmem:[%s3 + $0x54] sm:$0xf]
    %v1960 = vld [vmem:[%s3 + $0x58] sm:$0xf]
    %v1961 = vld [vmem:[%s3 + $0x5c] sm:$0xf]
    %v1962 = vld [vmem:[%s3 + $0x60] sm:$0xf]
    %v1963 = vld [vmem:[%s3 + $0x64] sm:$0xf]
    %v1964 = vld [vmem:[%s3 + $0x68] sm:$0xf]
    %v1965 = vld [vmem:[%s3 + $0x6c] sm:$0xf]
    %v1966 = vld [vmem:[%s3 + $0x70] sm:$0xf]
    %v1967 = vld [vmem:[%s3 + $0x74] sm:$0xf]
    %v1968 = vld [vmem:[%s3 + $0x78] sm:$0xf]
    %v1969 = vld [vmem:[%s3 + $0x7c] sm:$0xf]
    %v1970 = vld [vmem:[%s3 + $0x80] sm:$0xf]
    %v1971 = vld [vmem:[%s3 + $0x84] sm:$0xf]
    %v1972 = vld [vmem:[%s3 + $0x88] sm:$0xf]
    %v1973 = vld [vmem:[%s3 + $0x8c] sm:$0xf]
    %v1974 = vld [vmem:[%s3 + $0x90] sm:$0xf]
    %v1975 = vld [vmem:[%s3 + $0x94] sm:$0xf]
    %v1976 = vld [vmem:[%s3 + $0x98] sm:$0xf]
    %v1977 = vld [vmem:[%s3 + $0x9c] sm:$0xf]
    %v1978 = vld [vmem:[%s3 + $0xa0] sm:$0xf]
    %v1979 = vld [vmem:[%s3 + $0xa4] sm:$0xf]
    %v1980 = vld [vmem:[%s3 + $0xa8] sm:$0xf]
    %v1981 = vld [vmem:[%s3 + $0xac] sm:$0xf]
    %v1982 = vld [vmem:[%s3 + $0xb0] sm:$0xf]
    %v1983 = vld [vmem:[%s3 + $0xb4] sm:$0xf]
    %v1984 = vld [vmem:[%s3 + $0xb8] sm:$0xf]
    %v1985 = vld [vmem:[%s3 + $0xbc] sm:$0xf]
    %v2034 = vunpack.c.l.b16 %v1938
    %v2035 = vunpack.c.l.b16 %v1939
    %v2036 = vunpack.c.l.b16 %v1940
    %v2037 = vunpack.c.l.b16 %v1941
    %v2038 = vunpack.c.l.b16 %v1942
    %v2039 = vunpack.c.l.b16 %v1943
    %v2040 = vunpack.c.l.b16 %v1944
    %v2041 = vunpack.c.l.b16 %v1945
    %v2042 = vunpack.c.l.b16 %v1946
    %v2043 = vunpack.c.l.b16 %v1947
    %v2044 = vunpack.c.l.b16 %v1948
    %v2045 = vunpack.c.l.b16 %v1949
    %v2046 = vunpack.c.l.b16 %v1950
    %v2047 = vunpack.c.l.b16 %v1951
    %v2048 = vunpack.c.l.b16 %v1952
    %v2049 = vunpack.c.l.b16 %v1953
    %v2050 = vunpack.c.l.b16 %v1954
    %v2051 = vunpack.c.l.b16 %v1955
    %v2052 = vunpack.c.l.b16 %v1956
    %v2053 = vunpack.c.l.b16 %v1957
    %v2054 = vunpack.c.l.b16 %v1958
    %v2055 = vunpack.c.l.b16 %v1959
    %v2056 = vunpack.c.l.b16 %v1960
    %v2057 = vunpack.c.l.b16 %v1961
    %v2058 = vunpack.c.l.b16 %v1962
    %v2059 = vunpack.c.l.b16 %v1963
    %v2060 = vunpack.c.l.b16 %v1964
    %v2061 = vunpack.c.l.b16 %v1965
    %v2062 = vunpack.c.l.b16 %v1966
    %v2063 = vunpack.c.l.b16 %v1967
    %v2064 = vunpack.c.l.b16 %v1968
    %v2065 = vunpack.c.l.b16 %v1969
    %v2066 = vunpack.c.l.b16 %v1970
    %v2067 = vunpack.c.l.b16 %v1971
    %v2068 = vunpack.c.l.b16 %v1972
    %v2069 = vunpack.c.l.b16 %v1973
    %v2070 = vunpack.c.l.b16 %v1974
    %v2071 = vunpack.c.l.b16 %v1975
    %v2072 = vunpack.c.l.b16 %v1976
    %v2073 = vunpack.c.l.b16 %v1977
    %v2074 = vunpack.c.l.b16 %v1978
    %v2075 = vunpack.c.l.b16 %v1979
    %v2076 = vunpack.c.l.b16 %v1980
    %v2077 = vunpack.c.l.b16 %v1981
    %v2078 = vunpack.c.l.b16 %v1982
    %v2079 = vunpack.c.l.b16 %v1983
    %v2080 = vunpack.c.l.b16 %v1984
    %v2081 = vunpack.c.l.b16 %v1985
    %v2082 = vpack.c.b16 %v2035, %v2034
    %v2083 = vpack.c.b16 %v2037, %v2036
    %v2084 = vpack.c.b16 %v2039, %v2038
    %v2085 = vpack.c.b16 %v2041, %v2040
    %v2086 = vpack.c.b16 %v2043, %v2042
    %v2087 = vpack.c.b16 %v2045, %v2044
    %v2088 = vpack.c.b16 %v2047, %v2046
    %v2089 = vpack.c.b16 %v2049, %v2048
    %v2090 = vpack.c.b16 %v2051, %v2050
    %v2091 = vpack.c.b16 %v2053, %v2052
    %v2092 = vpack.c.b16 %v2055, %v2054
    %v2093 = vpack.c.b16 %v2057, %v2056
    %v2094 = vpack.c.b16 %v2059, %v2058
    %v2095 = vpack.c.b16 %v2061, %v2060
    %v2096 = vpack.c.b16 %v2063, %v2062
    %v2097 = vpack.c.b16 %v2065, %v2064
    %v2098 = vpack.c.b16 %v2067, %v2066
    %v2099 = vpack.c.b16 %v2069, %v2068
    %v2100 = vpack.c.b16 %v2071, %v2070
    %v2101 = vpack.c.b16 %v2073, %v2072
    %v2102 = vpack.c.b16 %v2075, %v2074
    %v2103 = vpack.c.b16 %v2077, %v2076
    %v2104 = vpack.c.b16 %v2079, %v2078
    %v2105 = vpack.c.b16 %v2081, %v2080
    %2130 = vmatpush.bf16.msra.mxu0 %v2089
    %2131 = vmatpush.bf16.msra.mxu0 %v2088
    %2132 = vmatpush.bf16.msra.mxu0 %v2087
    %2133 = vmatpush.bf16.msra.mxu0 %v2086
    %2134 = vmatpush.bf16.msra.mxu0 %v2085
    %2135 = vmatpush.bf16.msra.mxu0 %v2084
    %2136 = vmatpush.bf16.msra.mxu0 %v2083
    %2137 = vmatpush.bf16.msra.mxu0 %v2082
    %2138 = vmatmul.bf16.gmra.mxu0 %v949
    %v2139 = vpop.f32.mrf.mxu0
    %v2140 = vadd.f32 0.0, %v2139
    %v2141 = vpop.f32.mrf.mxu0
    %v2142 = vadd.f32 0.0, %v2141
    %2143 = vmatmul.bf16.gmra.mxu0 %v950
    %v2144 = vpop.f32.mrf.mxu0
    %v2145 = vadd.f32 0.0, %v2144
    %v2146 = vpop.f32.mrf.mxu0
    %v2147 = vadd.f32 0.0, %v2146
    %2148 = vmatmul.bf16.gmra.mxu0 %v951
    %v2149 = vpop.f32.mrf.mxu0
    %v2150 = vadd.f32 0.0, %v2149
    %v2151 = vpop.f32.mrf.mxu0
    %v2152 = vadd.f32 0.0, %v2151
    %2153 = vmatmul.bf16.gmra.mxu0 %v952
    %v2154 = vpop.f32.mrf.mxu0
    %v2155 = vadd.f32 0.0, %v2154
    %v2156 = vpop.f32.mrf.mxu0
    %v2157 = vadd.f32 0.0, %v2156
    %2158 = vmatmul.bf16.gmra.mxu0 %v953
    %v2159 = vpop.f32.mrf.mxu0
    %v2160 = vadd.f32 0.0, %v2159
    %v2161 = vpop.f32.mrf.mxu0
    %v2162 = vadd.f32 0.0, %v2161
    %2163 = vmatmul.bf16.gmra.mxu0 %v954
    %v2164 = vpop.f32.mrf.mxu0
    %v2165 = vadd.f32 0.0, %v2164
    %v2166 = vpop.f32.mrf.mxu0
    %v2167 = vadd.f32 0.0, %v2166
    %2168 = vmatmul.bf16.gmra.mxu0 %v955
    %v2169 = vpop.f32.mrf.mxu0
    %v2170 = vadd.f32 0.0, %v2169
    %v2171 = vpop.f32.mrf.mxu0
    %v2172 = vadd.f32 0.0, %v2171
    %2173 = vmatmul.bf16.gmra.mxu0 %v956
    %v2174 = vpop.f32.mrf.mxu0
    %v2175 = vadd.f32 0.0, %v2174
    %v2176 = vpop.f32.mrf.mxu0
    %v2177 = vadd.f32 0.0, %v2176
    %2178 = vmatmul.bf16.gmra.mxu0 %v957
    %v2179 = vpop.f32.mrf.mxu0
    %v2180 = vadd.f32 0.0, %v2179
    %v2181 = vpop.f32.mrf.mxu0
    %v2182 = vadd.f32 0.0, %v2181
    %2183 = vmatmul.bf16.gmra.mxu0 %v958
    %v2184 = vpop.f32.mrf.mxu0
    %v2185 = vadd.f32 0.0, %v2184
    %v2186 = vpop.f32.mrf.mxu0
    %v2187 = vadd.f32 0.0, %v2186
    %2188 = vmatmul.bf16.gmra.mxu0 %v959
    %v2189 = vpop.f32.mrf.mxu0
    %v2190 = vadd.f32 0.0, %v2189
    %v2191 = vpop.f32.mrf.mxu0
    %v2192 = vadd.f32 0.0, %v2191
    %2193 = vmatmul.bf16.gmra.mxu0 %v960
    %v2194 = vpop.f32.mrf.mxu0
    %v2195 = vadd.f32 0.0, %v2194
    %v2196 = vpop.f32.mrf.mxu0
    %v2197 = vadd.f32 0.0, %v2196
    %2198 = vmatmul.bf16.gmra.mxu0 %v961
    %v2199 = vpop.f32.mrf.mxu0
    %v2200 = vadd.f32 0.0, %v2199
    %v2201 = vpop.f32.mrf.mxu0
    %v2202 = vadd.f32 0.0, %v2201
    %2203 = vmatmul.bf16.gmra.mxu0 %v962
    %v2204 = vpop.f32.mrf.mxu0
    %v2205 = vadd.f32 0.0, %v2204
    %v2206 = vpop.f32.mrf.mxu0
    %v2207 = vadd.f32 0.0, %v2206
    %2208 = vmatmul.bf16.gmra.mxu0 %v963
    %v2209 = vpop.f32.mrf.mxu0
    %v2210 = vadd.f32 0.0, %v2209
    %v2211 = vpop.f32.mrf.mxu0
    %v2212 = vadd.f32 0.0, %v2211
    %2213 = vdwg.mxu0
    %2214 = vmatpush.bf16.msra.mxu0 %v2097
    %2215 = vmatpush.bf16.msra.mxu0 %v2096
    %2216 = vmatpush.bf16.msra.mxu0 %v2095
    %2217 = vmatpush.bf16.msra.mxu0 %v2094
    %2218 = vmatpush.bf16.msra.mxu0 %v2093
    %2219 = vmatpush.bf16.msra.mxu0 %v2092
    %2220 = vmatpush.bf16.msra.mxu0 %v2091
    %2221 = vmatpush.bf16.msra.mxu0 %v2090
    %2222 = vmatmul.bf16.gmra.mxu0 %v658
    %v2223 = vpop.f32.mrf.mxu0
    %v2224 = vadd.f32 %v2140, %v2223
    %v2225 = vpop.f32.mrf.mxu0
    %v2226 = vadd.f32 %v2142, %v2225
    %2227 = vmatmul.bf16.gmra.mxu0 %v659
    %v2228 = vpop.f32.mrf.mxu0
    %v2229 = vadd.f32 %v2145, %v2228
    %v2230 = vpop.f32.mrf.mxu0
    %v2231 = vadd.f32 %v2147, %v2230
    %2232 = vmatmul.bf16.gmra.mxu0 %v660
    %v2233 = vpop.f32.mrf.mxu0
    %v2234 = vadd.f32 %v2150, %v2233
    %v2235 = vpop.f32.mrf.mxu0
    %v2236 = vadd.f32 %v2152, %v2235
    %2237 = vmatmul.bf16.gmra.mxu0 %v661
    %v2238 = vpop.f32.mrf.mxu0
    %v2239 = vadd.f32 %v2155, %v2238
    %v2240 = vpop.f32.mrf.mxu0
    %v2241 = vadd.f32 %v2157, %v2240
    %2242 = vmatmul.bf16.gmra.mxu0 %v662
    %v2243 = vpop.f32.mrf.mxu0
    %v2244 = vadd.f32 %v2160, %v2243
    %v2245 = vpop.f32.mrf.mxu0
    %v2246 = vadd.f32 %v2162, %v2245
    %2247 = vmatmul.bf16.gmra.mxu0 %v663
    %v2248 = vpop.f32.mrf.mxu0
    %v2249 = vadd.f32 %v2165, %v2248
    %v2250 = vpop.f32.mrf.mxu0
    %v2251 = vadd.f32 %v2167, %v2250
    %2252 = vmatmul.bf16.gmra.mxu0 %v664
    %v2253 = vpop.f32.mrf.mxu0
    %v2254 = vadd.f32 %v2170, %v2253
    %v2255 = vpop.f32.mrf.mxu0
    %v2256 = vadd.f32 %v2172, %v2255
    %2257 = vmatmul.bf16.gmra.mxu0 %v665
    %v2258 = vpop.f32.mrf.mxu0
    %v2259 = vadd.f32 %v2175, %v2258
    %v2260 = vpop.f32.mrf.mxu0
    %v2261 = vadd.f32 %v2177, %v2260
    %2262 = vmatmul.bf16.gmra.mxu0 %v666
    %v2263 = vpop.f32.mrf.mxu0
    %v2264 = vadd.f32 %v2180, %v2263
    %v2265 = vpop.f32.mrf.mxu0
    %v2266 = vadd.f32 %v2182, %v2265
    %2267 = vmatmul.bf16.gmra.mxu0 %v667
    %v2268 = vpop.f32.mrf.mxu0
    %v2269 = vadd.f32 %v2185, %v2268
    %v2270 = vpop.f32.mrf.mxu0
    %v2271 = vadd.f32 %v2187, %v2270
    %2272 = vmatmul.bf16.gmra.mxu0 %v668
    %v2273 = vpop.f32.mrf.mxu0
    %v2274 = vadd.f32 %v2190, %v2273
    %v2275 = vpop.f32.mrf.mxu0
    %v2276 = vadd.f32 %v2192, %v2275
    %2277 = vmatmul.bf16.gmra.mxu0 %v669
    %v2278 = vpop.f32.mrf.mxu0
    %v2279 = vadd.f32 %v2195, %v2278
    %v2280 = vpop.f32.mrf.mxu0
    %v2281 = vadd.f32 %v2197, %v2280
    %2282 = vmatmul.bf16.gmra.mxu0 %v670
    %v2283 = vpop.f32.mrf.mxu0
    %v2284 = vadd.f32 %v2200, %v2283
    %v2285 = vpop.f32.mrf.mxu0
    %v2286 = vadd.f32 %v2202, %v2285
    %2287 = vmatmul.bf16.gmra.mxu0 %v671
    %v2288 = vpop.f32.mrf.mxu0
    %v2289 = vadd.f32 %v2205, %v2288
    %v2290 = vpop.f32.mrf.mxu0
    %v2291 = vadd.f32 %v2207, %v2290
    %2292 = vmatmul.bf16.gmra.mxu0 %v672
    %v2293 = vpop.f32.mrf.mxu0
    %v2294 = vadd.f32 %v2210, %v2293
    %v2295 = vpop.f32.mrf.mxu0
    %v2296 = vadd.f32 %v2212, %v2295
    %2297 = vdwg.mxu0
    %2298 = vmatpush.bf16.msra.mxu0 %v2105
    %2299 = vmatpush.bf16.msra.mxu0 %v2104
    %2300 = vmatpush.bf16.msra.mxu0 %v2103
    %2301 = vmatpush.bf16.msra.mxu0 %v2102
    %2302 = vmatpush.bf16.msra.mxu0 %v2101
    %2303 = vmatpush.bf16.msra.mxu0 %v2100
    %2304 = vmatpush.bf16.msra.mxu0 %v2099
    %2305 = vmatpush.bf16.msra.mxu0 %v2098
    %2306 = vmatmul.bf16.gmra.mxu0 %v1080
    %v2307 = vpop.f32.mrf.mxu0
    %v2308 = vadd.f32 %v2224, %v2307
    %v2309 = vpop.f32.mrf.mxu0
    %v2310 = vadd.f32 %v2226, %v2309
    %2311 = vmatmul.bf16.gmra.mxu0 %v1081
    %v2312 = vpop.f32.mrf.mxu0
    %v2313 = vadd.f32 %v2229, %v2312
    %v2314 = vpop.f32.mrf.mxu0
    %v2315 = vadd.f32 %v2231, %v2314
    %2316 = vmatmul.bf16.gmra.mxu0 %v1082
    %v2317 = vpop.f32.mrf.mxu0
    %v2318 = vadd.f32 %v2234, %v2317
    %v2319 = vpop.f32.mrf.mxu0
    %v2320 = vadd.f32 %v2236, %v2319
    %2321 = vmatmul.bf16.gmra.mxu0 %v1083
    %v2322 = vpop.f32.mrf.mxu0
    %v2323 = vadd.f32 %v2239, %v2322
    %v2324 = vpop.f32.mrf.mxu0
    %v2325 = vadd.f32 %v2241, %v2324
    %2326 = vmatmul.bf16.gmra.mxu0 %v1084
    %v2327 = vpop.f32.mrf.mxu0
    %v2328 = vadd.f32 %v2244, %v2327
    %v2329 = vpop.f32.mrf.mxu0
    %v2330 = vadd.f32 %v2246, %v2329
    %2331 = vmatmul.bf16.gmra.mxu0 %v1085
    %v2332 = vpop.f32.mrf.mxu0
    %v2333 = vadd.f32 %v2249, %v2332
    %v2334 = vpop.f32.mrf.mxu0
    %v2335 = vadd.f32 %v2251, %v2334
    %2336 = vmatmul.bf16.gmra.mxu0 %v1086
    %v2337 = vpop.f32.mrf.mxu0
    %v2338 = vadd.f32 %v2254, %v2337
    %v2339 = vpop.f32.mrf.mxu0
    %v2340 = vadd.f32 %v2256, %v2339
    %2341 = vmatmul.bf16.gmra.mxu0 %v1087
    %v2342 = vpop.f32.mrf.mxu0
    %v2343 = vadd.f32 %v2259, %v2342
    %v2344 = vpop.f32.mrf.mxu0
    %v2345 = vadd.f32 %v2261, %v2344
    %2346 = vmatmul.bf16.gmra.mxu0 %v1088
    %v2347 = vpop.f32.mrf.mxu0
    %v2348 = vadd.f32 %v2264, %v2347
    %v2349 = vpop.f32.mrf.mxu0
    %v2350 = vadd.f32 %v2266, %v2349
    %2351 = vmatmul.bf16.gmra.mxu0 %v1089
    %v2352 = vpop.f32.mrf.mxu0
    %v2353 = vadd.f32 %v2269, %v2352
    %v2354 = vpop.f32.mrf.mxu0
    %v2355 = vadd.f32 %v2271, %v2354
    %2356 = vmatmul.bf16.gmra.mxu0 %v1090
    %v2357 = vpop.f32.mrf.mxu0
    %v2358 = vadd.f32 %v2274, %v2357
    %v2359 = vpop.f32.mrf.mxu0
    %v2360 = vadd.f32 %v2276, %v2359
    %2361 = vmatmul.bf16.gmra.mxu0 %v1091
    %v2362 = vpop.f32.mrf.mxu0
    %v2363 = vadd.f32 %v2279, %v2362
    %v2364 = vpop.f32.mrf.mxu0
    %v2365 = vadd.f32 %v2281, %v2364
    %2366 = vmatmul.bf16.gmra.mxu0 %v1092
    %v2367 = vpop.f32.mrf.mxu0
    %v2368 = vadd.f32 %v2284, %v2367
    %v2369 = vpop.f32.mrf.mxu0
    %v2370 = vadd.f32 %v2286, %v2369
    %2371 = vmatmul.bf16.gmra.mxu0 %v1093
    %v2372 = vpop.f32.mrf.mxu0
    %v2373 = vadd.f32 %v2289, %v2372
    %v2374 = vpop.f32.mrf.mxu0
    %v2375 = vadd.f32 %v2291, %v2374
    %2376 = vmatmul.bf16.gmra.mxu0 %v1094
    %v2377 = vpop.f32.mrf.mxu0
    %v2378 = vadd.f32 %v2294, %v2377
    %v2379 = vpop.f32.mrf.mxu0
    %v2380 = vadd.f32 %v2296, %v2379
    %2381 = vdwg.mxu0
    %v2382 = vadd.f32 %v1908, %v2308
    %v2383 = vadd.f32 %v1909, %v2310
    %v2384 = vadd.f32 %v1910, %v2313
    %v2385 = vadd.f32 %v1911, %v2315
    %v2386 = vadd.f32 %v1912, %v2318
    %v2387 = vadd.f32 %v1913, %v2320
    %v2388 = vadd.f32 %v1914, %v2323
    %v2389 = vadd.f32 %v1915, %v2325
    %v2390 = vadd.f32 %v1916, %v2328
    %v2391 = vadd.f32 %v1917, %v2330
    %v2392 = vadd.f32 %v1918, %v2333
    %v2393 = vadd.f32 %v1919, %v2335
    %v2394 = vadd.f32 %v1920, %v2338
    %v2395 = vadd.f32 %v1921, %v2340
    %v2396 = vadd.f32 %v1922, %v2343
    %v2397 = vadd.f32 %v1923, %v2345
    %v2398 = vadd.f32 %v1924, %v2348
    %v2399 = vadd.f32 %v1925, %v2350
    %v2400 = vadd.f32 %v1926, %v2353
    %v2401 = vadd.f32 %v1927, %v2355
    %v2402 = vadd.f32 %v1928, %v2358
    %v2403 = vadd.f32 %v1929, %v2360
    %v2404 = vadd.f32 %v1930, %v2363
    %v2405 = vadd.f32 %v1931, %v2365
    %v2406 = vadd.f32 %v1932, %v2368
    %v2407 = vadd.f32 %v1933, %v2370
    %v2408 = vadd.f32 %v1934, %v2373
    %v2409 = vadd.f32 %v1935, %v2375
    %v2410 = vadd.f32 %v1936, %v2378
    %v2411 = vadd.f32 %v1937, %v2380
    %2412 = vst [vmem:[#allocation2 + $0x10] sm:$0xff] %v2382
    %2413 = vst [vmem:[#allocation2 + $0x18] sm:$0xff] %v2383
    %2414 = vst [vmem:[#allocation2 + $0x20] sm:$0xff] %v2384
    %2415 = vst [vmem:[#allocation2 + $0x28] sm:$0xff] %v2385
    %2416 = vst [vmem:[#allocation2 + $0x30] sm:$0xff] %v2386
    %2417 = vst [vmem:[#allocation2 + $0x38] sm:$0xff] %v2387
    %2418 = vst [vmem:[#allocation2 + $0x40] sm:$0xff] %v2388
    %2419 = vst [vmem:[#allocation2 + $0x48] sm:$0xff] %v2389
    %2420 = vst [vmem:[#allocation2 + $0x50] sm:$0xff] %v2390
    %2421 = vst [vmem:[#allocation2 + $0x58] sm:$0xff] %v2391
    %2422 = vst [vmem:[#allocation2 + $0x60] sm:$0xff] %v2392
    %2423 = vst [vmem:[#allocation2 + $0x68] sm:$0xff] %v2393
    %2424 = vst [vmem:[#allocation2 + $0x70] sm:$0xff] %v2394
    %2425 = vst [vmem:[#allocation2 + $0x78] sm:$0xff] %v2395
    %2426 = vst [vmem:[#allocation2 + $0x80] sm:$0xff] %v2396
    %2427 = vst [vmem:[#allocation2 + $0x88] sm:$0xff] %v2397
    %2428 = vst [vmem:[#allocation2 + $0x90] sm:$0xff] %v2398
    %2429 = vst [vmem:[#allocation2 + $0x98] sm:$0xff] %v2399
    %2430 = vst [vmem:[#allocation2 + $0xa0] sm:$0xff] %v2400
    %2431 = vst [vmem:[#allocation2 + $0xa8] sm:$0xff] %v2401
    %2432 = vst [vmem:[#allocation2 + $0xb0] sm:$0xff] %v2402
    %2433 = vst [vmem:[#allocation2 + $0xb8] sm:$0xff] %v2403
    %2434 = vst [vmem:[#allocation2 + $0xc0] sm:$0xff] %v2404
    %2435 = vst [vmem:[#allocation2 + $0xc8] sm:$0xff] %v2405
    %2436 = vst [vmem:[#allocation2 + $0xd0] sm:$0xff] %v2406
    %2437 = vst [vmem:[#allocation2 + $0xd8] sm:$0xff] %v2407
    %2438 = vst [vmem:[#allocation2 + $0xe0] sm:$0xff] %v2408
    %2439 = vst [vmem:[#allocation2 + $0xe8] sm:$0xff] %v2409
    %2440 = vst [vmem:[#allocation2 + $0xf0] sm:$0xff] %v2410
    %2441 = vst [vmem:[#allocation2 + $0xf8] sm:$0xff] %v2411
    %v2442 = vld [vmem:[#allocation2] sm:$0xff]
    %v2443 = vld [vmem:[#allocation2 + $0x8] sm:$0xff]
    %v2444 = vld [vmem:[#allocation2 + $0x10] sm:$0xff]
    %v2445 = vld [vmem:[#allocation2 + $0x18] sm:$0xff]
    %v2446 = vld [vmem:[#allocation2 + $0x20] sm:$0xff]
    %v2447 = vld [vmem:[#allocation2 + $0x28] sm:$0xff]
    %v2448 = vld [vmem:[#allocation2 + $0x30] sm:$0xff]
    %v2449 = vld [vmem:[#allocation2 + $0x38] sm:$0xff]
    %v2450 = vld [vmem:[#allocation2 + $0x40] sm:$0xff]
    %v2451 = vld [vmem:[#allocation2 + $0x48] sm:$0xff]
    %v2452 = vld [vmem:[#allocation2 + $0x50] sm:$0xff]
    %v2453 = vld [vmem:[#allocation2 + $0x58] sm:$0xff]
    %v2454 = vld [vmem:[#allocation2 + $0x60] sm:$0xff]
    %v2455 = vld [vmem:[#allocation2 + $0x68] sm:$0xff]
    %v2456 = vld [vmem:[#allocation2 + $0x70] sm:$0xff]
    %v2457 = vld [vmem:[#allocation2 + $0x78] sm:$0xff]
    %v2458 = vld [vmem:[#allocation2 + $0x80] sm:$0xff]
    %v2459 = vld [vmem:[#allocation2 + $0x88] sm:$0xff]
    %v2460 = vld [vmem:[#allocation2 + $0x90] sm:$0xff]
    %v2461 = vld [vmem:[#allocation2 + $0x98] sm:$0xff]
    %v2462 = vld [vmem:[#allocation2 + $0xa0] sm:$0xff]
    %v2463 = vld [vmem:[#allocation2 + $0xa8] sm:$0xff]
    %v2464 = vld [vmem:[#allocation2 + $0xb0] sm:$0xff]
    %v2465 = vld [vmem:[#allocation2 + $0xb8] sm:$0xff]
    %v2466 = vld [vmem:[#allocation2 + $0xc0] sm:$0xff]
    %v2467 = vld [vmem:[#allocation2 + $0xc8] sm:$0xff]
    %v2468 = vld [vmem:[#allocation2 + $0xd0] sm:$0xff]
    %v2469 = vld [vmem:[#allocation2 + $0xd8] sm:$0xff]
    %v2470 = vld [vmem:[#allocation2 + $0xe0] sm:$0xff]
    %v2471 = vld [vmem:[#allocation2 + $0xe8] sm:$0xff]
    %s2472 = scalar_lea.vmem %s3, 384
    %v2473 = vld [vmem:[%s2472] sm:$0xf]
    %v2474 = vld [vmem:[%s2472 + $0x4] sm:$0xf]
    %v2475 = vld [vmem:[%s2472 + $0x8] sm:$0xf]
    %v2476 = vld [vmem:[%s2472 + $0xc] sm:$0xf]
    %v2477 = vld [vmem:[%s2472 + $0x10] sm:$0xf]
    %v2478 = vld [vmem:[%s2472 + $0x14] sm:$0xf]
    %v2479 = vld [vmem:[%s2472 + $0x18] sm:$0xf]
    %v2480 = vld [vmem:[%s2472 + $0x1c] sm:$0xf]
    %v2481 = vld [vmem:[%s2472 + $0x20] sm:$0xf]
    %v2482 = vld [vmem:[%s2472 + $0x24] sm:$0xf]
    %v2483 = vld [vmem:[%s2472 + $0x28] sm:$0xf]
    %v2484 = vld [vmem:[%s2472 + $0x2c] sm:$0xf]
    %v2485 = vld [vmem:[%s2472 + $0x30] sm:$0xf]
    %v2486 = vld [vmem:[%s2472 + $0x34] sm:$0xf]
    %v2487 = vld [vmem:[%s2472 + $0x38] sm:$0xf]
    %v2488 = vld [vmem:[%s2472 + $0x3c] sm:$0xf]
    %v2489 = vld [vmem:[%s2472 + $0x40] sm:$0xf]
    %v2490 = vld [vmem:[%s2472 + $0x44] sm:$0xf]
    %v2491 = vld [vmem:[%s2472 + $0x48] sm:$0xf]
    %v2492 = vld [vmem:[%s2472 + $0x4c] sm:$0xf]
    %v2493 = vld [vmem:[%s2472 + $0x50] sm:$0xf]
    %v2494 = vld [vmem:[%s2472 + $0x54] sm:$0xf]
    %v2495 = vld [vmem:[%s2472 + $0x58] sm:$0xf]
    %v2496 = vld [vmem:[%s2472 + $0x5c] sm:$0xf]
    %v2497 = vld [vmem:[%s2472 + $0x60] sm:$0xf]
    %v2498 = vld [vmem:[%s2472 + $0x64] sm:$0xf]
    %v2499 = vld [vmem:[%s2472 + $0x68] sm:$0xf]
    %v2500 = vld [vmem:[%s2472 + $0x6c] sm:$0xf]
    %v2501 = vld [vmem:[%s2472 + $0x70] sm:$0xf]
    %v2502 = vld [vmem:[%s2472 + $0x74] sm:$0xf]
    %v2503 = vld [vmem:[%s2472 + $0x78] sm:$0xf]
    %v2504 = vld [vmem:[%s2472 + $0x7c] sm:$0xf]
    %v2505 = vld [vmem:[%s2472 + $0x80] sm:$0xf]
    %v2506 = vld [vmem:[%s2472 + $0x84] sm:$0xf]
    %v2507 = vld [vmem:[%s2472 + $0x88] sm:$0xf]
    %v2508 = vld [vmem:[%s2472 + $0x8c] sm:$0xf]
    %v2509 = vld [vmem:[%s2472 + $0x90] sm:$0xf]
    %v2510 = vld [vmem:[%s2472 + $0x94] sm:$0xf]
    %v2511 = vld [vmem:[%s2472 + $0x98] sm:$0xf]
    %v2512 = vld [vmem:[%s2472 + $0x9c] sm:$0xf]
    %v2513 = vld [vmem:[%s2472 + $0xa0] sm:$0xf]
    %v2514 = vld [vmem:[%s2472 + $0xa4] sm:$0xf]
    %v2515 = vld [vmem:[%s2472 + $0xa8] sm:$0xf]
    %v2516 = vld [vmem:[%s2472 + $0xac] sm:$0xf]
    %v2517 = vld [vmem:[%s2472 + $0xb0] sm:$0xf]
    %v2518 = vld [vmem:[%s2472 + $0xb4] sm:$0xf]
    %v2519 = vld [vmem:[%s2472 + $0xb8] sm:$0xf]
    %v2520 = vld [vmem:[%s2472 + $0xbc] sm:$0xf]
    %v2569 = vunpack.c.l.b16 %v2473
    %v2570 = vunpack.c.l.b16 %v2474
    %v2571 = vunpack.c.l.b16 %v2475
    %v2572 = vunpack.c.l.b16 %v2476
    %v2573 = vunpack.c.l.b16 %v2477
    %v2574 = vunpack.c.l.b16 %v2478
    %v2575 = vunpack.c.l.b16 %v2479
    %v2576 = vunpack.c.l.b16 %v2480
    %v2577 = vunpack.c.l.b16 %v2481
    %v2578 = vunpack.c.l.b16 %v2482
    %v2579 = vunpack.c.l.b16 %v2483
    %v2580 = vunpack.c.l.b16 %v2484
    %v2581 = vunpack.c.l.b16 %v2485
    %v2582 = vunpack.c.l.b16 %v2486
    %v2583 = vunpack.c.l.b16 %v2487
    %v2584 = vunpack.c.l.b16 %v2488
    %v2585 = vunpack.c.l.b16 %v2489
    %v2586 = vunpack.c.l.b16 %v2490
    %v2587 = vunpack.c.l.b16 %v2491
    %v2588 = vunpack.c.l.b16 %v2492
    %v2589 = vunpack.c.l.b16 %v2493
    %v2590 = vunpack.c.l.b16 %v2494
    %v2591 = vunpack.c.l.b16 %v2495
    %v2592 = vunpack.c.l.b16 %v2496
    %v2593 = vunpack.c.l.b16 %v2497
    %v2594 = vunpack.c.l.b16 %v2498
    %v2595 = vunpack.c.l.b16 %v2499
    %v2596 = vunpack.c.l.b16 %v2500
    %v2597 = vunpack.c.l.b16 %v2501
    %v2598 = vunpack.c.l.b16 %v2502
    %v2599 = vunpack.c.l.b16 %v2503
    %v2600 = vunpack.c.l.b16 %v2504
    %v2601 = vunpack.c.l.b16 %v2505
    %v2602 = vunpack.c.l.b16 %v2506
    %v2603 = vunpack.c.l.b16 %v2507
    %v2604 = vunpack.c.l.b16 %v2508
    %v2605 = vunpack.c.l.b16 %v2509
    %v2606 = vunpack.c.l.b16 %v2510
    %v2607 = vunpack.c.l.b16 %v2511
    %v2608 = vunpack.c.l.b16 %v2512
    %v2609 = vunpack.c.l.b16 %v2513
    %v2610 = vunpack.c.l.b16 %v2514
    %v2611 = vunpack.c.l.b16 %v2515
    %v2612 = vunpack.c.l.b16 %v2516
    %v2613 = vunpack.c.l.b16 %v2517
    %v2614 = vunpack.c.l.b16 %v2518
    %v2615 = vunpack.c.l.b16 %v2519
    %v2616 = vunpack.c.l.b16 %v2520
    %v2617 = vpack.c.b16 %v2570, %v2569
    %v2618 = vpack.c.b16 %v2572, %v2571
    %v2619 = vpack.c.b16 %v2574, %v2573
    %v2620 = vpack.c.b16 %v2576, %v2575
    %v2621 = vpack.c.b16 %v2578, %v2577
    %v2622 = vpack.c.b16 %v2580, %v2579
    %v2623 = vpack.c.b16 %v2582, %v2581
    %v2624 = vpack.c.b16 %v2584, %v2583
    %v2625 = vpack.c.b16 %v2586, %v2585
    %v2626 = vpack.c.b16 %v2588, %v2587
    %v2627 = vpack.c.b16 %v2590, %v2589
    %v2628 = vpack.c.b16 %v2592, %v2591
    %v2629 = vpack.c.b16 %v2594, %v2593
    %v2630 = vpack.c.b16 %v2596, %v2595
    %v2631 = vpack.c.b16 %v2598, %v2597
    %v2632 = vpack.c.b16 %v2600, %v2599
    %v2633 = vpack.c.b16 %v2602, %v2601
    %v2634 = vpack.c.b16 %v2604, %v2603
    %v2635 = vpack.c.b16 %v2606, %v2605
    %v2636 = vpack.c.b16 %v2608, %v2607
    %v2637 = vpack.c.b16 %v2610, %v2609
    %v2638 = vpack.c.b16 %v2612, %v2611
    %v2639 = vpack.c.b16 %v2614, %v2613
    %v2640 = vpack.c.b16 %v2616, %v2615
    %2665 = vmatpush.bf16.msra.mxu0 %v2624
    %2666 = vmatpush.bf16.msra.mxu0 %v2623
    %2667 = vmatpush.bf16.msra.mxu0 %v2622
    %2668 = vmatpush.bf16.msra.mxu0 %v2621
    %2669 = vmatpush.bf16.msra.mxu0 %v2620
    %2670 = vmatpush.bf16.msra.mxu0 %v2619
    %2671 = vmatpush.bf16.msra.mxu0 %v2618
    %2672 = vmatpush.bf16.msra.mxu0 %v2617
    %2673 = vmatmul.bf16.gmra.mxu0 %v950
    %v2674 = vpop.f32.mrf.mxu0
    %v2675 = vadd.f32 0.0, %v2674
    %v2676 = vpop.f32.mrf.mxu0
    %v2677 = vadd.f32 0.0, %v2676
    %2678 = vmatmul.bf16.gmra.mxu0 %v951
    %v2679 = vpop.f32.mrf.mxu0
    %v2680 = vadd.f32 0.0, %v2679
    %v2681 = vpop.f32.mrf.mxu0
    %v2682 = vadd.f32 0.0, %v2681
    %2683 = vmatmul.bf16.gmra.mxu0 %v952
    %v2684 = vpop.f32.mrf.mxu0
    %v2685 = vadd.f32 0.0, %v2684
    %v2686 = vpop.f32.mrf.mxu0
    %v2687 = vadd.f32 0.0, %v2686
    %2688 = vmatmul.bf16.gmra.mxu0 %v953
    %v2689 = vpop.f32.mrf.mxu0
    %v2690 = vadd.f32 0.0, %v2689
    %v2691 = vpop.f32.mrf.mxu0
    %v2692 = vadd.f32 0.0, %v2691
    %2693 = vmatmul.bf16.gmra.mxu0 %v954
    %v2694 = vpop.f32.mrf.mxu0
    %v2695 = vadd.f32 0.0, %v2694
    %v2696 = vpop.f32.mrf.mxu0
    %v2697 = vadd.f32 0.0, %v2696
    %2698 = vmatmul.bf16.gmra.mxu0 %v955
    %v2699 = vpop.f32.mrf.mxu0
    %v2700 = vadd.f32 0.0, %v2699
    %v2701 = vpop.f32.mrf.mxu0
    %v2702 = vadd.f32 0.0, %v2701
    %2703 = vmatmul.bf16.gmra.mxu0 %v956
    %v2704 = vpop.f32.mrf.mxu0
    %v2705 = vadd.f32 0.0, %v2704
    %v2706 = vpop.f32.mrf.mxu0
    %v2707 = vadd.f32 0.0, %v2706
    %2708 = vmatmul.bf16.gmra.mxu0 %v957
    %v2709 = vpop.f32.mrf.mxu0
    %v2710 = vadd.f32 0.0, %v2709
    %v2711 = vpop.f32.mrf.mxu0
    %v2712 = vadd.f32 0.0, %v2711
    %2713 = vmatmul.bf16.gmra.mxu0 %v958
    %v2714 = vpop.f32.mrf.mxu0
    %v2715 = vadd.f32 0.0, %v2714
    %v2716 = vpop.f32.mrf.mxu0
    %v2717 = vadd.f32 0.0, %v2716
    %2718 = vmatmul.bf16.gmra.mxu0 %v959
    %v2719 = vpop.f32.mrf.mxu0
    %v2720 = vadd.f32 0.0, %v2719
    %v2721 = vpop.f32.mrf.mxu0
    %v2722 = vadd.f32 0.0, %v2721
    %2723 = vmatmul.bf16.gmra.mxu0 %v960
    %v2724 = vpop.f32.mrf.mxu0
    %v2725 = vadd.f32 0.0, %v2724
    %v2726 = vpop.f32.mrf.mxu0
    %v2727 = vadd.f32 0.0, %v2726
    %2728 = vmatmul.bf16.gmra.mxu0 %v961
    %v2729 = vpop.f32.mrf.mxu0
    %v2730 = vadd.f32 0.0, %v2729
    %v2731 = vpop.f32.mrf.mxu0
    %v2732 = vadd.f32 0.0, %v2731
    %2733 = vmatmul.bf16.gmra.mxu0 %v962
    %v2734 = vpop.f32.mrf.mxu0
    %v2735 = vadd.f32 0.0, %v2734
    %v2736 = vpop.f32.mrf.mxu0
    %v2737 = vadd.f32 0.0, %v2736
    %2738 = vmatmul.bf16.gmra.mxu0 %v963
    %v2739 = vpop.f32.mrf.mxu0
    %v2740 = vadd.f32 0.0, %v2739
    %v2741 = vpop.f32.mrf.mxu0
    %v2742 = vadd.f32 0.0, %v2741
    %2743 = vmatmul.bf16.gmra.mxu0 %v964
    %v2744 = vpop.f32.mrf.mxu0
    %v2745 = vadd.f32 0.0, %v2744
    %v2746 = vpop.f32.mrf.mxu0
    %v2747 = vadd.f32 0.0, %v2746
    %2748 = vdwg.mxu0
    %2749 = vmatpush.bf16.msra.mxu0 %v2632
    %2750 = vmatpush.bf16.msra.mxu0 %v2631
    %2751 = vmatpush.bf16.msra.mxu0 %v2630
    %2752 = vmatpush.bf16.msra.mxu0 %v2629
    %2753 = vmatpush.bf16.msra.mxu0 %v2628
    %2754 = vmatpush.bf16.msra.mxu0 %v2627
    %2755 = vmatpush.bf16.msra.mxu0 %v2626
    %2756 = vmatpush.bf16.msra.mxu0 %v2625
    %2757 = vmatmul.bf16.gmra.mxu0 %v659
    %v2758 = vpop.f32.mrf.mxu0
    %v2759 = vadd.f32 %v2675, %v2758
    %v2760 = vpop.f32.mrf.mxu0
    %v2761 = vadd.f32 %v2677, %v2760
    %2762 = vmatmul.bf16.gmra.mxu0 %v660
    %v2763 = vpop.f32.mrf.mxu0
    %v2764 = vadd.f32 %v2680, %v2763
    %v2765 = vpop.f32.mrf.mxu0
    %v2766 = vadd.f32 %v2682, %v2765
    %2767 = vmatmul.bf16.gmra.mxu0 %v661
    %v2768 = vpop.f32.mrf.mxu0
    %v2769 = vadd.f32 %v2685, %v2768
    %v2770 = vpop.f32.mrf.mxu0
    %v2771 = vadd.f32 %v2687, %v2770
    %2772 = vmatmul.bf16.gmra.mxu0 %v662
    %v2773 = vpop.f32.mrf.mxu0
    %v2774 = vadd.f32 %v2690, %v2773
    %v2775 = vpop.f32.mrf.mxu0
    %v2776 = vadd.f32 %v2692, %v2775
    %2777 = vmatmul.bf16.gmra.mxu0 %v663
    %v2778 = vpop.f32.mrf.mxu0
    %v2779 = vadd.f32 %v2695, %v2778
    %v2780 = vpop.f32.mrf.mxu0
    %v2781 = vadd.f32 %v2697, %v2780
    %2782 = vmatmul.bf16.gmra.mxu0 %v664
    %v2783 = vpop.f32.mrf.mxu0
    %v2784 = vadd.f32 %v2700, %v2783
    %v2785 = vpop.f32.mrf.mxu0
    %v2786 = vadd.f32 %v2702, %v2785
    %2787 = vmatmul.bf16.gmra.mxu0 %v665
    %v2788 = vpop.f32.mrf.mxu0
    %v2789 = vadd.f32 %v2705, %v2788
    %v2790 = vpop.f32.mrf.mxu0
    %v2791 = vadd.f32 %v2707, %v2790
    %2792 = vmatmul.bf16.gmra.mxu0 %v666
    %v2793 = vpop.f32.mrf.mxu0
    %v2794 = vadd.f32 %v2710, %v2793
    %v2795 = vpop.f32.mrf.mxu0
    %v2796 = vadd.f32 %v2712, %v2795
    %2797 = vmatmul.bf16.gmra.mxu0 %v667
    %v2798 = vpop.f32.mrf.mxu0
    %v2799 = vadd.f32 %v2715, %v2798
    %v2800 = vpop.f32.mrf.mxu0
    %v2801 = vadd.f32 %v2717, %v2800
    %2802 = vmatmul.bf16.gmra.mxu0 %v668
    %v2803 = vpop.f32.mrf.mxu0
    %v2804 = vadd.f32 %v2720, %v2803
    %v2805 = vpop.f32.mrf.mxu0
    %v2806 = vadd.f32 %v2722, %v2805
    %2807 = vmatmul.bf16.gmra.mxu0 %v669
    %v2808 = vpop.f32.mrf.mxu0
    %v2809 = vadd.f32 %v2725, %v2808
    %v2810 = vpop.f32.mrf.mxu0
    %v2811 = vadd.f32 %v2727, %v2810
    %2812 = vmatmul.bf16.gmra.mxu0 %v670
    %v2813 = vpop.f32.mrf.mxu0
    %v2814 = vadd.f32 %v2730, %v2813
    %v2815 = vpop.f32.mrf.mxu0
    %v2816 = vadd.f32 %v2732, %v2815
    %2817 = vmatmul.bf16.gmra.mxu0 %v671
    %v2818 = vpop.f32.mrf.mxu0
    %v2819 = vadd.f32 %v2735, %v2818
    %v2820 = vpop.f32.mrf.mxu0
    %v2821 = vadd.f32 %v2737, %v2820
    %2822 = vmatmul.bf16.gmra.mxu0 %v672
    %v2823 = vpop.f32.mrf.mxu0
    %v2824 = vadd.f32 %v2740, %v2823
    %v2825 = vpop.f32.mrf.mxu0
    %v2826 = vadd.f32 %v2742, %v2825
    %2827 = vmatmul.bf16.gmra.mxu0 %v673
    %v2828 = vpop.f32.mrf.mxu0
    %v2829 = vadd.f32 %v2745, %v2828
    %v2830 = vpop.f32.mrf.mxu0
    %v2831 = vadd.f32 %v2747, %v2830
    %2832 = vdwg.mxu0
    %2833 = vmatpush.bf16.msra.mxu0 %v2640
    %2834 = vmatpush.bf16.msra.mxu0 %v2639
    %2835 = vmatpush.bf16.msra.mxu0 %v2638
    %2836 = vmatpush.bf16.msra.mxu0 %v2637
    %2837 = vmatpush.bf16.msra.mxu0 %v2636
    %2838 = vmatpush.bf16.msra.mxu0 %v2635
    %2839 = vmatpush.bf16.msra.mxu0 %v2634
    %2840 = vmatpush.bf16.msra.mxu0 %v2633
    %2841 = vmatmul.bf16.gmra.mxu0 %v1081
    %v2842 = vpop.f32.mrf.mxu0
    %v2843 = vadd.f32 %v2759, %v2842
    %v2844 = vpop.f32.mrf.mxu0
    %v2845 = vadd.f32 %v2761, %v2844
    %2846 = vmatmul.bf16.gmra.mxu0 %v1082
    %v2847 = vpop.f32.mrf.mxu0
    %v2848 = vadd.f32 %v2764, %v2847
    %v2849 = vpop.f32.mrf.mxu0
    %v2850 = vadd.f32 %v2766, %v2849
    %2851 = vmatmul.bf16.gmra.mxu0 %v1083
    %v2852 = vpop.f32.mrf.mxu0
    %v2853 = vadd.f32 %v2769, %v2852
    %v2854 = vpop.f32.mrf.mxu0
    %v2855 = vadd.f32 %v2771, %v2854
    %2856 = vmatmul.bf16.gmra.mxu0 %v1084
    %v2857 = vpop.f32.mrf.mxu0
    %v2858 = vadd.f32 %v2774, %v2857
    %v2859 = vpop.f32.mrf.mxu0
    %v2860 = vadd.f32 %v2776, %v2859
    %2861 = vmatmul.bf16.gmra.mxu0 %v1085
    %v2862 = vpop.f32.mrf.mxu0
    %v2863 = vadd.f32 %v2779, %v2862
    %v2864 = vpop.f32.mrf.mxu0
    %v2865 = vadd.f32 %v2781, %v2864
    %2866 = vmatmul.bf16.gmra.mxu0 %v1086
    %v2867 = vpop.f32.mrf.mxu0
    %v2868 = vadd.f32 %v2784, %v2867
    %v2869 = vpop.f32.mrf.mxu0
    %v2870 = vadd.f32 %v2786, %v2869
    %2871 = vmatmul.bf16.gmra.mxu0 %v1087
    %v2872 = vpop.f32.mrf.mxu0
    %v2873 = vadd.f32 %v2789, %v2872
    %v2874 = vpop.f32.mrf.mxu0
    %v2875 = vadd.f32 %v2791, %v2874
    %2876 = vmatmul.bf16.gmra.mxu0 %v1088
    %v2877 = vpop.f32.mrf.mxu0
    %v2878 = vadd.f32 %v2794, %v2877
    %v2879 = vpop.f32.mrf.mxu0
    %v2880 = vadd.f32 %v2796, %v2879
    %2881 = vmatmul.bf16.gmra.mxu0 %v1089
    %v2882 = vpop.f32.mrf.mxu0
    %v2883 = vadd.f32 %v2799, %v2882
    %v2884 = vpop.f32.mrf.mxu0
    %v2885 = vadd.f32 %v2801, %v2884
    %2886 = vmatmul.bf16.gmra.mxu0 %v1090
    %v2887 = vpop.f32.mrf.mxu0
    %v2888 = vadd.f32 %v2804, %v2887
    %v2889 = vpop.f32.mrf.mxu0
    %v2890 = vadd.f32 %v2806, %v2889
    %2891 = vmatmul.bf16.gmra.mxu0 %v1091
    %v2892 = vpop.f32.mrf.mxu0
    %v2893 = vadd.f32 %v2809, %v2892
    %v2894 = vpop.f32.mrf.mxu0
    %v2895 = vadd.f32 %v2811, %v2894
    %2896 = vmatmul.bf16.gmra.mxu0 %v1092
    %v2897 = vpop.f32.mrf.mxu0
    %v2898 = vadd.f32 %v2814, %v2897
    %v2899 = vpop.f32.mrf.mxu0
    %v2900 = vadd.f32 %v2816, %v2899
    %2901 = vmatmul.bf16.gmra.mxu0 %v1093
    %v2902 = vpop.f32.mrf.mxu0
    %v2903 = vadd.f32 %v2819, %v2902
    %v2904 = vpop.f32.mrf.mxu0
    %v2905 = vadd.f32 %v2821, %v2904
    %2906 = vmatmul.bf16.gmra.mxu0 %v1094
    %v2907 = vpop.f32.mrf.mxu0
    %v2908 = vadd.f32 %v2824, %v2907
    %v2909 = vpop.f32.mrf.mxu0
    %v2910 = vadd.f32 %v2826, %v2909
    %2911 = vmatmul.bf16.gmra.mxu0 %v1095
    %v2912 = vpop.f32.mrf.mxu0
    %v2913 = vadd.f32 %v2829, %v2912
    %v2914 = vpop.f32.mrf.mxu0
    %v2915 = vadd.f32 %v2831, %v2914
    %2916 = vdwg.mxu0
    %v2917 = vadd.f32 %v2442, %v2843
    %v2918 = vadd.f32 %v2443, %v2845
    %v2919 = vadd.f32 %v2444, %v2848
    %v2920 = vadd.f32 %v2445, %v2850
    %v2921 = vadd.f32 %v2446, %v2853
    %v2922 = vadd.f32 %v2447, %v2855
    %v2923 = vadd.f32 %v2448, %v2858
    %v2924 = vadd.f32 %v2449, %v2860
    %v2925 = vadd.f32 %v2450, %v2863
    %v2926 = vadd.f32 %v2451, %v2865
    %v2927 = vadd.f32 %v2452, %v2868
    %v2928 = vadd.f32 %v2453, %v2870
    %v2929 = vadd.f32 %v2454, %v2873
    %v2930 = vadd.f32 %v2455, %v2875
    %v2931 = vadd.f32 %v2456, %v2878
    %v2932 = vadd.f32 %v2457, %v2880
    %v2933 = vadd.f32 %v2458, %v2883
    %v2934 = vadd.f32 %v2459, %v2885
    %v2935 = vadd.f32 %v2460, %v2888
    %v2936 = vadd.f32 %v2461, %v2890
    %v2937 = vadd.f32 %v2462, %v2893
    %v2938 = vadd.f32 %v2463, %v2895
    %v2939 = vadd.f32 %v2464, %v2898
    %v2940 = vadd.f32 %v2465, %v2900
    %v2941 = vadd.f32 %v2466, %v2903
    %v2942 = vadd.f32 %v2467, %v2905
    %v2943 = vadd.f32 %v2468, %v2908
    %v2944 = vadd.f32 %v2469, %v2910
    %v2945 = vadd.f32 %v2470, %v2913
    %v2946 = vadd.f32 %v2471, %v2915
    %2947 = vst [vmem:[#allocation2] sm:$0xff] %v2917
    %2948 = vst [vmem:[#allocation2 + $0x8] sm:$0xff] %v2918
    %2949 = vst [vmem:[#allocation2 + $0x10] sm:$0xff] %v2919
    %2950 = vst [vmem:[#allocation2 + $0x18] sm:$0xff] %v2920
    %2951 = vst [vmem:[#allocation2 + $0x20] sm:$0xff] %v2921
    %2952 = vst [vmem:[#allocation2 + $0x28] sm:$0xff] %v2922
    %2953 = vst [vmem:[#allocation2 + $0x30] sm:$0xff] %v2923
    %2954 = vst [vmem:[#allocation2 + $0x38] sm:$0xff] %v2924
    %2955 = vst [vmem:[#allocation2 + $0x40] sm:$0xff] %v2925
    %2956 = vst [vmem:[#allocation2 + $0x48] sm:$0xff] %v2926
    %2957 = vst [vmem:[#allocation2 + $0x50] sm:$0xff] %v2927
    %2958 = vst [vmem:[#allocation2 + $0x58] sm:$0xff] %v2928
    %2959 = vst [vmem:[#allocation2 + $0x60] sm:$0xff] %v2929
    %2960 = vst [vmem:[#allocation2 + $0x68] sm:$0xff] %v2930
    %2961 = vst [vmem:[#allocation2 + $0x70] sm:$0xff] %v2931
    %2962 = vst [vmem:[#allocation2 + $0x78] sm:$0xff] %v2932
    %2963 = vst [vmem:[#allocation2 + $0x80] sm:$0xff] %v2933
    %2964 = vst [vmem:[#allocation2 + $0x88] sm:$0xff] %v2934
    %2965 = vst [vmem:[#allocation2 + $0x90] sm:$0xff] %v2935
    %2966 = vst [vmem:[#allocation2 + $0x98] sm:$0xff] %v2936
    %2967 = vst [vmem:[#allocation2 + $0xa0] sm:$0xff] %v2937
    %2968 = vst [vmem:[#allocation2 + $0xa8] sm:$0xff] %v2938
    %2969 = vst [vmem:[#allocation2 + $0xb0] sm:$0xff] %v2939
    %2970 = vst [vmem:[#allocation2 + $0xb8] sm:$0xff] %v2940
    %2971 = vst [vmem:[#allocation2 + $0xc0] sm:$0xff] %v2941
    %2972 = vst [vmem:[#allocation2 + $0xc8] sm:$0xff] %v2942
    %2973 = vst [vmem:[#allocation2 + $0xd0] sm:$0xff] %v2943
    %2974 = vst [vmem:[#allocation2 + $0xd8] sm:$0xff] %v2944
    %2975 = vst [vmem:[#allocation2 + $0xe0] sm:$0xff] %v2945
    %2976 = vst [vmem:[#allocation2 + $0xe8] sm:$0xff] %v2946
    %v2977 = vld [vmem:[#allocation2 + $0x110] sm:$0xff]
    %v2978 = vld [vmem:[#allocation2 + $0x118] sm:$0xff]
    %v2979 = vld [vmem:[#allocation2 + $0x120] sm:$0xff]
    %v2980 = vld [vmem:[#allocation2 + $0x128] sm:$0xff]
    %v2981 = vld [vmem:[#allocation2 + $0x130] sm:$0xff]
    %v2982 = vld [vmem:[#allocation2 + $0x138] sm:$0xff]
    %v2983 = vld [vmem:[#allocation2 + $0x140] sm:$0xff]
    %v2984 = vld [vmem:[#allocation2 + $0x148] sm:$0xff]
    %v2985 = vld [vmem:[#allocation2 + $0x150] sm:$0xff]
    %v2986 = vld [vmem:[#allocation2 + $0x158] sm:$0xff]
    %v2987 = vld [vmem:[#allocation2 + $0x160] sm:$0xff]
    %v2988 = vld [vmem:[#allocation2 + $0x168] sm:$0xff]
    %v2989 = vld [vmem:[#allocation2 + $0x170] sm:$0xff]
    %v2990 = vld [vmem:[#allocation2 + $0x178] sm:$0xff]
    %v2991 = vld [vmem:[#allocation2 + $0x180] sm:$0xff]
    %v2992 = vld [vmem:[#allocation2 + $0x188] sm:$0xff]
    %v2993 = vld [vmem:[#allocation2 + $0x190] sm:$0xff]
    %v2994 = vld [vmem:[#allocation2 + $0x198] sm:$0xff]
    %v2995 = vld [vmem:[#allocation2 + $0x1a0] sm:$0xff]
    %v2996 = vld [vmem:[#allocation2 + $0x1a8] sm:$0xff]
    %v2997 = vld [vmem:[#allocation2 + $0x1b0] sm:$0xff]
    %v2998 = vld [vmem:[#allocation2 + $0x1b8] sm:$0xff]
    %v2999 = vld [vmem:[#allocation2 + $0x1c0] sm:$0xff]
    %v3000 = vld [vmem:[#allocation2 + $0x1c8] sm:$0xff]
    %v3001 = vld [vmem:[#allocation2 + $0x1d0] sm:$0xff]
    %v3002 = vld [vmem:[#allocation2 + $0x1d8] sm:$0xff]
    %v3003 = vld [vmem:[#allocation2 + $0x1e0] sm:$0xff]
    %v3004 = vld [vmem:[#allocation2 + $0x1e8] sm:$0xff]
    %v3005 = vld [vmem:[#allocation2 + $0x1f0] sm:$0xff]
    %v3006 = vld [vmem:[#allocation2 + $0x1f8] sm:$0xff]
    %v3007 = vld [vmem:[%s3] sm:$0xf]
    %v3008 = vld [vmem:[%s3 + $0x4] sm:$0xf]
    %v3009 = vld [vmem:[%s3 + $0x8] sm:$0xf]
    %v3010 = vld [vmem:[%s3 + $0xc] sm:$0xf]
    %v3011 = vld [vmem:[%s3 + $0x10] sm:$0xf]
    %v3012 = vld [vmem:[%s3 + $0x14] sm:$0xf]
    %v3013 = vld [vmem:[%s3 + $0x18] sm:$0xf]
    %v3014 = vld [vmem:[%s3 + $0x1c] sm:$0xf]
    %v3015 = vld [vmem:[%s3 + $0x20] sm:$0xf]
    %v3016 = vld [vmem:[%s3 + $0x24] sm:$0xf]
    %v3017 = vld [vmem:[%s3 + $0x28] sm:$0xf]
    %v3018 = vld [vmem:[%s3 + $0x2c] sm:$0xf]
    %v3019 = vld [vmem:[%s3 + $0x30] sm:$0xf]
    %v3020 = vld [vmem:[%s3 + $0x34] sm:$0xf]
    %v3021 = vld [vmem:[%s3 + $0x38] sm:$0xf]
    %v3022 = vld [vmem:[%s3 + $0x3c] sm:$0xf]
    %v3023 = vld [vmem:[%s3 + $0x40] sm:$0xf]
    %v3024 = vld [vmem:[%s3 + $0x44] sm:$0xf]
    %v3025 = vld [vmem:[%s3 + $0x48] sm:$0xf]
    %v3026 = vld [vmem:[%s3 + $0x4c] sm:$0xf]
    %v3027 = vld [vmem:[%s3 + $0x50] sm:$0xf]
    %v3028 = vld [vmem:[%s3 + $0x54] sm:$0xf]
    %v3029 = vld [vmem:[%s3 + $0x58] sm:$0xf]
    %v3030 = vld [vmem:[%s3 + $0x5c] sm:$0xf]
    %v3031 = vld [vmem:[%s3 + $0x60] sm:$0xf]
    %v3032 = vld [vmem:[%s3 + $0x64] sm:$0xf]
    %v3033 = vld [vmem:[%s3 + $0x68] sm:$0xf]
    %v3034 = vld [vmem:[%s3 + $0x6c] sm:$0xf]
    %v3035 = vld [vmem:[%s3 + $0x70] sm:$0xf]
    %v3036 = vld [vmem:[%s3 + $0x74] sm:$0xf]
    %v3037 = vld [vmem:[%s3 + $0x78] sm:$0xf]
    %v3038 = vld [vmem:[%s3 + $0x7c] sm:$0xf]
    %v3039 = vld [vmem:[%s3 + $0x80] sm:$0xf]
    %v3040 = vld [vmem:[%s3 + $0x84] sm:$0xf]
    %v3041 = vld [vmem:[%s3 + $0x88] sm:$0xf]
    %v3042 = vld [vmem:[%s3 + $0x8c] sm:$0xf]
    %v3043 = vld [vmem:[%s3 + $0x90] sm:$0xf]
    %v3044 = vld [vmem:[%s3 + $0x94] sm:$0xf]
    %v3045 = vld [vmem:[%s3 + $0x98] sm:$0xf]
    %v3046 = vld [vmem:[%s3 + $0x9c] sm:$0xf]
    %v3047 = vld [vmem:[%s3 + $0xa0] sm:$0xf]
    %v3048 = vld [vmem:[%s3 + $0xa4] sm:$0xf]
    %v3049 = vld [vmem:[%s3 + $0xa8] sm:$0xf]
    %v3050 = vld [vmem:[%s3 + $0xac] sm:$0xf]
    %v3051 = vld [vmem:[%s3 + $0xb0] sm:$0xf]
    %v3052 = vld [vmem:[%s3 + $0xb4] sm:$0xf]
    %v3053 = vld [vmem:[%s3 + $0xb8] sm:$0xf]
    %v3054 = vld [vmem:[%s3 + $0xbc] sm:$0xf]
    %v3103 = vunpack.c.l.b16 %v3007
    %v3104 = vunpack.c.l.b16 %v3008
    %v3105 = vunpack.c.l.b16 %v3009
    %v3106 = vunpack.c.l.b16 %v3010
    %v3107 = vunpack.c.l.b16 %v3011
    %v3108 = vunpack.c.l.b16 %v3012
    %v3109 = vunpack.c.l.b16 %v3013
    %v3110 = vunpack.c.l.b16 %v3014
    %v3111 = vunpack.c.l.b16 %v3015
    %v3112 = vunpack.c.l.b16 %v3016
    %v3113 = vunpack.c.l.b16 %v3017
    %v3114 = vunpack.c.l.b16 %v3018
    %v3115 = vunpack.c.l.b16 %v3019
    %v3116 = vunpack.c.l.b16 %v3020
    %v3117 = vunpack.c.l.b16 %v3021
    %v3118 = vunpack.c.l.b16 %v3022
    %v3119 = vunpack.c.l.b16 %v3023
    %v3120 = vunpack.c.l.b16 %v3024
    %v3121 = vunpack.c.l.b16 %v3025
    %v3122 = vunpack.c.l.b16 %v3026
    %v3123 = vunpack.c.l.b16 %v3027
    %v3124 = vunpack.c.l.b16 %v3028
    %v3125 = vunpack.c.l.b16 %v3029
    %v3126 = vunpack.c.l.b16 %v3030
    %v3127 = vunpack.c.l.b16 %v3031
    %v3128 = vunpack.c.l.b16 %v3032
    %v3129 = vunpack.c.l.b16 %v3033
    %v3130 = vunpack.c.l.b16 %v3034
    %v3131 = vunpack.c.l.b16 %v3035
    %v3132 = vunpack.c.l.b16 %v3036
    %v3133 = vunpack.c.l.b16 %v3037
    %v3134 = vunpack.c.l.b16 %v3038
    %v3135 = vunpack.c.l.b16 %v3039
    %v3136 = vunpack.c.l.b16 %v3040
    %v3137 = vunpack.c.l.b16 %v3041
    %v3138 = vunpack.c.l.b16 %v3042
    %v3139 = vunpack.c.l.b16 %v3043
    %v3140 = vunpack.c.l.b16 %v3044
    %v3141 = vunpack.c.l.b16 %v3045
    %v3142 = vunpack.c.l.b16 %v3046
    %v3143 = vunpack.c.l.b16 %v3047
    %v3144 = vunpack.c.l.b16 %v3048
    %v3145 = vunpack.c.l.b16 %v3049
    %v3146 = vunpack.c.l.b16 %v3050
    %v3147 = vunpack.c.l.b16 %v3051
    %v3148 = vunpack.c.l.b16 %v3052
    %v3149 = vunpack.c.l.b16 %v3053
    %v3150 = vunpack.c.l.b16 %v3054
    %v3151 = vpack.c.b16 %v3104, %v3103
    %v3152 = vpack.c.b16 %v3106, %v3105
    %v3153 = vpack.c.b16 %v3108, %v3107
    %v3154 = vpack.c.b16 %v3110, %v3109
    %v3155 = vpack.c.b16 %v3112, %v3111
    %v3156 = vpack.c.b16 %v3114, %v3113
    %v3157 = vpack.c.b16 %v3116, %v3115
    %v3158 = vpack.c.b16 %v3118, %v3117
    %v3159 = vpack.c.b16 %v3120, %v3119
    %v3160 = vpack.c.b16 %v3122, %v3121
    %v3161 = vpack.c.b16 %v3124, %v3123
    %v3162 = vpack.c.b16 %v3126, %v3125
    %v3163 = vpack.c.b16 %v3128, %v3127
    %v3164 = vpack.c.b16 %v3130, %v3129
    %v3165 = vpack.c.b16 %v3132, %v3131
    %v3166 = vpack.c.b16 %v3134, %v3133
    %v3167 = vpack.c.b16 %v3136, %v3135
    %v3168 = vpack.c.b16 %v3138, %v3137
    %v3169 = vpack.c.b16 %v3140, %v3139
    %v3170 = vpack.c.b16 %v3142, %v3141
    %v3171 = vpack.c.b16 %v3144, %v3143
    %v3172 = vpack.c.b16 %v3146, %v3145
    %v3173 = vpack.c.b16 %v3148, %v3147
    %v3174 = vpack.c.b16 %v3150, %v3149
    %3199 = vmatpush.bf16.msra.mxu0 %v3158
    %3200 = vmatpush.bf16.msra.mxu0 %v3157
    %3201 = vmatpush.bf16.msra.mxu0 %v3156
    %3202 = vmatpush.bf16.msra.mxu0 %v3155
    %3203 = vmatpush.bf16.msra.mxu0 %v3154
    %3204 = vmatpush.bf16.msra.mxu0 %v3153
    %3205 = vmatpush.bf16.msra.mxu0 %v3152
    %3206 = vmatpush.bf16.msra.mxu0 %v3151
    %3207 = vmatmul.bf16.gmra.mxu0 %v965
    %v3208 = vpop.f32.mrf.mxu0
    %v3209 = vadd.f32 0.0, %v3208
    %v3210 = vpop.f32.mrf.mxu0
    %v3211 = vadd.f32 0.0, %v3210
    %3212 = vmatmul.bf16.gmra.mxu0 %v966
    %v3213 = vpop.f32.mrf.mxu0
    %v3214 = vadd.f32 0.0, %v3213
    %v3215 = vpop.f32.mrf.mxu0
    %v3216 = vadd.f32 0.0, %v3215
    %3217 = vmatmul.bf16.gmra.mxu0 %v967
    %v3218 = vpop.f32.mrf.mxu0
    %v3219 = vadd.f32 0.0, %v3218
    %v3220 = vpop.f32.mrf.mxu0
    %v3221 = vadd.f32 0.0, %v3220
    %3222 = vmatmul.bf16.gmra.mxu0 %v968
    %v3223 = vpop.f32.mrf.mxu0
    %v3224 = vadd.f32 0.0, %v3223
    %v3225 = vpop.f32.mrf.mxu0
    %v3226 = vadd.f32 0.0, %v3225
    %3227 = vmatmul.bf16.gmra.mxu0 %v969
    %v3228 = vpop.f32.mrf.mxu0
    %v3229 = vadd.f32 0.0, %v3228
    %v3230 = vpop.f32.mrf.mxu0
    %v3231 = vadd.f32 0.0, %v3230
    %3232 = vmatmul.bf16.gmra.mxu0 %v970
    %v3233 = vpop.f32.mrf.mxu0
    %v3234 = vadd.f32 0.0, %v3233
    %v3235 = vpop.f32.mrf.mxu0
    %v3236 = vadd.f32 0.0, %v3235
    %3237 = vmatmul.bf16.gmra.mxu0 %v971
    %v3238 = vpop.f32.mrf.mxu0
    %v3239 = vadd.f32 0.0, %v3238
    %v3240 = vpop.f32.mrf.mxu0
    %v3241 = vadd.f32 0.0, %v3240
    %3242 = vmatmul.bf16.gmra.mxu0 %v972
    %v3243 = vpop.f32.mrf.mxu0
    %v3244 = vadd.f32 0.0, %v3243
    %v3245 = vpop.f32.mrf.mxu0
    %v3246 = vadd.f32 0.0, %v3245
    %3247 = vmatmul.bf16.gmra.mxu0 %v973
    %v3248 = vpop.f32.mrf.mxu0
    %v3249 = vadd.f32 0.0, %v3248
    %v3250 = vpop.f32.mrf.mxu0
    %v3251 = vadd.f32 0.0, %v3250
    %3252 = vmatmul.bf16.gmra.mxu0 %v974
    %v3253 = vpop.f32.mrf.mxu0
    %v3254 = vadd.f32 0.0, %v3253
    %v3255 = vpop.f32.mrf.mxu0
    %v3256 = vadd.f32 0.0, %v3255
    %3257 = vmatmul.bf16.gmra.mxu0 %v975
    %v3258 = vpop.f32.mrf.mxu0
    %v3259 = vadd.f32 0.0, %v3258
    %v3260 = vpop.f32.mrf.mxu0
    %v3261 = vadd.f32 0.0, %v3260
    %3262 = vmatmul.bf16.gmra.mxu0 %v976
    %v3263 = vpop.f32.mrf.mxu0
    %v3264 = vadd.f32 0.0, %v3263
    %v3265 = vpop.f32.mrf.mxu0
    %v3266 = vadd.f32 0.0, %v3265
    %3267 = vmatmul.bf16.gmra.mxu0 %v977
    %v3268 = vpop.f32.mrf.mxu0
    %v3269 = vadd.f32 0.0, %v3268
    %v3270 = vpop.f32.mrf.mxu0
    %v3271 = vadd.f32 0.0, %v3270
    %3272 = vmatmul.bf16.gmra.mxu0 %v978
    %v3273 = vpop.f32.mrf.mxu0
    %v3274 = vadd.f32 0.0, %v3273
    %v3275 = vpop.f32.mrf.mxu0
    %v3276 = vadd.f32 0.0, %v3275
    %3277 = vmatmul.bf16.gmra.mxu0 %v979
    %v3278 = vpop.f32.mrf.mxu0
    %v3279 = vadd.f32 0.0, %v3278
    %v3280 = vpop.f32.mrf.mxu0
    %v3281 = vadd.f32 0.0, %v3280
    %3282 = vdwg.mxu0
    %3283 = vmatpush.bf16.msra.mxu0 %v3166
    %3284 = vmatpush.bf16.msra.mxu0 %v3165
    %3285 = vmatpush.bf16.msra.mxu0 %v3164
    %3286 = vmatpush.bf16.msra.mxu0 %v3163
    %3287 = vmatpush.bf16.msra.mxu0 %v3162
    %3288 = vmatpush.bf16.msra.mxu0 %v3161
    %3289 = vmatpush.bf16.msra.mxu0 %v3160
    %3290 = vmatpush.bf16.msra.mxu0 %v3159
    %3291 = vmatmul.bf16.gmra.mxu0 %v674
    %v3292 = vpop.f32.mrf.mxu0
    %v3293 = vadd.f32 %v3209, %v3292
    %v3294 = vpop.f32.mrf.mxu0
    %v3295 = vadd.f32 %v3211, %v3294
    %3296 = vmatmul.bf16.gmra.mxu0 %v675
    %v3297 = vpop.f32.mrf.mxu0
    %v3298 = vadd.f32 %v3214, %v3297
    %v3299 = vpop.f32.mrf.mxu0
    %v3300 = vadd.f32 %v3216, %v3299
    %3301 = vmatmul.bf16.gmra.mxu0 %v676
    %v3302 = vpop.f32.mrf.mxu0
    %v3303 = vadd.f32 %v3219, %v3302
    %v3304 = vpop.f32.mrf.mxu0
    %v3305 = vadd.f32 %v3221, %v3304
    %3306 = vmatmul.bf16.gmra.mxu0 %v677
    %v3307 = vpop.f32.mrf.mxu0
    %v3308 = vadd.f32 %v3224, %v3307
    %v3309 = vpop.f32.mrf.mxu0
    %v3310 = vadd.f32 %v3226, %v3309
    %3311 = vmatmul.bf16.gmra.mxu0 %v678
    %v3312 = vpop.f32.mrf.mxu0
    %v3313 = vadd.f32 %v3229, %v3312
    %v3314 = vpop.f32.mrf.mxu0
    %v3315 = vadd.f32 %v3231, %v3314
    %3316 = vmatmul.bf16.gmra.mxu0 %v679
    %v3317 = vpop.f32.mrf.mxu0
    %v3318 = vadd.f32 %v3234, %v3317
    %v3319 = vpop.f32.mrf.mxu0
    %v3320 = vadd.f32 %v3236, %v3319
    %3321 = vmatmul.bf16.gmra.mxu0 %v680
    %v3322 = vpop.f32.mrf.mxu0
    %v3323 = vadd.f32 %v3239, %v3322
    %v3324 = vpop.f32.mrf.mxu0
    %v3325 = vadd.f32 %v3241, %v3324
    %3326 = vmatmul.bf16.gmra.mxu0 %v681
    %v3327 = vpop.f32.mrf.mxu0
    %v3328 = vadd.f32 %v3244, %v3327
    %v3329 = vpop.f32.mrf.mxu0
    %v3330 = vadd.f32 %v3246, %v3329
    %3331 = vmatmul.bf16.gmra.mxu0 %v682
    %v3332 = vpop.f32.mrf.mxu0
    %v3333 = vadd.f32 %v3249, %v3332
    %v3334 = vpop.f32.mrf.mxu0
    %v3335 = vadd.f32 %v3251, %v3334
    %3336 = vmatmul.bf16.gmra.mxu0 %v683
    %v3337 = vpop.f32.mrf.mxu0
    %v3338 = vadd.f32 %v3254, %v3337
    %v3339 = vpop.f32.mrf.mxu0
    %v3340 = vadd.f32 %v3256, %v3339
    %3341 = vmatmul.bf16.gmra.mxu0 %v684
    %v3342 = vpop.f32.mrf.mxu0
    %v3343 = vadd.f32 %v3259, %v3342
    %v3344 = vpop.f32.mrf.mxu0
    %v3345 = vadd.f32 %v3261, %v3344
    %3346 = vmatmul.bf16.gmra.mxu0 %v685
    %v3347 = vpop.f32.mrf.mxu0
    %v3348 = vadd.f32 %v3264, %v3347
    %v3349 = vpop.f32.mrf.mxu0
    %v3350 = vadd.f32 %v3266, %v3349
    %3351 = vmatmul.bf16.gmra.mxu0 %v686
    %v3352 = vpop.f32.mrf.mxu0
    %v3353 = vadd.f32 %v3269, %v3352
    %v3354 = vpop.f32.mrf.mxu0
    %v3355 = vadd.f32 %v3271, %v3354
    %3356 = vmatmul.bf16.gmra.mxu0 %v687
    %v3357 = vpop.f32.mrf.mxu0
    %v3358 = vadd.f32 %v3274, %v3357
    %v3359 = vpop.f32.mrf.mxu0
    %v3360 = vadd.f32 %v3276, %v3359
    %3361 = vmatmul.bf16.gmra.mxu0 %v688
    %v3362 = vpop.f32.mrf.mxu0
    %v3363 = vadd.f32 %v3279, %v3362
    %v3364 = vpop.f32.mrf.mxu0
    %v3365 = vadd.f32 %v3281, %v3364
    %3366 = vdwg.mxu0
    %3367 = vmatpush.bf16.msra.mxu0 %v3174
    %3368 = vmatpush.bf16.msra.mxu0 %v3173
    %3369 = vmatpush.bf16.msra.mxu0 %v3172
    %3370 = vmatpush.bf16.msra.mxu0 %v3171
    %3371 = vmatpush.bf16.msra.mxu0 %v3170
    %3372 = vmatpush.bf16.msra.mxu0 %v3169
    %3373 = vmatpush.bf16.msra.mxu0 %v3168
    %3374 = vmatpush.bf16.msra.mxu0 %v3167
    %3375 = vmatmul.bf16.gmra.mxu0 %v1096
    %v3376 = vpop.f32.mrf.mxu0
    %v3377 = vadd.f32 %v3293, %v3376
    %v3378 = vpop.f32.mrf.mxu0
    %v3379 = vadd.f32 %v3295, %v3378
    %3380 = vmatmul.bf16.gmra.mxu0 %v1097
    %v3381 = vpop.f32.mrf.mxu0
    %v3382 = vadd.f32 %v3298, %v3381
    %v3383 = vpop.f32.mrf.mxu0
    %v3384 = vadd.f32 %v3300, %v3383
    %3385 = vmatmul.bf16.gmra.mxu0 %v1098
    %v3386 = vpop.f32.mrf.mxu0
    %v3387 = vadd.f32 %v3303, %v3386
    %v3388 = vpop.f32.mrf.mxu0
    %v3389 = vadd.f32 %v3305, %v3388
    %3390 = vmatmul.bf16.gmra.mxu0 %v1099
    %v3391 = vpop.f32.mrf.mxu0
    %v3392 = vadd.f32 %v3308, %v3391
    %v3393 = vpop.f32.mrf.mxu0
    %v3394 = vadd.f32 %v3310, %v3393
    %3395 = vmatmul.bf16.gmra.mxu0 %v1100
    %v3396 = vpop.f32.mrf.mxu0
    %v3397 = vadd.f32 %v3313, %v3396
    %v3398 = vpop.f32.mrf.mxu0
    %v3399 = vadd.f32 %v3315, %v3398
    %3400 = vmatmul.bf16.gmra.mxu0 %v1101
    %v3401 = vpop.f32.mrf.mxu0
    %v3402 = vadd.f32 %v3318, %v3401
    %v3403 = vpop.f32.mrf.mxu0
    %v3404 = vadd.f32 %v3320, %v3403
    %3405 = vmatmul.bf16.gmra.mxu0 %v1102
    %v3406 = vpop.f32.mrf.mxu0
    %v3407 = vadd.f32 %v3323, %v3406
    %v3408 = vpop.f32.mrf.mxu0
    %v3409 = vadd.f32 %v3325, %v3408
    %3410 = vmatmul.bf16.gmra.mxu0 %v1103
    %v3411 = vpop.f32.mrf.mxu0
    %v3412 = vadd.f32 %v3328, %v3411
    %v3413 = vpop.f32.mrf.mxu0
    %v3414 = vadd.f32 %v3330, %v3413
    %3415 = vmatmul.bf16.gmra.mxu0 %v1104
    %v3416 = vpop.f32.mrf.mxu0
    %v3417 = vadd.f32 %v3333, %v3416
    %v3418 = vpop.f32.mrf.mxu0
    %v3419 = vadd.f32 %v3335, %v3418
    %3420 = vmatmul.bf16.gmra.mxu0 %v1105
    %v3421 = vpop.f32.mrf.mxu0
    %v3422 = vadd.f32 %v3338, %v3421
    %v3423 = vpop.f32.mrf.mxu0
    %v3424 = vadd.f32 %v3340, %v3423
    %3425 = vmatmul.bf16.gmra.mxu0 %v1106
    %v3426 = vpop.f32.mrf.mxu0
    %v3427 = vadd.f32 %v3343, %v3426
    %v3428 = vpop.f32.mrf.mxu0
    %v3429 = vadd.f32 %v3345, %v3428
    %3430 = vmatmul.bf16.gmra.mxu0 %v1107
    %v3431 = vpop.f32.mrf.mxu0
    %v3432 = vadd.f32 %v3348, %v3431
    %v3433 = vpop.f32.mrf.mxu0
    %v3434 = vadd.f32 %v3350, %v3433
    %3435 = vmatmul.bf16.gmra.mxu0 %v1108
    %v3436 = vpop.f32.mrf.mxu0
    %v3437 = vadd.f32 %v3353, %v3436
    %v3438 = vpop.f32.mrf.mxu0
    %v3439 = vadd.f32 %v3355, %v3438
    %3440 = vmatmul.bf16.gmra.mxu0 %v1109
    %v3441 = vpop.f32.mrf.mxu0
    %v3442 = vadd.f32 %v3358, %v3441
    %v3443 = vpop.f32.mrf.mxu0
    %v3444 = vadd.f32 %v3360, %v3443
    %3445 = vmatmul.bf16.gmra.mxu0 %v1110
    %v3446 = vpop.f32.mrf.mxu0
    %v3447 = vadd.f32 %v3363, %v3446
    %v3448 = vpop.f32.mrf.mxu0
    %v3449 = vadd.f32 %v3365, %v3448
    %3450 = vdwg.mxu0
    %v3451 = vadd.f32 %v2977, %v3377
    %v3452 = vadd.f32 %v2978, %v3379
    %v3453 = vadd.f32 %v2979, %v3382
    %v3454 = vadd.f32 %v2980, %v3384
    %v3455 = vadd.f32 %v2981, %v3387
    %v3456 = vadd.f32 %v2982, %v3389
    %v3457 = vadd.f32 %v2983, %v3392
    %v3458 = vadd.f32 %v2984, %v3394
    %v3459 = vadd.f32 %v2985, %v3397
    %v3460 = vadd.f32 %v2986, %v3399
    %v3461 = vadd.f32 %v2987, %v3402
    %v3462 = vadd.f32 %v2988, %v3404
    %v3463 = vadd.f32 %v2989, %v3407
    %v3464 = vadd.f32 %v2990, %v3409
    %v3465 = vadd.f32 %v2991, %v3412
    %v3466 = vadd.f32 %v2992, %v3414
    %v3467 = vadd.f32 %v2993, %v3417
    %v3468 = vadd.f32 %v2994, %v3419
    %v3469 = vadd.f32 %v2995, %v3422
    %v3470 = vadd.f32 %v2996, %v3424
    %v3471 = vadd.f32 %v2997, %v3427
    %v3472 = vadd.f32 %v2998, %v3429
    %v3473 = vadd.f32 %v2999, %v3432
    %v3474 = vadd.f32 %v3000, %v3434
    %v3475 = vadd.f32 %v3001, %v3437
    %v3476 = vadd.f32 %v3002, %v3439
    %v3477 = vadd.f32 %v3003, %v3442
    %v3478 = vadd.f32 %v3004, %v3444
    %v3479 = vadd.f32 %v3005, %v3447
    %v3480 = vadd.f32 %v3006, %v3449
    %3481 = vst [vmem:[#allocation2 + $0x110] sm:$0xff] %v3451
    %3482 = vst [vmem:[#allocation2 + $0x118] sm:$0xff] %v3452
    %3483 = vst [vmem:[#allocation2 + $0x120] sm:$0xff] %v3453
    %3484 = vst [vmem:[#allocation2 + $0x128] sm:$0xff] %v3454
    %3485 = vst [vmem:[#allocation2 + $0x130] sm:$0xff] %v3455
    %3486 = vst [vmem:[#allocation2 + $0x138] sm:$0xff] %v3456
    %3487 = vst [vmem:[#allocation2 + $0x140] sm:$0xff] %v3457
    %3488 = vst [vmem:[#allocation2 + $0x148] sm:$0xff] %v3458
    %3489 = vst [vmem:[#allocation2 + $0x150] sm:$0xff] %v3459
    %3490 = vst [vmem:[#allocation2 + $0x158] sm:$0xff] %v3460
    %3491 = vst [vmem:[#allocation2 + $0x160] sm:$0xff] %v3461
    %3492 = vst [vmem:[#allocation2 + $0x168] sm:$0xff] %v3462
    %3493 = vst [vmem:[#allocation2 + $0x170] sm:$0xff] %v3463
    %3494 = vst [vmem:[#allocation2 + $0x178] sm:$0xff] %v3464
    %3495 = vst [vmem:[#allocation2 + $0x180] sm:$0xff] %v3465
    %3496 = vst [vmem:[#allocation2 + $0x188] sm:$0xff] %v3466
    %3497 = vst [vmem:[#allocation2 + $0x190] sm:$0xff] %v3467
    %3498 = vst [vmem:[#allocation2 + $0x198] sm:$0xff] %v3468
    %3499 = vst [vmem:[#allocation2 + $0x1a0] sm:$0xff] %v3469
    %3500 = vst [vmem:[#allocation2 + $0x1a8] sm:$0xff] %v3470
    %3501 = vst [vmem:[#allocation2 + $0x1b0] sm:$0xff] %v3471
    %3502 = vst [vmem:[#allocation2 + $0x1b8] sm:$0xff] %v3472
    %3503 = vst [vmem:[#allocation2 + $0x1c0] sm:$0xff] %v3473
    %3504 = vst [vmem:[#allocation2 + $0x1c8] sm:$0xff] %v3474
    %3505 = vst [vmem:[#allocation2 + $0x1d0] sm:$0xff] %v3475
    %3506 = vst [vmem:[#allocation2 + $0x1d8] sm:$0xff] %v3476
    %3507 = vst [vmem:[#allocation2 + $0x1e0] sm:$0xff] %v3477
    %3508 = vst [vmem:[#allocation2 + $0x1e8] sm:$0xff] %v3478
    %3509 = vst [vmem:[#allocation2 + $0x1f0] sm:$0xff] %v3479
    %3510 = vst [vmem:[#allocation2 + $0x1f8] sm:$0xff] %v3480
    %v3511 = vld [vmem:[#allocation2 + $0x100] sm:$0xff]
    %v3512 = vld [vmem:[#allocation2 + $0x108] sm:$0xff]
    %v3513 = vld [vmem:[#allocation2 + $0x110] sm:$0xff]
    %v3514 = vld [vmem:[#allocation2 + $0x118] sm:$0xff]
    %v3515 = vld [vmem:[#allocation2 + $0x120] sm:$0xff]
    %v3516 = vld [vmem:[#allocation2 + $0x128] sm:$0xff]
    %v3517 = vld [vmem:[#allocation2 + $0x130] sm:$0xff]
    %v3518 = vld [vmem:[#allocation2 + $0x138] sm:$0xff]
    %v3519 = vld [vmem:[#allocation2 + $0x140] sm:$0xff]
    %v3520 = vld [vmem:[#allocation2 + $0x148] sm:$0xff]
    %v3521 = vld [vmem:[#allocation2 + $0x150] sm:$0xff]
    %v3522 = vld [vmem:[#allocation2 + $0x158] sm:$0xff]
    %v3523 = vld [vmem:[#allocation2 + $0x160] sm:$0xff]
    %v3524 = vld [vmem:[#allocation2 + $0x168] sm:$0xff]
    %v3525 = vld [vmem:[#allocation2 + $0x170] sm:$0xff]
    %v3526 = vld [vmem:[#allocation2 + $0x178] sm:$0xff]
    %v3527 = vld [vmem:[#allocation2 + $0x180] sm:$0xff]
    %v3528 = vld [vmem:[#allocation2 + $0x188] sm:$0xff]
    %v3529 = vld [vmem:[#allocation2 + $0x190] sm:$0xff]
    %v3530 = vld [vmem:[#allocation2 + $0x198] sm:$0xff]
    %v3531 = vld [vmem:[#allocation2 + $0x1a0] sm:$0xff]
    %v3532 = vld [vmem:[#allocation2 + $0x1a8] sm:$0xff]
    %v3533 = vld [vmem:[#allocation2 + $0x1b0] sm:$0xff]
    %v3534 = vld [vmem:[#allocation2 + $0x1b8] sm:$0xff]
    %v3535 = vld [vmem:[#allocation2 + $0x1c0] sm:$0xff]
    %v3536 = vld [vmem:[#allocation2 + $0x1c8] sm:$0xff]
    %v3537 = vld [vmem:[#allocation2 + $0x1d0] sm:$0xff]
    %v3538 = vld [vmem:[#allocation2 + $0x1d8] sm:$0xff]
    %v3539 = vld [vmem:[#allocation2 + $0x1e0] sm:$0xff]
    %v3540 = vld [vmem:[#allocation2 + $0x1e8] sm:$0xff]
    %v3541 = vld [vmem:[%s2472] sm:$0xf]
    %v3542 = vld [vmem:[%s2472 + $0x4] sm:$0xf]
    %v3543 = vld [vmem:[%s2472 + $0x8] sm:$0xf]
    %v3544 = vld [vmem:[%s2472 + $0xc] sm:$0xf]
    %v3545 = vld [vmem:[%s2472 + $0x10] sm:$0xf]
    %v3546 = vld [vmem:[%s2472 + $0x14] sm:$0xf]
    %v3547 = vld [vmem:[%s2472 + $0x18] sm:$0xf]
    %v3548 = vld [vmem:[%s2472 + $0x1c] sm:$0xf]
    %v3549 = vld [vmem:[%s2472 + $0x20] sm:$0xf]
    %v3550 = vld [vmem:[%s2472 + $0x24] sm:$0xf]
    %v3551 = vld [vmem:[%s2472 + $0x28] sm:$0xf]
    %v3552 = vld [vmem:[%s2472 + $0x2c] sm:$0xf]
    %v3553 = vld [vmem:[%s2472 + $0x30] sm:$0xf]
    %v3554 = vld [vmem:[%s2472 + $0x34] sm:$0xf]
    %v3555 = vld [vmem:[%s2472 + $0x38] sm:$0xf]
    %v3556 = vld [vmem:[%s2472 + $0x3c] sm:$0xf]
    %v3557 = vld [vmem:[%s2472 + $0x40] sm:$0xf]
    %v3558 = vld [vmem:[%s2472 + $0x44] sm:$0xf]
    %v3559 = vld [vmem:[%s2472 + $0x48] sm:$0xf]
    %v3560 = vld [vmem:[%s2472 + $0x4c] sm:$0xf]
    %v3561 = vld [vmem:[%s2472 + $0x50] sm:$0xf]
    %v3562 = vld [vmem:[%s2472 + $0x54] sm:$0xf]
    %v3563 = vld [vmem:[%s2472 + $0x58] sm:$0xf]
    %v3564 = vld [vmem:[%s2472 + $0x5c] sm:$0xf]
    %v3565 = vld [vmem:[%s2472 + $0x60] sm:$0xf]
    %v3566 = vld [vmem:[%s2472 + $0x64] sm:$0xf]
    %v3567 = vld [vmem:[%s2472 + $0x68] sm:$0xf]
    %v3568 = vld [vmem:[%s2472 + $0x6c] sm:$0xf]
    %v3569 = vld [vmem:[%s2472 + $0x70] sm:$0xf]
    %v3570 = vld [vmem:[%s2472 + $0x74] sm:$0xf]
    %v3571 = vld [vmem:[%s2472 + $0x78] sm:$0xf]
    %v3572 = vld [vmem:[%s2472 + $0x7c] sm:$0xf]
    %v3573 = vld [vmem:[%s2472 + $0x80] sm:$0xf]
    %v3574 = vld [vmem:[%s2472 + $0x84] sm:$0xf]
    %v3575 = vld [vmem:[%s2472 + $0x88] sm:$0xf]
    %v3576 = vld [vmem:[%s2472 + $0x8c] sm:$0xf]
    %v3577 = vld [vmem:[%s2472 + $0x90] sm:$0xf]
    %v3578 = vld [vmem:[%s2472 + $0x94] sm:$0xf]
    %v3579 = vld [vmem:[%s2472 + $0x98] sm:$0xf]
    %v3580 = vld [vmem:[%s2472 + $0x9c] sm:$0xf]
    %v3581 = vld [vmem:[%s2472 + $0xa0] sm:$0xf]
    %v3582 = vld [vmem:[%s2472 + $0xa4] sm:$0xf]
    %v3583 = vld [vmem:[%s2472 + $0xa8] sm:$0xf]
    %v3584 = vld [vmem:[%s2472 + $0xac] sm:$0xf]
    %v3585 = vld [vmem:[%s2472 + $0xb0] sm:$0xf]
    %v3586 = vld [vmem:[%s2472 + $0xb4] sm:$0xf]
    %v3587 = vld [vmem:[%s2472 + $0xb8] sm:$0xf]
    %v3588 = vld [vmem:[%s2472 + $0xbc] sm:$0xf]
    %v3637 = vunpack.c.l.b16 %v3541
    %v3638 = vunpack.c.l.b16 %v3542
    %v3639 = vunpack.c.l.b16 %v3543
    %v3640 = vunpack.c.l.b16 %v3544
    %v3641 = vunpack.c.l.b16 %v3545
    %v3642 = vunpack.c.l.b16 %v3546
    %v3643 = vunpack.c.l.b16 %v3547
    %v3644 = vunpack.c.l.b16 %v3548
    %v3645 = vunpack.c.l.b16 %v3549
    %v3646 = vunpack.c.l.b16 %v3550
    %v3647 = vunpack.c.l.b16 %v3551
    %v3648 = vunpack.c.l.b16 %v3552
    %v3649 = vunpack.c.l.b16 %v3553
    %v3650 = vunpack.c.l.b16 %v3554
    %v3651 = vunpack.c.l.b16 %v3555
    %v3652 = vunpack.c.l.b16 %v3556
    %v3653 = vunpack.c.l.b16 %v3557
    %v3654 = vunpack.c.l.b16 %v3558
    %v3655 = vunpack.c.l.b16 %v3559
    %v3656 = vunpack.c.l.b16 %v3560
    %v3657 = vunpack.c.l.b16 %v3561
    %v3658 = vunpack.c.l.b16 %v3562
    %v3659 = vunpack.c.l.b16 %v3563
    %v3660 = vunpack.c.l.b16 %v3564
    %v3661 = vunpack.c.l.b16 %v3565
    %v3662 = vunpack.c.l.b16 %v3566
    %v3663 = vunpack.c.l.b16 %v3567
    %v3664 = vunpack.c.l.b16 %v3568
    %v3665 = vunpack.c.l.b16 %v3569
    %v3666 = vunpack.c.l.b16 %v3570
    %v3667 = vunpack.c.l.b16 %v3571
    %v3668 = vunpack.c.l.b16 %v3572
    %v3669 = vunpack.c.l.b16 %v3573
    %v3670 = vunpack.c.l.b16 %v3574
    %v3671 = vunpack.c.l.b16 %v3575
    %v3672 = vunpack.c.l.b16 %v3576
    %v3673 = vunpack.c.l.b16 %v3577
    %v3674 = vunpack.c.l.b16 %v3578
    %v3675 = vunpack.c.l.b16 %v3579
    %v3676 = vunpack.c.l.b16 %v3580
    %v3677 = vunpack.c.l.b16 %v3581
    %v3678 = vunpack.c.l.b16 %v3582
    %v3679 = vunpack.c.l.b16 %v3583
    %v3680 = vunpack.c.l.b16 %v3584
    %v3681 = vunpack.c.l.b16 %v3585
    %v3682 = vunpack.c.l.b16 %v3586
    %v3683 = vunpack.c.l.b16 %v3587
    %v3684 = vunpack.c.l.b16 %v3588
    %v3685 = vpack.c.b16 %v3638, %v3637
    %v3686 = vpack.c.b16 %v3640, %v3639
    %v3687 = vpack.c.b16 %v3642, %v3641
    %v3688 = vpack.c.b16 %v3644, %v3643
    %v3689 = vpack.c.b16 %v3646, %v3645
    %v3690 = vpack.c.b16 %v3648, %v3647
    %v3691 = vpack.c.b16 %v3650, %v3649
    %v3692 = vpack.c.b16 %v3652, %v3651
    %v3693 = vpack.c.b16 %v3654, %v3653
    %v3694 = vpack.c.b16 %v3656, %v3655
    %v3695 = vpack.c.b16 %v3658, %v3657
    %v3696 = vpack.c.b16 %v3660, %v3659
    %v3697 = vpack.c.b16 %v3662, %v3661
    %v3698 = vpack.c.b16 %v3664, %v3663
    %v3699 = vpack.c.b16 %v3666, %v3665
    %v3700 = vpack.c.b16 %v3668, %v3667
    %v3701 = vpack.c.b16 %v3670, %v3669
    %v3702 = vpack.c.b16 %v3672, %v3671
    %v3703 = vpack.c.b16 %v3674, %v3673
    %v3704 = vpack.c.b16 %v3676, %v3675
    %v3705 = vpack.c.b16 %v3678, %v3677
    %v3706 = vpack.c.b16 %v3680, %v3679
    %v3707 = vpack.c.b16 %v3682, %v3681
    %v3708 = vpack.c.b16 %v3684, %v3683
    %3733 = vmatpush.bf16.msra.mxu0 %v3692
    %3734 = vmatpush.bf16.msra.mxu0 %v3691
    %3735 = vmatpush.bf16.msra.mxu0 %v3690
    %3736 = vmatpush.bf16.msra.mxu0 %v3689
    %3737 = vmatpush.bf16.msra.mxu0 %v3688
    %3738 = vmatpush.bf16.msra.mxu0 %v3687
    %3739 = vmatpush.bf16.msra.mxu0 %v3686
    %3740 = vmatpush.bf16.msra.mxu0 %v3685
    %3741 = vmatmul.bf16.gmra.mxu0 %v966
    %v3742 = vpop.f32.mrf.mxu0
    %v3743 = vadd.f32 0.0, %v3742
    %v3744 = vpop.f32.mrf.mxu0
    %v3745 = vadd.f32 0.0, %v3744
    %3746 = vmatmul.bf16.gmra.mxu0 %v967
    %v3747 = vpop.f32.mrf.mxu0
    %v3748 = vadd.f32 0.0, %v3747
    %v3749 = vpop.f32.mrf.mxu0
    %v3750 = vadd.f32 0.0, %v3749
    %3751 = vmatmul.bf16.gmra.mxu0 %v968
    %v3752 = vpop.f32.mrf.mxu0
    %v3753 = vadd.f32 0.0, %v3752
    %v3754 = vpop.f32.mrf.mxu0
    %v3755 = vadd.f32 0.0, %v3754
    %3756 = vmatmul.bf16.gmra.mxu0 %v969
    %v3757 = vpop.f32.mrf.mxu0
    %v3758 = vadd.f32 0.0, %v3757
    %v3759 = vpop.f32.mrf.mxu0
    %v3760 = vadd.f32 0.0, %v3759
    %3761 = vmatmul.bf16.gmra.mxu0 %v970
    %v3762 = vpop.f32.mrf.mxu0
    %v3763 = vadd.f32 0.0, %v3762
    %v3764 = vpop.f32.mrf.mxu0
    %v3765 = vadd.f32 0.0, %v3764
    %3766 = vmatmul.bf16.gmra.mxu0 %v971
    %v3767 = vpop.f32.mrf.mxu0
    %v3768 = vadd.f32 0.0, %v3767
    %v3769 = vpop.f32.mrf.mxu0
    %v3770 = vadd.f32 0.0, %v3769
    %3771 = vmatmul.bf16.gmra.mxu0 %v972
    %v3772 = vpop.f32.mrf.mxu0
    %v3773 = vadd.f32 0.0, %v3772
    %v3774 = vpop.f32.mrf.mxu0
    %v3775 = vadd.f32 0.0, %v3774
    %3776 = vmatmul.bf16.gmra.mxu0 %v973
    %v3777 = vpop.f32.mrf.mxu0
    %v3778 = vadd.f32 0.0, %v3777
    %v3779 = vpop.f32.mrf.mxu0
    %v3780 = vadd.f32 0.0, %v3779
    %3781 = vmatmul.bf16.gmra.mxu0 %v974
    %v3782 = vpop.f32.mrf.mxu0
    %v3783 = vadd.f32 0.0, %v3782
    %v3784 = vpop.f32.mrf.mxu0
    %v3785 = vadd.f32 0.0, %v3784
    %3786 = vmatmul.bf16.gmra.mxu0 %v975
    %v3787 = vpop.f32.mrf.mxu0
    %v3788 = vadd.f32 0.0, %v3787
    %v3789 = vpop.f32.mrf.mxu0
    %v3790 = vadd.f32 0.0, %v3789
    %3791 = vmatmul.bf16.gmra.mxu0 %v976
    %v3792 = vpop.f32.mrf.mxu0
    %v3793 = vadd.f32 0.0, %v3792
    %v3794 = vpop.f32.mrf.mxu0
    %v3795 = vadd.f32 0.0, %v3794
    %3796 = vmatmul.bf16.gmra.mxu0 %v977
    %v3797 = vpop.f32.mrf.mxu0
    %v3798 = vadd.f32 0.0, %v3797
    %v3799 = vpop.f32.mrf.mxu0
    %v3800 = vadd.f32 0.0, %v3799
    %3801 = vmatmul.bf16.gmra.mxu0 %v978
    %v3802 = vpop.f32.mrf.mxu0
    %v3803 = vadd.f32 0.0, %v3802
    %v3804 = vpop.f32.mrf.mxu0
    %v3805 = vadd.f32 0.0, %v3804
    %3806 = vmatmul.bf16.gmra.mxu0 %v979
    %v3807 = vpop.f32.mrf.mxu0
    %v3808 = vadd.f32 0.0, %v3807
    %v3809 = vpop.f32.mrf.mxu0
    %v3810 = vadd.f32 0.0, %v3809
    %3811 = vmatmul.bf16.gmra.mxu0 %v980
    %v3812 = vpop.f32.mrf.mxu0
    %v3813 = vadd.f32 0.0, %v3812
    %v3814 = vpop.f32.mrf.mxu0
    %v3815 = vadd.f32 0.0, %v3814
    %3816 = vdwg.mxu0
    %3817 = vmatpush.bf16.msra.mxu0 %v3700
    %3818 = vmatpush.bf16.msra.mxu0 %v3699
    %3819 = vmatpush.bf16.msra.mxu0 %v3698
    %3820 = vmatpush.bf16.msra.mxu0 %v3697
    %3821 = vmatpush.bf16.msra.mxu0 %v3696
    %3822 = vmatpush.bf16.msra.mxu0 %v3695
    %3823 = vmatpush.bf16.msra.mxu0 %v3694
    %3824 = vmatpush.bf16.msra.mxu0 %v3693
    %3825 = vmatmul.bf16.gmra.mxu0 %v675
    %v3826 = vpop.f32.mrf.mxu0
    %v3827 = vadd.f32 %v3743, %v3826
    %v3828 = vpop.f32.mrf.mxu0
    %v3829 = vadd.f32 %v3745, %v3828
    %3830 = vmatmul.bf16.gmra.mxu0 %v676
    %v3831 = vpop.f32.mrf.mxu0
    %v3832 = vadd.f32 %v3748, %v3831
    %v3833 = vpop.f32.mrf.mxu0
    %v3834 = vadd.f32 %v3750, %v3833
    %3835 = vmatmul.bf16.gmra.mxu0 %v677
    %v3836 = vpop.f32.mrf.mxu0
    %v3837 = vadd.f32 %v3753, %v3836
    %v3838 = vpop.f32.mrf.mxu0
    %v3839 = vadd.f32 %v3755, %v3838
    %3840 = vmatmul.bf16.gmra.mxu0 %v678
    %v3841 = vpop.f32.mrf.mxu0
    %v3842 = vadd.f32 %v3758, %v3841
    %v3843 = vpop.f32.mrf.mxu0
    %v3844 = vadd.f32 %v3760, %v3843
    %3845 = vmatmul.bf16.gmra.mxu0 %v679
    %v3846 = vpop.f32.mrf.mxu0
    %v3847 = vadd.f32 %v3763, %v3846
    %v3848 = vpop.f32.mrf.mxu0
    %v3849 = vadd.f32 %v3765, %v3848
    %3850 = vmatmul.bf16.gmra.mxu0 %v680
    %v3851 = vpop.f32.mrf.mxu0
    %v3852 = vadd.f32 %v3768, %v3851
    %v3853 = vpop.f32.mrf.mxu0
    %v3854 = vadd.f32 %v3770, %v3853
    %3855 = vmatmul.bf16.gmra.mxu0 %v681
    %v3856 = vpop.f32.mrf.mxu0
    %v3857 = vadd.f32 %v3773, %v3856
    %v3858 = vpop.f32.mrf.mxu0
    %v3859 = vadd.f32 %v3775, %v3858
    %3860 = vmatmul.bf16.gmra.mxu0 %v682
    %v3861 = vpop.f32.mrf.mxu0
    %v3862 = vadd.f32 %v3778, %v3861
    %v3863 = vpop.f32.mrf.mxu0
    %v3864 = vadd.f32 %v3780, %v3863
    %3865 = vmatmul.bf16.gmra.mxu0 %v683
    %v3866 = vpop.f32.mrf.mxu0
    %v3867 = vadd.f32 %v3783, %v3866
    %v3868 = vpop.f32.mrf.mxu0
    %v3869 = vadd.f32 %v3785, %v3868
    %3870 = vmatmul.bf16.gmra.mxu0 %v684
    %v3871 = vpop.f32.mrf.mxu0
    %v3872 = vadd.f32 %v3788, %v3871
    %v3873 = vpop.f32.mrf.mxu0
    %v3874 = vadd.f32 %v3790, %v3873
    %3875 = vmatmul.bf16.gmra.mxu0 %v685
    %v3876 = vpop.f32.mrf.mxu0
    %v3877 = vadd.f32 %v3793, %v3876
    %v3878 = vpop.f32.mrf.mxu0
    %v3879 = vadd.f32 %v3795, %v3878
    %3880 = vmatmul.bf16.gmra.mxu0 %v686
    %v3881 = vpop.f32.mrf.mxu0
    %v3882 = vadd.f32 %v3798, %v3881
    %v3883 = vpop.f32.mrf.mxu0
    %v3884 = vadd.f32 %v3800, %v3883
    %3885 = vmatmul.bf16.gmra.mxu0 %v687
    %v3886 = vpop.f32.mrf.mxu0
    %v3887 = vadd.f32 %v3803, %v3886
    %v3888 = vpop.f32.mrf.mxu0
    %v3889 = vadd.f32 %v3805, %v3888
    %3890 = vmatmul.bf16.gmra.mxu0 %v688
    %v3891 = vpop.f32.mrf.mxu0
    %v3892 = vadd.f32 %v3808, %v3891
    %v3893 = vpop.f32.mrf.mxu0
    %v3894 = vadd.f32 %v3810, %v3893
    %3895 = vmatmul.bf16.gmra.mxu0 %v689
    %v3896 = vpop.f32.mrf.mxu0
    %v3897 = vadd.f32 %v3813, %v3896
    %v3898 = vpop.f32.mrf.mxu0
    %v3899 = vadd.f32 %v3815, %v3898
    %3900 = vdwg.mxu0
    %3901 = vmatpush.bf16.msra.mxu0 %v3708
    %3902 = vmatpush.bf16.msra.mxu0 %v3707
    %3903 = vmatpush.bf16.msra.mxu0 %v3706
    %3904 = vmatpush.bf16.msra.mxu0 %v3705
    %3905 = vmatpush.bf16.msra.mxu0 %v3704
    %3906 = vmatpush.bf16.msra.mxu0 %v3703
    %3907 = vmatpush.bf16.msra.mxu0 %v3702
    %3908 = vmatpush.bf16.msra.mxu0 %v3701
    %3909 = vmatmul.bf16.gmra.mxu0 %v1097
    %v3910 = vpop.f32.mrf.mxu0
    %v3911 = vadd.f32 %v3827, %v3910
    %v3912 = vpop.f32.mrf.mxu0
    %v3913 = vadd.f32 %v3829, %v3912
    %3914 = vmatmul.bf16.gmra.mxu0 %v1098
    %v3915 = vpop.f32.mrf.mxu0
    %v3916 = vadd.f32 %v3832, %v3915
    %v3917 = vpop.f32.mrf.mxu0
    %v3918 = vadd.f32 %v3834, %v3917
    %3919 = vmatmul.bf16.gmra.mxu0 %v1099
    %v3920 = vpop.f32.mrf.mxu0
    %v3921 = vadd.f32 %v3837, %v3920
    %v3922 = vpop.f32.mrf.mxu0
    %v3923 = vadd.f32 %v3839, %v3922
    %3924 = vmatmul.bf16.gmra.mxu0 %v1100
    %v3925 = vpop.f32.mrf.mxu0
    %v3926 = vadd.f32 %v3842, %v3925
    %v3927 = vpop.f32.mrf.mxu0
    %v3928 = vadd.f32 %v3844, %v3927
    %3929 = vmatmul.bf16.gmra.mxu0 %v1101
    %v3930 = vpop.f32.mrf.mxu0
    %v3931 = vadd.f32 %v3847, %v3930
    %v3932 = vpop.f32.mrf.mxu0
    %v3933 = vadd.f32 %v3849, %v3932
    %3934 = vmatmul.bf16.gmra.mxu0 %v1102
    %v3935 = vpop.f32.mrf.mxu0
    %v3936 = vadd.f32 %v3852, %v3935
    %v3937 = vpop.f32.mrf.mxu0
    %v3938 = vadd.f32 %v3854, %v3937
    %3939 = vmatmul.bf16.gmra.mxu0 %v1103
    %v3940 = vpop.f32.mrf.mxu0
    %v3941 = vadd.f32 %v3857, %v3940
    %v3942 = vpop.f32.mrf.mxu0
    %v3943 = vadd.f32 %v3859, %v3942
    %3944 = vmatmul.bf16.gmra.mxu0 %v1104
    %v3945 = vpop.f32.mrf.mxu0
    %v3946 = vadd.f32 %v3862, %v3945
    %v3947 = vpop.f32.mrf.mxu0
    %v3948 = vadd.f32 %v3864, %v3947
    %3949 = vmatmul.bf16.gmra.mxu0 %v1105
    %v3950 = vpop.f32.mrf.mxu0
    %v3951 = vadd.f32 %v3867, %v3950
    %v3952 = vpop.f32.mrf.mxu0
    %v3953 = vadd.f32 %v3869, %v3952
    %3954 = vmatmul.bf16.gmra.mxu0 %v1106
    %v3955 = vpop.f32.mrf.mxu0
    %v3956 = vadd.f32 %v3872, %v3955
    %v3957 = vpop.f32.mrf.mxu0
    %v3958 = vadd.f32 %v3874, %v3957
    %3959 = vmatmul.bf16.gmra.mxu0 %v1107
    %v3960 = vpop.f32.mrf.mxu0
    %v3961 = vadd.f32 %v3877, %v3960
    %v3962 = vpop.f32.mrf.mxu0
    %v3963 = vadd.f32 %v3879, %v3962
    %3964 = vmatmul.bf16.gmra.mxu0 %v1108
    %v3965 = vpop.f32.mrf.mxu0
    %v3966 = vadd.f32 %v3882, %v3965
    %v3967 = vpop.f32.mrf.mxu0
    %v3968 = vadd.f32 %v3884, %v3967
    %3969 = vmatmul.bf16.gmra.mxu0 %v1109
    %v3970 = vpop.f32.mrf.mxu0
    %v3971 = vadd.f32 %v3887, %v3970
    %v3972 = vpop.f32.mrf.mxu0
    %v3973 = vadd.f32 %v3889, %v3972
    %3974 = vmatmul.bf16.gmra.mxu0 %v1110
    %v3975 = vpop.f32.mrf.mxu0
    %v3976 = vadd.f32 %v3892, %v3975
    %v3977 = vpop.f32.mrf.mxu0
    %v3978 = vadd.f32 %v3894, %v3977
    %3979 = vmatmul.bf16.gmra.mxu0 %v1111
    %v3980 = vpop.f32.mrf.mxu0
    %v3981 = vadd.f32 %v3897, %v3980
    %v3982 = vpop.f32.mrf.mxu0
    %v3983 = vadd.f32 %v3899, %v3982
    %3984 = vdwg.mxu0
    %v3985 = vadd.f32 %v3511, %v3911
    %v3986 = vadd.f32 %v3512, %v3913
    %v3987 = vadd.f32 %v3513, %v3916
    %v3988 = vadd.f32 %v3514, %v3918
    %v3989 = vadd.f32 %v3515, %v3921
    %v3990 = vadd.f32 %v3516, %v3923
    %v3991 = vadd.f32 %v3517, %v3926
    %v3992 = vadd.f32 %v3518, %v3928
    %v3993 = vadd.f32 %v3519, %v3931
    %v3994 = vadd.f32 %v3520, %v3933
    %v3995 = vadd.f32 %v3521, %v3936
    %v3996 = vadd.f32 %v3522, %v3938
    %v3997 = vadd.f32 %v3523, %v3941
    %v3998 = vadd.f32 %v3524, %v3943
    %v3999 = vadd.f32 %v3525, %v3946
    %v4000 = vadd.f32 %v3526, %v3948
    %v4001 = vadd.f32 %v3527, %v3951
    %v4002 = vadd.f32 %v3528, %v3953
    %v4003 = vadd.f32 %v3529, %v3956
    %v4004 = vadd.f32 %v3530, %v3958
    %v4005 = vadd.f32 %v3531, %v3961
    %v4006 = vadd.f32 %v3532, %v3963
    %v4007 = vadd.f32 %v3533, %v3966
    %v4008 = vadd.f32 %v3534, %v3968
    %v4009 = vadd.f32 %v3535, %v3971
    %v4010 = vadd.f32 %v3536, %v3973
    %v4011 = vadd.f32 %v3537, %v3976
    %v4012 = vadd.f32 %v3538, %v3978
    %v4013 = vadd.f32 %v3539, %v3981
    %v4014 = vadd.f32 %v3540, %v3983
    %4015 = vst [vmem:[#allocation2 + $0x100] sm:$0xff] %v3985
    %4016 = vst [vmem:[#allocation2 + $0x108] sm:$0xff] %v3986
    %4017 = vst [vmem:[#allocation2 + $0x110] sm:$0xff] %v3987
    %4018 = vst [vmem:[#allocation2 + $0x118] sm:$0xff] %v3988
    %4019 = vst [vmem:[#allocation2 + $0x120] sm:$0xff] %v3989
    %4020 = vst [vmem:[#allocation2 + $0x128] sm:$0xff] %v3990
    %4021 = vst [vmem:[#allocation2 + $0x130] sm:$0xff] %v3991
    %4022 = vst [vmem:[#allocation2 + $0x138] sm:$0xff] %v3992
    %4023 = vst [vmem:[#allocation2 + $0x140] sm:$0xff] %v3993
    %4024 = vst [vmem:[#allocation2 + $0x148] sm:$0xff] %v3994
    %4025 = vst [vmem:[#allocation2 + $0x150] sm:$0xff] %v3995
    %4026 = vst [vmem:[#allocation2 + $0x158] sm:$0xff] %v3996
    %4027 = vst [vmem:[#allocation2 + $0x160] sm:$0xff] %v3997
    %4028 = vst [vmem:[#allocation2 + $0x168] sm:$0xff] %v3998
    %4029 = vst [vmem:[#allocation2 + $0x170] sm:$0xff] %v3999
    %4030 = vst [vmem:[#allocation2 + $0x178] sm:$0xff] %v4000
    %4031 = vst [vmem:[#allocation2 + $0x180] sm:$0xff] %v4001
    %4032 = vst [vmem:[#allocation2 + $0x188] sm:$0xff] %v4002
    %4033 = vst [vmem:[#allocation2 + $0x190] sm:$0xff] %v4003
    %4034 = vst [vmem:[#allocation2 + $0x198] sm:$0xff] %v4004
    %4035 = vst [vmem:[#allocation2 + $0x1a0] sm:$0xff] %v4005
    %4036 = vst [vmem:[#allocation2 + $0x1a8] sm:$0xff] %v4006
    %4037 = vst [vmem:[#allocation2 + $0x1b0] sm:$0xff] %v4007
    %4038 = vst [vmem:[#allocation2 + $0x1b8] sm:$0xff] %v4008
    %4039 = vst [vmem:[#allocation2 + $0x1c0] sm:$0xff] %v4009
    %4040 = vst [vmem:[#allocation2 + $0x1c8] sm:$0xff] %v4010
    %4041 = vst [vmem:[#allocation2 + $0x1d0] sm:$0xff] %v4011
    %4042 = vst [vmem:[#allocation2 + $0x1d8] sm:$0xff] %v4012
    %4043 = vst [vmem:[#allocation2 + $0x1e0] sm:$0xff] %v4013
    %4044 = vst [vmem:[#allocation2 + $0x1e8] sm:$0xff] %v4014
    %v4045 = vld [vmem:[#allocation2] sm:$0xff]
    %v4046 = vld [vmem:[#allocation2 + $0x8] sm:$0xff]
    %v4047 = vld [vmem:[#allocation2 + $0x10] sm:$0xff]
    %v4048 = vld [vmem:[#allocation2 + $0x18] sm:$0xff]
    %v4049 = vld [vmem:[#allocation2 + $0x20] sm:$0xff]
    %v4050 = vld [vmem:[#allocation2 + $0x28] sm:$0xff]
    %v4051 = vld [vmem:[#allocation2 + $0x30] sm:$0xff]
    %v4052 = vld [vmem:[#allocation2 + $0x38] sm:$0xff]
    %v4053 = vld [vmem:[#allocation2 + $0x40] sm:$0xff]
    %v4054 = vld [vmem:[#allocation2 + $0x48] sm:$0xff]
    %v4055 = vld [vmem:[#allocation2 + $0x50] sm:$0xff]
    %v4056 = vld [vmem:[#allocation2 + $0x58] sm:$0xff]
    %v4057 = vld [vmem:[#allocation2 + $0x60] sm:$0xff]
    %v4058 = vld [vmem:[#allocation2 + $0x68] sm:$0xff]
    %v4059 = vld [vmem:[#allocation2 + $0x70] sm:$0xff]
    %v4060 = vld [vmem:[#allocation2 + $0x78] sm:$0xff]
    %v4061 = vld [vmem:[#allocation2 + $0x80] sm:$0xff]
    %v4062 = vld [vmem:[#allocation2 + $0x88] sm:$0xff]
    %v4063 = vld [vmem:[#allocation2 + $0x90] sm:$0xff]
    %v4064 = vld [vmem:[#allocation2 + $0x98] sm:$0xff]
    %v4065 = vld [vmem:[#allocation2 + $0xa0] sm:$0xff]
    %v4066 = vld [vmem:[#allocation2 + $0xa8] sm:$0xff]
    %v4067 = vld [vmem:[#allocation2 + $0xb0] sm:$0xff]
    %v4068 = vld [vmem:[#allocation2 + $0xb8] sm:$0xff]
    %v4069 = vld [vmem:[#allocation2 + $0xc0] sm:$0xff]
    %v4070 = vld [vmem:[#allocation2 + $0xc8] sm:$0xff]
    %v4071 = vld [vmem:[#allocation2 + $0xd0] sm:$0xff]
    %v4072 = vld [vmem:[#allocation2 + $0xd8] sm:$0xff]
    %v4073 = vld [vmem:[#allocation2 + $0xe0] sm:$0xff]
    %v4074 = vld [vmem:[#allocation2 + $0xe8] sm:$0xff]
    %v4075 = vld [vmem:[#allocation2 + $0xf0] sm:$0xff]
    %v4076 = vld [vmem:[#allocation2 + $0xf8] sm:$0xff]
    %v4077 = vld [vmem:[#allocation2 + $0x100] sm:$0xff]
    %v4078 = vld [vmem:[#allocation2 + $0x108] sm:$0xff]
    %v4079 = vld [vmem:[#allocation2 + $0x110] sm:$0xff]
    %v4080 = vld [vmem:[#allocation2 + $0x118] sm:$0xff]
    %v4081 = vld [vmem:[#allocation2 + $0x120] sm:$0xff]
    %v4082 = vld [vmem:[#allocation2 + $0x128] sm:$0xff]
    %v4083 = vld [vmem:[#allocation2 + $0x130] sm:$0xff]
    %v4084 = vld [vmem:[#allocation2 + $0x138] sm:$0xff]
    %v4085 = vld [vmem:[#allocation2 + $0x140] sm:$0xff]
    %v4086 = vld [vmem:[#allocation2 + $0x148] sm:$0xff]
    %v4087 = vld [vmem:[#allocation2 + $0x150] sm:$0xff]
    %v4088 = vld [vmem:[#allocation2 + $0x158] sm:$0xff]
    %v4089 = vld [vmem:[#allocation2 + $0x160] sm:$0xff]
    %v4090 = vld [vmem:[#allocation2 + $0x168] sm:$0xff]
    %v4091 = vld [vmem:[#allocation2 + $0x170] sm:$0xff]
    %v4092 = vld [vmem:[#allocation2 + $0x178] sm:$0xff]
    %v4093 = vld [vmem:[#allocation2 + $0x180] sm:$0xff]
    %v4094 = vld [vmem:[#allocation2 + $0x188] sm:$0xff]
    %v4095 = vld [vmem:[#allocation2 + $0x190] sm:$0xff]
    %v4096 = vld [vmem:[#allocation2 + $0x198] sm:$0xff]
    %v4097 = vld [vmem:[#allocation2 + $0x1a0] sm:$0xff]
    %v4098 = vld [vmem:[#allocation2 + $0x1a8] sm:$0xff]
    %v4099 = vld [vmem:[#allocation2 + $0x1b0] sm:$0xff]
    %v4100 = vld [vmem:[#allocation2 + $0x1b8] sm:$0xff]
    %v4101 = vld [vmem:[#allocation2 + $0x1c0] sm:$0xff]
    %v4102 = vld [vmem:[#allocation2 + $0x1c8] sm:$0xff]
    %v4103 = vld [vmem:[#allocation2 + $0x1d0] sm:$0xff]
    %v4104 = vld [vmem:[#allocation2 + $0x1d8] sm:$0xff]
    %v4105 = vld [vmem:[#allocation2 + $0x1e0] sm:$0xff]
    %v4106 = vld [vmem:[#allocation2 + $0x1e8] sm:$0xff]
    %v4107 = vld [vmem:[#allocation2 + $0x1f0] sm:$0xff]
    %v4108 = vld [vmem:[#allocation2 + $0x1f8] sm:$0xff]
    %v4109 = vld [vmem:[%s4] sm:$0x1]
    %v4111 = vperm.slane %v4109, 0
    %v4113 = vadd.f32 %v4045, %v4111
    %v4114 = vadd.f32 %v4046, %v4111
    %v4115 = vadd.f32 %v4047, %v4111
    %v4116 = vadd.f32 %v4048, %v4111
    %v4117 = vadd.f32 %v4049, %v4111
    %v4118 = vadd.f32 %v4050, %v4111
    %v4119 = vadd.f32 %v4051, %v4111
    %v4120 = vadd.f32 %v4052, %v4111
    %v4121 = vadd.f32 %v4053, %v4111
    %v4122 = vadd.f32 %v4054, %v4111
    %v4123 = vadd.f32 %v4055, %v4111
    %v4124 = vadd.f32 %v4056, %v4111
    %v4125 = vadd.f32 %v4057, %v4111
    %v4126 = vadd.f32 %v4058, %v4111
    %v4127 = vadd.f32 %v4059, %v4111
    %v4128 = vadd.f32 %v4060, %v4111
    %v4129 = vadd.f32 %v4061, %v4111
    %v4130 = vadd.f32 %v4062, %v4111
    %v4131 = vadd.f32 %v4063, %v4111
    %v4132 = vadd.f32 %v4064, %v4111
    %v4133 = vadd.f32 %v4065, %v4111
    %v4134 = vadd.f32 %v4066, %v4111
    %v4135 = vadd.f32 %v4067, %v4111
    %v4136 = vadd.f32 %v4068, %v4111
    %v4137 = vadd.f32 %v4069, %v4111
    %v4138 = vadd.f32 %v4070, %v4111
    %v4139 = vadd.f32 %v4071, %v4111
    %v4140 = vadd.f32 %v4072, %v4111
    %v4141 = vadd.f32 %v4073, %v4111
    %v4142 = vadd.f32 %v4074, %v4111
    %v4143 = vadd.f32 %v4075, %v4111
    %v4144 = vadd.f32 %v4076, %v4111
    %v4145 = vadd.f32 %v4077, %v4111
    %v4146 = vadd.f32 %v4078, %v4111
    %v4147 = vadd.f32 %v4079, %v4111
    %v4148 = vadd.f32 %v4080, %v4111
    %v4149 = vadd.f32 %v4081, %v4111
    %v4150 = vadd.f32 %v4082, %v4111
    %v4151 = vadd.f32 %v4083, %v4111
    %v4152 = vadd.f32 %v4084, %v4111
    %v4153 = vadd.f32 %v4085, %v4111
    %v4154 = vadd.f32 %v4086, %v4111
    %v4155 = vadd.f32 %v4087, %v4111
    %v4156 = vadd.f32 %v4088, %v4111
    %v4157 = vadd.f32 %v4089, %v4111
    %v4158 = vadd.f32 %v4090, %v4111
    %v4159 = vadd.f32 %v4091, %v4111
    %v4160 = vadd.f32 %v4092, %v4111
    %v4161 = vadd.f32 %v4093, %v4111
    %v4162 = vadd.f32 %v4094, %v4111
    %v4163 = vadd.f32 %v4095, %v4111
    %v4164 = vadd.f32 %v4096, %v4111
    %v4165 = vadd.f32 %v4097, %v4111
    %v4166 = vadd.f32 %v4098, %v4111
    %v4167 = vadd.f32 %v4099, %v4111
    %v4168 = vadd.f32 %v4100, %v4111
    %v4169 = vadd.f32 %v4101, %v4111
    %v4170 = vadd.f32 %v4102, %v4111
    %v4171 = vadd.f32 %v4103, %v4111
    %v4172 = vadd.f32 %v4104, %v4111
    %v4173 = vadd.f32 %v4105, %v4111
    %v4174 = vadd.f32 %v4106, %v4111
    %v4175 = vadd.f32 %v4107, %v4111
    %v4176 = vadd.f32 %v4108, %v4111
    %v4177 = vmax.f32 %v4113, 0.0
    %v4178 = vmax.f32 %v4114, 0.0
    %v4179 = vmax.f32 %v4115, 0.0
    %v4180 = vmax.f32 %v4116, 0.0
    %v4181 = vmax.f32 %v4117, 0.0
    %v4182 = vmax.f32 %v4118, 0.0
    %v4183 = vmax.f32 %v4119, 0.0
    %v4184 = vmax.f32 %v4120, 0.0
    %v4185 = vmax.f32 %v4121, 0.0
    %v4186 = vmax.f32 %v4122, 0.0
    %v4187 = vmax.f32 %v4123, 0.0
    %v4188 = vmax.f32 %v4124, 0.0
    %v4189 = vmax.f32 %v4125, 0.0
    %v4190 = vmax.f32 %v4126, 0.0
    %v4191 = vmax.f32 %v4127, 0.0
    %v4192 = vmax.f32 %v4128, 0.0
    %v4193 = vmax.f32 %v4129, 0.0
    %v4194 = vmax.f32 %v4130, 0.0
    %v4195 = vmax.f32 %v4131, 0.0
    %v4196 = vmax.f32 %v4132, 0.0
    %v4197 = vmax.f32 %v4133, 0.0
    %v4198 = vmax.f32 %v4134, 0.0
    %v4199 = vmax.f32 %v4135, 0.0
    %v4200 = vmax.f32 %v4136, 0.0
    %v4201 = vmax.f32 %v4137, 0.0
    %v4202 = vmax.f32 %v4138, 0.0
    %v4203 = vmax.f32 %v4139, 0.0
    %v4204 = vmax.f32 %v4140, 0.0
    %v4205 = vmax.f32 %v4141, 0.0
    %v4206 = vmax.f32 %v4142, 0.0
    %v4207 = vmax.f32 %v4143, 0.0
    %v4208 = vmax.f32 %v4144, 0.0
    %v4209 = vmax.f32 %v4145, 0.0
    %v4210 = vmax.f32 %v4146, 0.0
    %v4211 = vmax.f32 %v4147, 0.0
    %v4212 = vmax.f32 %v4148, 0.0
    %v4213 = vmax.f32 %v4149, 0.0
    %v4214 = vmax.f32 %v4150, 0.0
    %v4215 = vmax.f32 %v4151, 0.0
    %v4216 = vmax.f32 %v4152, 0.0
    %v4217 = vmax.f32 %v4153, 0.0
    %v4218 = vmax.f32 %v4154, 0.0
    %v4219 = vmax.f32 %v4155, 0.0
    %v4220 = vmax.f32 %v4156, 0.0
    %v4221 = vmax.f32 %v4157, 0.0
    %v4222 = vmax.f32 %v4158, 0.0
    %v4223 = vmax.f32 %v4159, 0.0
    %v4224 = vmax.f32 %v4160, 0.0
    %v4225 = vmax.f32 %v4161, 0.0
    %v4226 = vmax.f32 %v4162, 0.0
    %v4227 = vmax.f32 %v4163, 0.0
    %v4228 = vmax.f32 %v4164, 0.0
    %v4229 = vmax.f32 %v4165, 0.0
    %v4230 = vmax.f32 %v4166, 0.0
    %v4231 = vmax.f32 %v4167, 0.0
    %v4232 = vmax.f32 %v4168, 0.0
    %v4233 = vmax.f32 %v4169, 0.0
    %v4234 = vmax.f32 %v4170, 0.0
    %v4235 = vmax.f32 %v4171, 0.0
    %v4236 = vmax.f32 %v4172, 0.0
    %v4237 = vmax.f32 %v4173, 0.0
    %v4238 = vmax.f32 %v4174, 0.0
    %v4239 = vmax.f32 %v4175, 0.0
    %v4240 = vmax.f32 %v4176, 0.0
    %v4241 = vpack.c.bf16 %v4178, %v4177
    %v4242 = vpack.c.bf16 %v4180, %v4179
    %v4243 = vpack.c.bf16 %v4182, %v4181
    %v4244 = vpack.c.bf16 %v4184, %v4183
    %v4245 = vpack.c.bf16 %v4186, %v4185
    %v4246 = vpack.c.bf16 %v4188, %v4187
    %v4247 = vpack.c.bf16 %v4190, %v4189
    %v4248 = vpack.c.bf16 %v4192, %v4191
    %v4249 = vpack.c.bf16 %v4194, %v4193
    %v4250 = vpack.c.bf16 %v4196, %v4195
    %v4251 = vpack.c.bf16 %v4198, %v4197
    %v4252 = vpack.c.bf16 %v4200, %v4199
    %v4253 = vpack.c.bf16 %v4202, %v4201
    %v4254 = vpack.c.bf16 %v4204, %v4203
    %v4255 = vpack.c.bf16 %v4206, %v4205
    %v4256 = vpack.c.bf16 %v4208, %v4207
    %v4257 = vpack.c.bf16 %v4210, %v4209
    %v4258 = vpack.c.bf16 %v4212, %v4211
    %v4259 = vpack.c.bf16 %v4214, %v4213
    %v4260 = vpack.c.bf16 %v4216, %v4215
    %v4261 = vpack.c.bf16 %v4218, %v4217
    %v4262 = vpack.c.bf16 %v4220, %v4219
    %v4263 = vpack.c.bf16 %v4222, %v4221
    %v4264 = vpack.c.bf16 %v4224, %v4223
    %v4265 = vpack.c.bf16 %v4226, %v4225
    %v4266 = vpack.c.bf16 %v4228, %v4227
    %v4267 = vpack.c.bf16 %v4230, %v4229
    %v4268 = vpack.c.bf16 %v4232, %v4231
    %v4269 = vpack.c.bf16 %v4234, %v4233
    %v4270 = vpack.c.bf16 %v4236, %v4235
    %v4271 = vpack.c.bf16 %v4238, %v4237
    %v4272 = vpack.c.bf16 %v4240, %v4239
    %v4273 = vld [vmem:[%s5] sm:$0xf]
    %v4274 = vld [vmem:[%s5 + $0x4] sm:$0xf]
    %v4275 = vld [vmem:[%s5 + $0x8] sm:$0xf]
    %v4276 = vld [vmem:[%s5 + $0xc] sm:$0xf]
    %v4277 = vld [vmem:[%s5 + $0x10] sm:$0xf]
    %v4278 = vld [vmem:[%s5 + $0x14] sm:$0xf]
    %v4279 = vld [vmem:[%s5 + $0x18] sm:$0xf]
    %v4280 = vld [vmem:[%s5 + $0x1c] sm:$0xf]
    %v4281 = vld [vmem:[%s5 + $0x20] sm:$0xf]
    %v4282 = vld [vmem:[%s5 + $0x24] sm:$0xf]
    %v4283 = vld [vmem:[%s5 + $0x28] sm:$0xf]
    %v4284 = vld [vmem:[%s5 + $0x2c] sm:$0xf]
    %v4285 = vld [vmem:[%s5 + $0x30] sm:$0xf]
    %v4286 = vld [vmem:[%s5 + $0x34] sm:$0xf]
    %v4287 = vld [vmem:[%s5 + $0x38] sm:$0xf]
    %v4288 = vld [vmem:[%s5 + $0x3c] sm:$0xf]
    %v4289 = vld [vmem:[%s6] sm:$0x1]
    %v4291 = vperm.slane %v4289, 0
    %v4309 = vunpack.c.l.b16 %v4273
    %v4310 = vunpack.c.l.b16 %v4274
    %v4311 = vunpack.c.l.b16 %v4275
    %v4312 = vunpack.c.l.b16 %v4276
    %v4313 = vunpack.c.l.b16 %v4277
    %v4314 = vunpack.c.l.b16 %v4278
    %v4315 = vunpack.c.l.b16 %v4279
    %v4316 = vunpack.c.l.b16 %v4280
    %v4317 = vunpack.c.l.b16 %v4281
    %v4318 = vunpack.c.l.b16 %v4282
    %v4319 = vunpack.c.l.b16 %v4283
    %v4320 = vunpack.c.l.b16 %v4284
    %v4321 = vunpack.c.l.b16 %v4285
    %v4322 = vunpack.c.l.b16 %v4286
    %v4323 = vunpack.c.l.b16 %v4287
    %v4324 = vunpack.c.l.b16 %v4288
    %v4325 = vpack.c.b16 %v4310, %v4309
    %v4326 = vpack.c.b16 %v4312, %v4311
    %v4327 = vpack.c.b16 %v4314, %v4313
    %v4328 = vpack.c.b16 %v4316, %v4315
    %v4329 = vpack.c.b16 %v4318, %v4317
    %v4330 = vpack.c.b16 %v4320, %v4319
    %v4331 = vpack.c.b16 %v4322, %v4321
    %v4332 = vpack.c.b16 %v4324, %v4323
    %4341 = vmatpush.bf16.msra.mxu0 %v4332
    %4342 = vmatpush.bf16.msra.mxu0 %v4331
    %4343 = vmatpush.bf16.msra.mxu0 %v4330
    %4344 = vmatpush.bf16.msra.mxu0 %v4329
    %4345 = vmatpush.bf16.msra.mxu0 %v4328
    %4346 = vmatpush.bf16.msra.mxu0 %v4327
    %4347 = vmatpush.bf16.msra.mxu0 %v4326
    %4348 = vmatpush.bf16.msra.mxu0 %v4325
    %4349 = vmatmul.bf16.gmra.mxu0 %v4241
    %v4350 = vpop.f32.mrf.mxu0
    %v4351 = vadd.f32 %v4291, %v4350
    %v4352 = vpop.f32.mrf.mxu0
    %v4353 = vadd.f32 %v4291, %v4352
    %4354 = vmatmul.bf16.gmra.mxu0 %v4242
    %v4355 = vpop.f32.mrf.mxu0
    %v4356 = vadd.f32 %v4291, %v4355
    %v4357 = vpop.f32.mrf.mxu0
    %v4358 = vadd.f32 %v4291, %v4357
    %4359 = vmatmul.bf16.gmra.mxu0 %v4243
    %v4360 = vpop.f32.mrf.mxu0
    %v4361 = vadd.f32 %v4291, %v4360
    %v4362 = vpop.f32.mrf.mxu0
    %v4363 = vadd.f32 %v4291, %v4362
    %4364 = vmatmul.bf16.gmra.mxu0 %v4244
    %v4365 = vpop.f32.mrf.mxu0
    %v4366 = vadd.f32 %v4291, %v4365
    %v4367 = vpop.f32.mrf.mxu0
    %v4368 = vadd.f32 %v4291, %v4367
    %4369 = vmatmul.bf16.gmra.mxu0 %v4245
    %v4370 = vpop.f32.mrf.mxu0
    %v4371 = vadd.f32 %v4291, %v4370
    %v4372 = vpop.f32.mrf.mxu0
    %v4373 = vadd.f32 %v4291, %v4372
    %4374 = vmatmul.bf16.gmra.mxu0 %v4246
    %v4375 = vpop.f32.mrf.mxu0
    %v4376 = vadd.f32 %v4291, %v4375
    %v4377 = vpop.f32.mrf.mxu0
    %v4378 = vadd.f32 %v4291, %v4377
    %4379 = vmatmul.bf16.gmra.mxu0 %v4247
    %v4380 = vpop.f32.mrf.mxu0
    %v4381 = vadd.f32 %v4291, %v4380
    %v4382 = vpop.f32.mrf.mxu0
    %v4383 = vadd.f32 %v4291, %v4382
    %4384 = vmatmul.bf16.gmra.mxu0 %v4248
    %v4385 = vpop.f32.mrf.mxu0
    %v4386 = vadd.f32 %v4291, %v4385
    %v4387 = vpop.f32.mrf.mxu0
    %v4388 = vadd.f32 %v4291, %v4387
    %4389 = vmatmul.bf16.gmra.mxu0 %v4249
    %v4390 = vpop.f32.mrf.mxu0
    %v4391 = vadd.f32 %v4291, %v4390
    %v4392 = vpop.f32.mrf.mxu0
    %v4393 = vadd.f32 %v4291, %v4392
    %4394 = vmatmul.bf16.gmra.mxu0 %v4250
    %v4395 = vpop.f32.mrf.mxu0
    %v4396 = vadd.f32 %v4291, %v4395
    %v4397 = vpop.f32.mrf.mxu0
    %v4398 = vadd.f32 %v4291, %v4397
    %4399 = vmatmul.bf16.gmra.mxu0 %v4251
    %v4400 = vpop.f32.mrf.mxu0
    %v4401 = vadd.f32 %v4291, %v4400
    %v4402 = vpop.f32.mrf.mxu0
    %v4403 = vadd.f32 %v4291, %v4402
    %4404 = vmatmul.bf16.gmra.mxu0 %v4252
    %v4405 = vpop.f32.mrf.mxu0
    %v4406 = vadd.f32 %v4291, %v4405
    %v4407 = vpop.f32.mrf.mxu0
    %v4408 = vadd.f32 %v4291, %v4407
    %4409 = vmatmul.bf16.gmra.mxu0 %v4253
    %v4410 = vpop.f32.mrf.mxu0
    %v4411 = vadd.f32 %v4291, %v4410
    %v4412 = vpop.f32.mrf.mxu0
    %v4413 = vadd.f32 %v4291, %v4412
    %4414 = vmatmul.bf16.gmra.mxu0 %v4254
    %v4415 = vpop.f32.mrf.mxu0
    %v4416 = vadd.f32 %v4291, %v4415
    %v4417 = vpop.f32.mrf.mxu0
    %v4418 = vadd.f32 %v4291, %v4417
    %4419 = vmatmul.bf16.gmra.mxu0 %v4255
    %v4420 = vpop.f32.mrf.mxu0
    %v4421 = vadd.f32 %v4291, %v4420
    %v4422 = vpop.f32.mrf.mxu0
    %v4423 = vadd.f32 %v4291, %v4422
    %4424 = vmatmul.bf16.gmra.mxu0 %v4256
    %v4425 = vpop.f32.mrf.mxu0
    %v4426 = vadd.f32 %v4291, %v4425
    %v4427 = vpop.f32.mrf.mxu0
    %v4428 = vadd.f32 %v4291, %v4427
    %4429 = vmatmul.bf16.gmra.mxu0 %v4257
    %v4430 = vpop.f32.mrf.mxu0
    %v4431 = vadd.f32 %v4291, %v4430
    %v4432 = vpop.f32.mrf.mxu0
    %v4433 = vadd.f32 %v4291, %v4432
    %4434 = vmatmul.bf16.gmra.mxu0 %v4258
    %v4435 = vpop.f32.mrf.mxu0
    %v4436 = vadd.f32 %v4291, %v4435
    %v4437 = vpop.f32.mrf.mxu0
    %v4438 = vadd.f32 %v4291, %v4437
    %4439 = vmatmul.bf16.gmra.mxu0 %v4259
    %v4440 = vpop.f32.mrf.mxu0
    %v4441 = vadd.f32 %v4291, %v4440
    %v4442 = vpop.f32.mrf.mxu0
    %v4443 = vadd.f32 %v4291, %v4442
    %4444 = vmatmul.bf16.gmra.mxu0 %v4260
    %v4445 = vpop.f32.mrf.mxu0
    %v4446 = vadd.f32 %v4291, %v4445
    %v4447 = vpop.f32.mrf.mxu0
    %v4448 = vadd.f32 %v4291, %v4447
    %4449 = vmatmul.bf16.gmra.mxu0 %v4261
    %v4450 = vpop.f32.mrf.mxu0
    %v4451 = vadd.f32 %v4291, %v4450
    %v4452 = vpop.f32.mrf.mxu0
    %v4453 = vadd.f32 %v4291, %v4452
    %4454 = vmatmul.bf16.gmra.mxu0 %v4262
    %v4455 = vpop.f32.mrf.mxu0
    %v4456 = vadd.f32 %v4291, %v4455
    %v4457 = vpop.f32.mrf.mxu0
    %v4458 = vadd.f32 %v4291, %v4457
    %4459 = vmatmul.bf16.gmra.mxu0 %v4263
    %v4460 = vpop.f32.mrf.mxu0
    %v4461 = vadd.f32 %v4291, %v4460
    %v4462 = vpop.f32.mrf.mxu0
    %v4463 = vadd.f32 %v4291, %v4462
    %4464 = vmatmul.bf16.gmra.mxu0 %v4264
    %v4465 = vpop.f32.mrf.mxu0
    %v4466 = vadd.f32 %v4291, %v4465
    %v4467 = vpop.f32.mrf.mxu0
    %v4468 = vadd.f32 %v4291, %v4467
    %4469 = vmatmul.bf16.gmra.mxu0 %v4265
    %v4470 = vpop.f32.mrf.mxu0
    %v4471 = vadd.f32 %v4291, %v4470
    %v4472 = vpop.f32.mrf.mxu0
    %v4473 = vadd.f32 %v4291, %v4472
    %4474 = vmatmul.bf16.gmra.mxu0 %v4266
    %v4475 = vpop.f32.mrf.mxu0
    %v4476 = vadd.f32 %v4291, %v4475
    %v4477 = vpop.f32.mrf.mxu0
    %v4478 = vadd.f32 %v4291, %v4477
    %4479 = vmatmul.bf16.gmra.mxu0 %v4267
    %v4480 = vpop.f32.mrf.mxu0
    %v4481 = vadd.f32 %v4291, %v4480
    %v4482 = vpop.f32.mrf.mxu0
    %v4483 = vadd.f32 %v4291, %v4482
    %4484 = vmatmul.bf16.gmra.mxu0 %v4268
    %v4485 = vpop.f32.mrf.mxu0
    %v4486 = vadd.f32 %v4291, %v4485
    %v4487 = vpop.f32.mrf.mxu0
    %v4488 = vadd.f32 %v4291, %v4487
    %4489 = vmatmul.bf16.gmra.mxu0 %v4269
    %v4490 = vpop.f32.mrf.mxu0
    %v4491 = vadd.f32 %v4291, %v4490
    %v4492 = vpop.f32.mrf.mxu0
    %v4493 = vadd.f32 %v4291, %v4492
    %4494 = vmatmul.bf16.gmra.mxu0 %v4270
    %v4495 = vpop.f32.mrf.mxu0
    %v4496 = vadd.f32 %v4291, %v4495
    %v4497 = vpop.f32.mrf.mxu0
    %v4498 = vadd.f32 %v4291, %v4497
    %4499 = vmatmul.bf16.gmra.mxu0 %v4271
    %v4500 = vpop.f32.mrf.mxu0
    %v4501 = vadd.f32 %v4291, %v4500
    %v4502 = vpop.f32.mrf.mxu0
    %v4503 = vadd.f32 %v4291, %v4502
    %4504 = vmatmul.bf16.gmra.mxu0 %v4272
    %v4505 = vpop.f32.mrf.mxu0
    %v4506 = vadd.f32 %v4291, %v4505
    %v4507 = vpop.f32.mrf.mxu0
    %v4508 = vadd.f32 %v4291, %v4507
    %4509 = vdwg.mxu0
    %v4510 = vld [vmem:[%s0] sm:$0xff]
    %v4511 = vld [vmem:[%s0 + $0x8] sm:$0xff]
    %v4512 = vld [vmem:[%s0 + $0x10] sm:$0xff]
    %v4513 = vld [vmem:[%s0 + $0x18] sm:$0xff]
    %v4514 = vld [vmem:[%s0 + $0x20] sm:$0xff]
    %v4515 = vld [vmem:[%s0 + $0x28] sm:$0xff]
    %v4516 = vld [vmem:[%s0 + $0x30] sm:$0xff]
    %v4517 = vld [vmem:[%s0 + $0x38] sm:$0xff]
    %v4518 = vld [vmem:[%s0 + $0x40] sm:$0xff]
    %v4519 = vld [vmem:[%s0 + $0x48] sm:$0xff]
    %v4520 = vld [vmem:[%s0 + $0x50] sm:$0xff]
    %v4521 = vld [vmem:[%s0 + $0x58] sm:$0xff]
    %v4522 = vld [vmem:[%s0 + $0x60] sm:$0xff]
    %v4523 = vld [vmem:[%s0 + $0x68] sm:$0xff]
    %v4524 = vld [vmem:[%s0 + $0x70] sm:$0xff]
    %v4525 = vld [vmem:[%s0 + $0x78] sm:$0xff]
    %v4526 = vld [vmem:[%s0 + $0x80] sm:$0xff]
    %v4527 = vld [vmem:[%s0 + $0x88] sm:$0xff]
    %v4528 = vld [vmem:[%s0 + $0x90] sm:$0xff]
    %v4529 = vld [vmem:[%s0 + $0x98] sm:$0xff]
    %v4530 = vld [vmem:[%s0 + $0xa0] sm:$0xff]
    %v4531 = vld [vmem:[%s0 + $0xa8] sm:$0xff]
    %v4532 = vld [vmem:[%s0 + $0xb0] sm:$0xff]
    %v4533 = vld [vmem:[%s0 + $0xb8] sm:$0xff]
    %v4534 = vld [vmem:[%s0 + $0xc0] sm:$0xff]
    %v4535 = vld [vmem:[%s0 + $0xc8] sm:$0xff]
    %v4536 = vld [vmem:[%s0 + $0xd0] sm:$0xff]
    %v4537 = vld [vmem:[%s0 + $0xd8] sm:$0xff]
    %v4538 = vld [vmem:[%s0 + $0xe0] sm:$0xff]
    %v4539 = vld [vmem:[%s0 + $0xe8] sm:$0xff]
    %v4540 = vld [vmem:[%s0 + $0xf0] sm:$0xff]
    %v4541 = vld [vmem:[%s0 + $0xf8] sm:$0xff]
    %v4542 = vld [vmem:[%s0 + $0x100] sm:$0xff]
    %v4543 = vld [vmem:[%s0 + $0x108] sm:$0xff]
    %v4544 = vld [vmem:[%s0 + $0x110] sm:$0xff]
    %v4545 = vld [vmem:[%s0 + $0x118] sm:$0xff]
    %v4546 = vld [vmem:[%s0 + $0x120] sm:$0xff]
    %v4547 = vld [vmem:[%s0 + $0x128] sm:$0xff]
    %v4548 = vld [vmem:[%s0 + $0x130] sm:$0xff]
    %v4549 = vld [vmem:[%s0 + $0x138] sm:$0xff]
    %v4550 = vld [vmem:[%s0 + $0x140] sm:$0xff]
    %v4551 = vld [vmem:[%s0 + $0x148] sm:$0xff]
    %v4552 = vld [vmem:[%s0 + $0x150] sm:$0xff]
    %v4553 = vld [vmem:[%s0 + $0x158] sm:$0xff]
    %v4554 = vld [vmem:[%s0 + $0x160] sm:$0xff]
    %v4555 = vld [vmem:[%s0 + $0x168] sm:$0xff]
    %v4556 = vld [vmem:[%s0 + $0x170] sm:$0xff]
    %v4557 = vld [vmem:[%s0 + $0x178] sm:$0xff]
    %v4558 = vld [vmem:[%s0 + $0x180] sm:$0xff]
    %v4559 = vld [vmem:[%s0 + $0x188] sm:$0xff]
    %v4560 = vld [vmem:[%s0 + $0x190] sm:$0xff]
    %v4561 = vld [vmem:[%s0 + $0x198] sm:$0xff]
    %v4562 = vld [vmem:[%s0 + $0x1a0] sm:$0xff]
    %v4563 = vld [vmem:[%s0 + $0x1a8] sm:$0xff]
    %v4564 = vld [vmem:[%s0 + $0x1b0] sm:$0xff]
    %v4565 = vld [vmem:[%s0 + $0x1b8] sm:$0xff]
    %v4566 = vld [vmem:[%s0 + $0x1c0] sm:$0xff]
    %v4567 = vld [vmem:[%s0 + $0x1c8] sm:$0xff]
    %v4568 = vld [vmem:[%s0 + $0x1d0] sm:$0xff]
    %v4569 = vld [vmem:[%s0 + $0x1d8] sm:$0xff]
    %v4570 = vld [vmem:[%s0 + $0x1e0] sm:$0xff]
    %v4571 = vld [vmem:[%s0 + $0x1e8] sm:$0xff]
    %v4572 = vld [vmem:[%s0 + $0x1f0] sm:$0xff]
    %v4573 = vld [vmem:[%s0 + $0x1f8] sm:$0xff]
    %v4574 = vadd.f32 %v4351, %v4510
    %v4575 = vadd.f32 %v4353, %v4511
    %v4576 = vadd.f32 %v4356, %v4512
    %v4577 = vadd.f32 %v4358, %v4513
    %v4578 = vadd.f32 %v4361, %v4514
    %v4579 = vadd.f32 %v4363, %v4515
    %v4580 = vadd.f32 %v4366, %v4516
    %v4581 = vadd.f32 %v4368, %v4517
    %v4582 = vadd.f32 %v4371, %v4518
    %v4583 = vadd.f32 %v4373, %v4519
    %v4584 = vadd.f32 %v4376, %v4520
    %v4585 = vadd.f32 %v4378, %v4521
    %v4586 = vadd.f32 %v4381, %v4522
    %v4587 = vadd.f32 %v4383, %v4523
    %v4588 = vadd.f32 %v4386, %v4524
    %v4589 = vadd.f32 %v4388, %v4525
    %v4590 = vadd.f32 %v4391, %v4526
    %v4591 = vadd.f32 %v4393, %v4527
    %v4592 = vadd.f32 %v4396, %v4528
    %v4593 = vadd.f32 %v4398, %v4529
    %v4594 = vadd.f32 %v4401, %v4530
    %v4595 = vadd.f32 %v4403, %v4531
    %v4596 = vadd.f32 %v4406, %v4532
    %v4597 = vadd.f32 %v4408, %v4533
    %v4598 = vadd.f32 %v4411, %v4534
    %v4599 = vadd.f32 %v4413, %v4535
    %v4600 = vadd.f32 %v4416, %v4536
    %v4601 = vadd.f32 %v4418, %v4537
    %v4602 = vadd.f32 %v4421, %v4538
    %v4603 = vadd.f32 %v4423, %v4539
    %v4604 = vadd.f32 %v4426, %v4540
    %v4605 = vadd.f32 %v4428, %v4541
    %v4606 = vadd.f32 %v4431, %v4542
    %v4607 = vadd.f32 %v4433, %v4543
    %v4608 = vadd.f32 %v4436, %v4544
    %v4609 = vadd.f32 %v4438, %v4545
    %v4610 = vadd.f32 %v4441, %v4546
    %v4611 = vadd.f32 %v4443, %v4547
    %v4612 = vadd.f32 %v4446, %v4548
    %v4613 = vadd.f32 %v4448, %v4549
    %v4614 = vadd.f32 %v4451, %v4550
    %v4615 = vadd.f32 %v4453, %v4551
    %v4616 = vadd.f32 %v4456, %v4552
    %v4617 = vadd.f32 %v4458, %v4553
    %v4618 = vadd.f32 %v4461, %v4554
    %v4619 = vadd.f32 %v4463, %v4555
    %v4620 = vadd.f32 %v4466, %v4556
    %v4621 = vadd.f32 %v4468, %v4557
    %v4622 = vadd.f32 %v4471, %v4558
    %v4623 = vadd.f32 %v4473, %v4559
    %v4624 = vadd.f32 %v4476, %v4560
    %v4625 = vadd.f32 %v4478, %v4561
    %v4626 = vadd.f32 %v4481, %v4562
    %v4627 = vadd.f32 %v4483, %v4563
    %v4628 = vadd.f32 %v4486, %v4564
    %v4629 = vadd.f32 %v4488, %v4565
    %v4630 = vadd.f32 %v4491, %v4566
    %v4631 = vadd.f32 %v4493, %v4567
    %v4632 = vadd.f32 %v4496, %v4568
    %v4633 = vadd.f32 %v4498, %v4569
    %v4634 = vadd.f32 %v4501, %v4570
    %v4635 = vadd.f32 %v4503, %v4571
    %v4636 = vadd.f32 %v4506, %v4572
    %v4637 = vadd.f32 %v4508, %v4573
    %v4638 = vmax.f32 %v4574, 0.0
    %v4639 = vmax.f32 %v4575, 0.0
    %v4640 = vmax.f32 %v4576, 0.0
    %v4641 = vmax.f32 %v4577, 0.0
    %v4642 = vmax.f32 %v4578, 0.0
    %v4643 = vmax.f32 %v4579, 0.0
    %v4644 = vmax.f32 %v4580, 0.0
    %v4645 = vmax.f32 %v4581, 0.0
    %v4646 = vmax.f32 %v4582, 0.0
    %v4647 = vmax.f32 %v4583, 0.0
    %v4648 = vmax.f32 %v4584, 0.0
    %v4649 = vmax.f32 %v4585, 0.0
    %v4650 = vmax.f32 %v4586, 0.0
    %v4651 = vmax.f32 %v4587, 0.0
    %v4652 = vmax.f32 %v4588, 0.0
    %v4653 = vmax.f32 %v4589, 0.0
    %v4654 = vmax.f32 %v4590, 0.0
    %v4655 = vmax.f32 %v4591, 0.0
    %v4656 = vmax.f32 %v4592, 0.0
    %v4657 = vmax.f32 %v4593, 0.0
    %v4658 = vmax.f32 %v4594, 0.0
    %v4659 = vmax.f32 %v4595, 0.0
    %v4660 = vmax.f32 %v4596, 0.0
    %v4661 = vmax.f32 %v4597, 0.0
    %v4662 = vmax.f32 %v4598, 0.0
    %v4663 = vmax.f32 %v4599, 0.0
    %v4664 = vmax.f32 %v4600, 0.0
    %v4665 = vmax.f32 %v4601, 0.0
    %v4666 = vmax.f32 %v4602, 0.0
    %v4667 = vmax.f32 %v4603, 0.0
    %v4668 = vmax.f32 %v4604, 0.0
    %v4669 = vmax.f32 %v4605, 0.0
    %v4670 = vmax.f32 %v4606, 0.0
    %v4671 = vmax.f32 %v4607, 0.0
    %v4672 = vmax.f32 %v4608, 0.0
    %v4673 = vmax.f32 %v4609, 0.0
    %v4674 = vmax.f32 %v4610, 0.0
    %v4675 = vmax.f32 %v4611, 0.0
    %v4676 = vmax.f32 %v4612, 0.0
    %v4677 = vmax.f32 %v4613, 0.0
    %v4678 = vmax.f32 %v4614, 0.0
    %v4679 = vmax.f32 %v4615, 0.0
    %v4680 = vmax.f32 %v4616, 0.0
    %v4681 = vmax.f32 %v4617, 0.0
    %v4682 = vmax.f32 %v4618, 0.0
    %v4683 = vmax.f32 %v4619, 0.0
    %v4684 = vmax.f32 %v4620, 0.0
    %v4685 = vmax.f32 %v4621, 0.0
    %v4686 = vmax.f32 %v4622, 0.0
    %v4687 = vmax.f32 %v4623, 0.0
    %v4688 = vmax.f32 %v4624, 0.0
    %v4689 = vmax.f32 %v4625, 0.0
    %v4690 = vmax.f32 %v4626, 0.0
    %v4691 = vmax.f32 %v4627, 0.0
    %v4692 = vmax.f32 %v4628, 0.0
    %v4693 = vmax.f32 %v4629, 0.0
    %v4694 = vmax.f32 %v4630, 0.0
    %v4695 = vmax.f32 %v4631, 0.0
    %v4696 = vmax.f32 %v4632, 0.0
    %v4697 = vmax.f32 %v4633, 0.0
    %v4698 = vmax.f32 %v4634, 0.0
    %v4699 = vmax.f32 %v4635, 0.0
    %v4700 = vmax.f32 %v4636, 0.0
    %v4701 = vmax.f32 %v4637, 0.0
    %4702 = vst.msk [vmem:[#allocation3] sm:$0xff] %vm136, %v4638
    %4703 = vst.msk [vmem:[#allocation3 + $0x8] sm:$0xff] %vm136, %v4639
    %4704 = vst.msk [vmem:[#allocation3 + $0x10] sm:$0xff] %vm136, %v4640
    %4705 = vst.msk [vmem:[#allocation3 + $0x18] sm:$0xff] %vm136, %v4641
    %4706 = vst.msk [vmem:[#allocation3 + $0x20] sm:$0xff] %vm136, %v4642
    %4707 = vst.msk [vmem:[#allocation3 + $0x28] sm:$0xff] %vm136, %v4643
    %4708 = vst.msk [vmem:[#allocation3 + $0x30] sm:$0xff] %vm136, %v4644
    %4709 = vst.msk [vmem:[#allocation3 + $0x38] sm:$0xff] %vm136, %v4645
    %4710 = vst.msk [vmem:[#allocation3 + $0x40] sm:$0xff] %vm136, %v4646
    %4711 = vst.msk [vmem:[#allocation3 + $0x48] sm:$0xff] %vm136, %v4647
    %4712 = vst.msk [vmem:[#allocation3 + $0x50] sm:$0xff] %vm136, %v4648
    %4713 = vst.msk [vmem:[#allocation3 + $0x58] sm:$0xff] %vm136, %v4649
    %4714 = vst.msk [vmem:[#allocation3 + $0x60] sm:$0xff] %vm136, %v4650
    %4715 = vst.msk [vmem:[#allocation3 + $0x68] sm:$0xff] %vm136, %v4651
    %4716 = vst.msk [vmem:[#allocation3 + $0x70] sm:$0xff] %vm136, %v4652
    %4717 = vst.msk [vmem:[#allocation3 + $0x78] sm:$0xff] %vm136, %v4653
    %4718 = vst.msk [vmem:[#allocation3 + $0x80] sm:$0xff] %vm136, %v4654
    %4719 = vst.msk [vmem:[#allocation3 + $0x88] sm:$0xff] %vm136, %v4655
    %4720 = vst.msk [vmem:[#allocation3 + $0x90] sm:$0xff] %vm136, %v4656
    %4721 = vst.msk [vmem:[#allocation3 + $0x98] sm:$0xff] %vm136, %v4657
    %4722 = vst.msk [vmem:[#allocation3 + $0xa0] sm:$0xff] %vm136, %v4658
    %4723 = vst.msk [vmem:[#allocation3 + $0xa8] sm:$0xff] %vm136, %v4659
    %4724 = vst.msk [vmem:[#allocation3 + $0xb0] sm:$0xff] %vm136, %v4660
    %4725 = vst.msk [vmem:[#allocation3 + $0xb8] sm:$0xff] %vm136, %v4661
    %4726 = vst.msk [vmem:[#allocation3 + $0xc0] sm:$0xff] %vm136, %v4662
    %4727 = vst.msk [vmem:[#allocation3 + $0xc8] sm:$0xff] %vm136, %v4663
    %4728 = vst.msk [vmem:[#allocation3 + $0xd0] sm:$0xff] %vm136, %v4664
    %4729 = vst.msk [vmem:[#allocation3 + $0xd8] sm:$0xff] %vm136, %v4665
    %4730 = vst.msk [vmem:[#allocation3 + $0xe0] sm:$0xff] %vm136, %v4666
    %4731 = vst.msk [vmem:[#allocation3 + $0xe8] sm:$0xff] %vm136, %v4667
    %4732 = vst.msk [vmem:[#allocation3 + $0xf0] sm:$0xff] %vm136, %v4668
    %4733 = vst.msk [vmem:[#allocation3 + $0xf8] sm:$0xff] %vm136, %v4669
    %4734 = vst.msk [vmem:[#allocation3 + $0x100] sm:$0xff] %vm136, %v4670
    %4735 = vst.msk [vmem:[#allocation3 + $0x108] sm:$0xff] %vm136, %v4671
    %4736 = vst.msk [vmem:[#allocation3 + $0x110] sm:$0xff] %vm136, %v4672
    %4737 = vst.msk [vmem:[#allocation3 + $0x118] sm:$0xff] %vm136, %v4673
    %4738 = vst.msk [vmem:[#allocation3 + $0x120] sm:$0xff] %vm136, %v4674
    %4739 = vst.msk [vmem:[#allocation3 + $0x128] sm:$0xff] %vm136, %v4675
    %4740 = vst.msk [vmem:[#allocation3 + $0x130] sm:$0xff] %vm136, %v4676
    %4741 = vst.msk [vmem:[#allocation3 + $0x138] sm:$0xff] %vm136, %v4677
    %4742 = vst.msk [vmem:[#allocation3 + $0x140] sm:$0xff] %vm136, %v4678
    %4743 = vst.msk [vmem:[#allocation3 + $0x148] sm:$0xff] %vm136, %v4679
    %4744 = vst.msk [vmem:[#allocation3 + $0x150] sm:$0xff] %vm136, %v4680
    %4745 = vst.msk [vmem:[#allocation3 + $0x158] sm:$0xff] %vm136, %v4681
    %4746 = vst.msk [vmem:[#allocation3 + $0x160] sm:$0xff] %vm136, %v4682
    %4747 = vst.msk [vmem:[#allocation3 + $0x168] sm:$0xff] %vm136, %v4683
    %4748 = vst.msk [vmem:[#allocation3 + $0x170] sm:$0xff] %vm136, %v4684
    %4749 = vst.msk [vmem:[#allocation3 + $0x178] sm:$0xff] %vm136, %v4685
    %4750 = vst.msk [vmem:[#allocation3 + $0x180] sm:$0xff] %vm136, %v4686
    %4751 = vst.msk [vmem:[#allocation3 + $0x188] sm:$0xff] %vm136, %v4687
    %4752 = vst.msk [vmem:[#allocation3 + $0x190] sm:$0xff] %vm136, %v4688
    %4753 = vst.msk [vmem:[#allocation3 + $0x198] sm:$0xff] %vm136, %v4689
    %4754 = vst.msk [vmem:[#allocation3 + $0x1a0] sm:$0xff] %vm136, %v4690
    %4755 = vst.msk [vmem:[#allocation3 + $0x1a8] sm:$0xff] %vm136, %v4691
    %4756 = vst.msk [vmem:[#allocation3 + $0x1b0] sm:$0xff] %vm136, %v4692
    %4757 = vst.msk [vmem:[#allocation3 + $0x1b8] sm:$0xff] %vm136, %v4693
    %4758 = vst.msk [vmem:[#allocation3 + $0x1c0] sm:$0xff] %vm136, %v4694
    %4759 = vst.msk [vmem:[#allocation3 + $0x1c8] sm:$0xff] %vm136, %v4695
    %4760 = vst.msk [vmem:[#allocation3 + $0x1d0] sm:$0xff] %vm136, %v4696
    %4761 = vst.msk [vmem:[#allocation3 + $0x1d8] sm:$0xff] %vm136, %v4697
    %4762 = vst.msk [vmem:[#allocation3 + $0x1e0] sm:$0xff] %vm136, %v4698
    %4763 = vst.msk [vmem:[#allocation3 + $0x1e8] sm:$0xff] %vm136, %v4699
    %4764 = vst.msk [vmem:[#allocation3 + $0x1f0] sm:$0xff] %vm136, %v4700
    %4765 = vst.msk [vmem:[#allocation3 + $0x1f8] sm:$0xff] %vm136, %v4701
    // Predicated region
    $region30: #{bottleneck_forward.1} parent=1 // pred_check
      _
    $region31: #{bottleneck_forward.1} parent=1 // pred_check_branch
      %4767 = sbr.rel (0) target = $region33
    $region32: #{bottleneck_forward.1} parent=1 // pred_region
      %4769 = vsyncadd [#allocation4], 0
      %s4770 = sshll.u32 [#allocation3], 4
      %s4771 = int_to_ptr.vmem [resolvable:$true] %s4770
      %s4772 = sshll.u32 %s7, 4
      %s4773 = int_to_ptr.hbm [resolvable:$true] %s4772
      %4778 = dma.vmem_to_hbm [thread:$0]  %s4771, 8192, %s4773, [#allocation4], 128, 128, 8
    $region33: #{bottleneck_forward.1} parent=1 // pred_fallthru
      _
    // Predicated region
    $region34: #{bottleneck_forward.1} parent=1 // pred_check
      _
    $region35: #{bottleneck_forward.1} parent=1 // pred_check_branch
      %4780 = sbr.rel (0) target = $region37
    $region36: #{bottleneck_forward.1} parent=1 // pred_region
      %4782 = dma.done [#allocation4], 8192
    $region37: #{bottleneck_forward.1} parent=1 // pred_fallthru
      _
    %4783 = vsyncpa [#allocation4], 1

</llo_original>
